<compile_context>
chip_gen: v7x
topology: tpu7x:2x2x1
jax: 0.10.0
libtpu: 0.0.40
codegen_flags: <defaults>
</compile_context>

<pallas_src>
import functools

import jax
import jax.numpy as jnp
from jax.experimental import pallas as pl
from jax.experimental.pallas import tpu as pltpu


def _round_up(x, m):
    return (x + m - 1) // m * m


def _bilinear_pooling_kernel(e1_ref, e2_ref, u1_ref, u2_ref, p_ref, v1_ref,
                             v2_ref, pb_ref, o_ref):
    """One batch tile: o = sigmoid(e1 U1) * sigmoid(e2 U2) @ P + e1 V1 + e2 V2 + b."""
    e1 = e1_ref[...]
    e2 = e2_ref[...]

    # Gate in a single expression so only one (block_b, D) f32 temporary stays live.
    h = (jax.nn.sigmoid(jnp.dot(e1, u1_ref[...], preferred_element_type=jnp.float32))
         * jax.nn.sigmoid(jnp.dot(e2, u2_ref[...], preferred_element_type=jnp.float32)))

    # Three accumulating dots straight from the resident weight refs — no
    # concatenated [h, e1, e2] temporary (saves ~1 MiB of vst/vld per grid step,
    # identical MXU K-accumulation work).
    c = jnp.dot(h.astype(p_ref.dtype), p_ref[...], preferred_element_type=jnp.float32)
    c = c + jnp.dot(e1, v1_ref[...], preferred_element_type=jnp.float32)
    c = c + jnp.dot(e2, v2_ref[...], preferred_element_type=jnp.float32)
    c = c + pb_ref[...]

    o_ref[...] = c.astype(o_ref.dtype)


@functools.partial(jax.jit, static_argnames=("block_b",))
def _bilinear_pooling_padded(e1, e2, u1, u2, p, v1, v2, p_bias, *, block_b):
    B, M = e1.shape
    _, N = e2.shape
    D = u1.shape[1]
    O = p.shape[1]

    itemsize = jnp.dtype(e1.dtype).itemsize
    flops = 2 * B * (M * D + N * D + D * O + M * O + N * O)
    bytes_accessed = itemsize * (B * M + B * N + M * D + N * D
                                 + D * O + M * O + N * O + O + B * O)
    cost = pl.CostEstimate(flops=flops,
                           transcendentals=2 * B * D,       # two sigmoids
                           bytes_accessed=bytes_accessed)

    # Constant-index weight specs: fetched once and resident across the grid.
    # TODO(synk): add pipeline_mode=pl.Buffered(1) here to drop the dead second
    # buffer (~3.3 MiB) if tiles ever grow near the v7x 64 MiB VMEM ceiling.
    def const(shape):
        return pl.BlockSpec(shape, lambda i: (0, 0))

    return pl.pallas_call(
        _bilinear_pooling_kernel,
        out_shape=jax.ShapeDtypeStruct((B, O), e1.dtype),
        grid_spec=pltpu.PrefetchScalarGridSpec(
            num_scalar_prefetch=0,
            grid=(B // block_b,),
            in_specs=[
                pl.BlockSpec((block_b, M), lambda i: (i, 0)),  # e1 tile
                pl.BlockSpec((block_b, N), lambda i: (i, 0)),  # e2 tile
                const((M, D)),   # U1
                const((N, D)),   # U2
                const((D, O)),   # P
                const((M, O)),   # V1
                const((N, O)),   # V2
                const((1, O)),   # P bias
            ],
            out_specs=pl.BlockSpec((block_b, O), lambda i: (i, 0)),
        ),
        compiler_params=pltpu.CompilerParams(
            dimension_semantics=("parallel",),   # batch tiles shard across v7x TCs
            vmem_limit_bytes=32 * 1024 * 1024,   # v5e default scoped VMEM is 16 MiB
        ),
        cost_estimate=cost,
    )(e1, e2, u1, u2, p, v1, v2, p_bias)


def _pick_block_b(batch):
    """Generation-aware batch tile size (rows of the MXU LHS tile)."""
    try:
        kind = jax.devices()[0].device_kind.lower()
    except Exception:
        kind = ""
    is_v5e = "v5" in kind
    is_v7 = "v7" in kind
    # v6e/v7x MXU is 256x256 -> prefer 256-row LHS tiles for large batches;
    # v5e's MXU is 128 wide, so 128-row tiles already saturate it.
    bb = 128 if is_v5e else 256
    # Keep >= 2 grid steps per TensorCore (v7x has 2 TCs sharing the grid via
    # the "parallel" axis) so BlockSpec double buffering can hide e1/e2 DMA.
    min_steps = 4 if is_v7 else 2
    while bb > 64 and batch < min_steps * bb:
        bb //= 2
    return max(8, min(bb, _round_up(batch, 8)))


def bilinear_pooling(e1, e2, u1, u2, p, p_bias, v1, v2, *, block_b=None):
    """e1: (B, M), e2: (B, N); weights stored as (in_features, out_features); p_bias: (1, O)."""
    B, M = e1.shape
    _, N = e2.shape
    O = p.shape[1]

    # Lane-dense output: pad O to a multiple of 128 so stores are unmasked vst.
    # (Zero weight/bias columns -> zero padded outputs, sliced off below.  At the
    # module defaults O=256 this is a no-op; if O were ragged, hoist this padding
    # to parameter-load time to keep it off the per-call path.)
    o_pad = _round_up(O, 128)
    if o_pad != O:
        pad = ((0, 0), (0, o_pad - O))
        p, v1, v2 = (jnp.pad(w, pad) for w in (p, v1, v2))
        p_bias = jnp.pad(p_bias, pad)

    # Batch tile: generation-aware default, shrunk/padded so the grid divides B.
    eff_block_b = _pick_block_b(B) if block_b is None else min(block_b, _round_up(B, 8))
    b_pad = _round_up(B, eff_block_b)
    if b_pad != B:
        e1 = jnp.pad(e1, ((0, b_pad - B), (0, 0)))
        e2 = jnp.pad(e2, ((0, b_pad - B), (0, 0)))

    out = _bilinear_pooling_padded(e1, e2, u1, u2, p, v1, v2, p_bias,
                                   block_b=eff_block_b)
    return out[:B, :O]


def _reference(e1, e2, u1, u2, p, p_bias, v1, v2):
    hp = jax.lax.Precision.HIGHEST
    h = (jax.nn.sigmoid(jnp.dot(e1, u1, precision=hp)) *
         jax.nn.sigmoid(jnp.dot(e2, u2, precision=hp)))
    return (jnp.dot(h, p, precision=hp) + p_bias +
            jnp.dot(e1, v1, precision=hp) + jnp.dot(e2, v2, precision=hp))


if __name__ == "__main__":
    # Module-default feature dims (M=N=768, D=O=256); batch kept small but large
    # enough that every generation gets >= 2 grid steps per TensorCore.
    B, M, N, D, O = 256, 768, 768, 256, 256

    key = jax.random.PRNGKey(0)
    k_e1, k_e2, k_u1, k_u2, k_p, k_pb, k_v1, k_v2 = jax.random.split(key, 8)

    e1 = jax.random.normal(k_e1, (B, M), dtype=jnp.float32)
    e2 = jax.random.normal(k_e2, (B, N), dtype=jnp.float32)

    # Deterministic synthetic params, stored as (in_features, out_features).
    u1 = jax.random.uniform(k_u1, (M, D), jnp.float32, -1.0, 1.0) / jnp.sqrt(M)
    u2 = jax.random.uniform(k_u2, (N, D), jnp.float32, -1.0, 1.0) / jnp.sqrt(N)
    p = jax.random.uniform(k_p, (D, O), jnp.float32, -1.0, 1.0) / jnp.sqrt(D)
    p_bias = jax.random.uniform(k_pb, (1, O), jnp.float32, -1.0, 1.0) / jnp.sqrt(D)
    v1 = jax.random.uniform(k_v1, (M, O), jnp.float32, -1.0, 1.0) / jnp.sqrt(M)
    v2 = jax.random.uniform(k_v2, (N, O), jnp.float32, -1.0, 1.0) / jnp.sqrt(N)

    out = bilinear_pooling(e1, e2, u1, u2, p, p_bias, v1, v2)
    out = jax.block_until_ready(out)

    ref = _reference(e1, e2, u1, u2, p, p_bias, v1, v2)
    assert out.shape == (B, O)
    max_err = float(jnp.max(jnp.abs(out - ref)))
    assert jnp.allclose(out, ref, atol=5e-3, rtol=5e-3), \
        f"mismatch vs reference (max abs err {max_err})"

    print("KERNEL_OK")
</pallas_src>

<mosaic_0001>
module attributes {stable_mosaic.version = 11 : i64} {
  func.func @_bilinear_pooling_kernel(%arg0: i32, %arg1: memref<128x768xf32, #tpu.memory_space<vmem>>, %arg2: memref<128x768xf32, #tpu.memory_space<vmem>>, %arg3: memref<768x256xf32, #tpu.memory_space<vmem>>, %arg4: memref<768x256xf32, #tpu.memory_space<vmem>>, %arg5: memref<256x256xf32, #tpu.memory_space<vmem>>, %arg6: memref<768x256xf32, #tpu.memory_space<vmem>>, %arg7: memref<768x256xf32, #tpu.memory_space<vmem>>, %arg8: memref<1x256xf32, #tpu.memory_space<vmem>>, %arg9: memref<128x256xf32, #tpu.memory_space<vmem>>) attributes {dimension_semantics = [#tpu.dimension_semantics<parallel>], iteration_bounds = array<i64: 2>, scalar_prefetch = 0 : i64, scratch_operands = 0 : i64, tpu.core_type = #tpu.core_type<tc>, window_params = [{transform_indices = @transform_0, window_bounds = array<i64: 128, 768>}, {transform_indices = @transform_1, window_bounds = array<i64: 128, 768>}, {pipeline_mode = #tpu.pipeline_mode<synchronous>, transform_indices = @transform_2, window_bounds = array<i64: 768, 256>}, {pipeline_mode = #tpu.pipeline_mode<synchronous>, transform_indices = @transform_3, window_bounds = array<i64: 768, 256>}, {pipeline_mode = #tpu.pipeline_mode<synchronous>, transform_indices = @transform_4, window_bounds = array<i64: 256, 256>}, {pipeline_mode = #tpu.pipeline_mode<synchronous>, transform_indices = @transform_5, window_bounds = array<i64: 768, 256>}, {pipeline_mode = #tpu.pipeline_mode<synchronous>, transform_indices = @transform_6, window_bounds = array<i64: 768, 256>}, {pipeline_mode = #tpu.pipeline_mode<synchronous>, transform_indices = @transform_7, window_bounds = array<i64: 1, 256>}, {transform_indices = @transform_8, window_bounds = array<i64: 128, 256>}]} {
    %c0 = arith.constant 0 : index
    %c0_0 = arith.constant 0 : index
    %0 = vector.load %arg1[%c0, %c0_0] : memref<128x768xf32, #tpu.memory_space<vmem>>, vector<128x768xf32>
    %c0_1 = arith.constant 0 : index
    %c0_2 = arith.constant 0 : index
    %1 = vector.load %arg2[%c0_1, %c0_2] : memref<128x768xf32, #tpu.memory_space<vmem>>, vector<128x768xf32>
    %c0_3 = arith.constant 0 : index
    %c0_4 = arith.constant 0 : index
    %2 = vector.load %arg3[%c0_3, %c0_4] : memref<768x256xf32, #tpu.memory_space<vmem>>, vector<768x256xf32>
    %cst = arith.constant dense<0.000000e+00> : vector<128x256xf32>
    %3 = tpu.matmul %0, %2, %cst {dimension_numbers = #tpu.dot_dimension_numbers<[1], [0], [0], [1], [0, 0, 1, 1], [], []>} : vector<128x768xf32>, vector<768x256xf32>, vector<128x256xf32> -> vector<128x256xf32>
    %4 = arith.negf %3 : vector<128x256xf32>
    %5 = math.exp %4 : vector<128x256xf32>
    %cst_5 = arith.constant 1.000000e+00 : f32
    %6 = vector.broadcast %cst_5 : f32 to vector<128x256xf32>
    %7 = arith.addf %6, %5 : vector<128x256xf32>
    %8 = arith.divf %6, %7 : vector<128x256xf32>
    %c0_6 = arith.constant 0 : index
    %c0_7 = arith.constant 0 : index
    %9 = vector.load %arg4[%c0_6, %c0_7] : memref<768x256xf32, #tpu.memory_space<vmem>>, vector<768x256xf32>
    %cst_8 = arith.constant dense<0.000000e+00> : vector<128x256xf32>
    %10 = tpu.matmul %1, %9, %cst_8 {dimension_numbers = #tpu.dot_dimension_numbers<[1], [0], [0], [1], [0, 0, 1, 1], [], []>} : vector<128x768xf32>, vector<768x256xf32>, vector<128x256xf32> -> vector<128x256xf32>
    %11 = arith.negf %10 : vector<128x256xf32>
    %12 = math.exp %11 : vector<128x256xf32>
    %cst_9 = arith.constant 1.000000e+00 : f32
    %13 = vector.broadcast %cst_9 : f32 to vector<128x256xf32>
    %14 = arith.addf %13, %12 : vector<128x256xf32>
    %15 = arith.divf %13, %14 : vector<128x256xf32>
    %16 = arith.mulf %8, %15 : vector<128x256xf32>
    %c0_10 = arith.constant 0 : index
    %c0_11 = arith.constant 0 : index
    %17 = vector.load %arg5[%c0_10, %c0_11] : memref<256x256xf32, #tpu.memory_space<vmem>>, vector<256x256xf32>
    %cst_12 = arith.constant dense<0.000000e+00> : vector<128x256xf32>
    %18 = tpu.matmul %16, %17, %cst_12 {dimension_numbers = #tpu.dot_dimension_numbers<[1], [0], [0], [1], [0, 0, 1, 1], [], []>} : vector<128x256xf32>, vector<256x256xf32>, vector<128x256xf32> -> vector<128x256xf32>
    %c0_13 = arith.constant 0 : index
    %c0_14 = arith.constant 0 : index
    %19 = vector.load %arg6[%c0_13, %c0_14] : memref<768x256xf32, #tpu.memory_space<vmem>>, vector<768x256xf32>
    %cst_15 = arith.constant dense<0.000000e+00> : vector<128x256xf32>
    %20 = tpu.matmul %0, %19, %cst_15 {dimension_numbers = #tpu.dot_dimension_numbers<[1], [0], [0], [1], [0, 0, 1, 1], [], []>} : vector<128x768xf32>, vector<768x256xf32>, vector<128x256xf32> -> vector<128x256xf32>
    %21 = arith.addf %18, %20 : vector<128x256xf32>
    %c0_16 = arith.constant 0 : index
    %c0_17 = arith.constant 0 : index
    %22 = vector.load %arg7[%c0_16, %c0_17] : memref<768x256xf32, #tpu.memory_space<vmem>>, vector<768x256xf32>
    %cst_18 = arith.constant dense<0.000000e+00> : vector<128x256xf32>
    %23 = tpu.matmul %1, %22, %cst_18 {dimension_numbers = #tpu.dot_dimension_numbers<[1], [0], [0], [1], [0, 0, 1, 1], [], []>} : vector<128x768xf32>, vector<768x256xf32>, vector<128x256xf32> -> vector<128x256xf32>
    %24 = arith.addf %21, %23 : vector<128x256xf32>
    %c0_19 = arith.constant 0 : index
    %c0_20 = arith.constant 0 : index
    %25 = vector.load %arg8[%c0_19, %c0_20] : memref<1x256xf32, #tpu.memory_space<vmem>>, vector<1x256xf32>
    %26 = vector.broadcast %25 : vector<1x256xf32> to vector<128x256xf32>
    %27 = arith.addf %24, %26 : vector<128x256xf32>
    %c0_21 = arith.constant 0 : index
    %c0_22 = arith.constant 0 : index
    %28 = vector.load %arg9[%c0_21, %c0_22] : memref<128x256xf32, #tpu.memory_space<vmem>>, vector<128x256xf32>
    tpu.vector_store %arg9[%c0_21, %c0_22], %27 {strides = array<i32>} : memref<128x256xf32, #tpu.memory_space<vmem>>, vector<128x256xf32>,
    return
  }
  func.func @transform_0(%arg0: i32) -> (i32, i32) {
    %c0_i32 = arith.constant 0 : i32
    %c0_i32_0 = arith.constant 0 : i32
    return %arg0, %c0_i32 : i32, i32
  }
  func.func @transform_1(%arg0: i32) -> (i32, i32) {
    %c0_i32 = arith.constant 0 : i32
    %c0_i32_0 = arith.constant 0 : i32
    return %arg0, %c0_i32 : i32, i32
  }
  func.func @transform_2(%arg0: i32) -> (i32, i32) {
    %c0_i32 = arith.constant 0 : i32
    %c0_i32_0 = arith.constant 0 : i32
    %c0_i32_1 = arith.constant 0 : i32
    return %c0_i32, %c0_i32_0 : i32, i32
  }
  func.func @transform_3(%arg0: i32) -> (i32, i32) {
    %c0_i32 = arith.constant 0 : i32
    %c0_i32_0 = arith.constant 0 : i32
    %c0_i32_1 = arith.constant 0 : i32
    return %c0_i32, %c0_i32_0 : i32, i32
  }
  func.func @transform_4(%arg0: i32) -> (i32, i32) {
    %c0_i32 = arith.constant 0 : i32
    %c0_i32_0 = arith.constant 0 : i32
    %c0_i32_1 = arith.constant 0 : i32
    return %c0_i32, %c0_i32_0 : i32, i32
  }
  func.func @transform_5(%arg0: i32) -> (i32, i32) {
    %c0_i32 = arith.constant 0 : i32
    %c0_i32_0 = arith.constant 0 : i32
    %c0_i32_1 = arith.constant 0 : i32
    return %c0_i32, %c0_i32_0 : i32, i32
  }
  func.func @transform_6(%arg0: i32) -> (i32, i32) {
    %c0_i32 = arith.constant 0 : i32
    %c0_i32_0 = arith.constant 0 : i32
    %c0_i32_1 = arith.constant 0 : i32
    return %c0_i32, %c0_i32_0 : i32, i32
  }
  func.func @transform_7(%arg0: i32) -> (i32, i32) {
    %c0_i32 = arith.constant 0 : i32
    %c0_i32_0 = arith.constant 0 : i32
    %c0_i32_1 = arith.constant 0 : i32
    return %c0_i32, %c0_i32_0 : i32, i32
  }
  func.func @transform_8(%arg0: i32) -> (i32, i32) {
    %c0_i32 = arith.constant 0 : i32
    %c0_i32_0 = arith.constant 0 : i32
    return %arg0, %c0_i32 : i32, i32
  }
}

</mosaic_0001>

<llo_original>
// kernel: _bilinear_pooling_padded.1
$region0: #{_bilinear_pooling_padded.1}
  #allocation0 [shape = 'u32[]', space=smem, size = 0x4, offset = 0x4, fixed_abs, tag = 'smem constant byte address 0x4 - core index']
  #allocation1 [shape = 'u32[144,128]{1,0:T(1,128)}', space=vmem, size = 0x12000, scoped, tag = 'internal scratch']
  %s0 = inlined_call_operand.hbm [shape: f32[256,768], index: 0, kind: input, shape index: {}]
  %s1 = inlined_call_operand.hbm [shape: f32[256,768], index: 1, kind: input, shape index: {}]
  %s2 = inlined_call_operand.hbm [shape: f32[768,256], index: 2, kind: input, shape index: {}]
  %s3 = inlined_call_operand.hbm [shape: f32[768,256], index: 3, kind: input, shape index: {}]
  %s4 = inlined_call_operand.hbm [shape: f32[256,256], index: 4, kind: input, shape index: {}]
  %s5 = inlined_call_operand.hbm [shape: f32[768,256], index: 5, kind: input, shape index: {}]
  %s6 = inlined_call_operand.hbm [shape: f32[768,256], index: 6, kind: input, shape index: {}]
  %s7 = inlined_call_operand.vmem [shape: f32[1,256], index: 7, kind: input, shape index: {}]
  %s8 = inlined_call_operand.hbm [shape: f32[256,256], index: 8, kind: output, shape index: {}]
  %s9 = sld [smem:[#allocation0]]
  $region93: #{_bilinear_pooling_padded.1} parent=0
    _
  %s11 = ssub.s32 1, %s9
  %s12 = scalar_select 0, %s11, %s9
  $region1: #{_bilinear_pooling_padded.1} parent=0
    #allocation2 [shape = 'u8[786432]{0}', space=vmem, size = 0xc0000, scoped, tag = 'input window, operand 0']
    #allocation3 [shape = 's32[2]{0}', space=sflag, size = 0x8, scoped, tag = 'scoped memory for _bilinear_pooling_padded.1']
    #allocation4 [shape = 's32[2]{0}', space=sflag, size = 0x8, scoped, tag = 'scoped memory for _bilinear_pooling_padded.1']
    #allocation5 [shape = 'u8[786432]{0}', space=vmem, size = 0xc0000, scoped, tag = 'input window, operand 1']
    #allocation6 [shape = 's32[2]{0}', space=sflag, size = 0x8, scoped, tag = 'scoped memory for _bilinear_pooling_padded.1']
    #allocation7 [shape = 'u8[786432]{0}', space=vmem, size = 0xc0000, scoped, tag = 'input window, operand 2, single buffered']
    #allocation8 [shape = 'u8[786432]{0}', space=vmem, size = 0xc0000, scoped, tag = 'input window, operand 3, single buffered']
    #allocation9 [shape = 's32[1]{0}', space=sflag, size = 0x4, scoped, tag = 'scoped memory for _bilinear_pooling_padded.1']
    #allocation10 [shape = 'u8[262144]{0}', space=vmem, size = 0x40000, scoped, tag = 'input window, operand 4, single buffered']
    #allocation11 [shape = 'u8[786432]{0}', space=vmem, size = 0xc0000, scoped, tag = 'input window, operand 5, single buffered']
    #allocation12 [shape = 's32[1]{0}', space=sflag, size = 0x4, scoped, tag = 'scoped memory for _bilinear_pooling_padded.1']
    #allocation13 [shape = 'u8[786432]{0}', space=vmem, size = 0xc0000, scoped, tag = 'input window, operand 6, single buffered']
    #allocation14 [shape = 'u8[262144]{0}', space=vmem, size = 0x40000, scoped, tag = 'output window, operand 0']
    %13 = vsyncpa [#allocation3], 0
    %s14 = scalar_lea.sflag [#allocation3], 1
    %15 = vsyncpa %s14, 0
    %16 = vsyncpa [#allocation6], 0
    %s17 = scalar_lea.sflag [#allocation6], 1
    %18 = vsyncpa %s17, 0
    %19 = vsyncpa [#allocation9], 0
    %20 = vsyncpa [#allocation12], 0
    %21 = vsyncpa [#allocation4], 0
    %s22 = scalar_lea.sflag [#allocation4], 1
    %23 = vsyncpa %s22, 0
    loop: start=0, step=1, limit=4
    $region2: #{_bilinear_pooling_padded.1} parent=1 // loop_pre_header
      _
    $region3: #{_bilinear_pooling_padded.1} parent=1 // loop_header
      %s25 = sphi 0, %s29
      %p26 = scmp.ge.s32.totalorder %s25, 4
      %s35 = sphi 0, %s37
      %s38 = sphi 0, %s35
      %s39 = sphi 0, %s38
      %s55 = sphi 0, %s39
      %s61 = sphi 0, %s63
      %s64 = sphi 0, %s61
      %s65 = sphi 0, %s64
      %s81 = sphi 0, %s65
      %s85 = sphi 0, %s85
      %s87 = sphi 0, %s85
      %s88 = sphi 0, %s87
      %s102 = sphi 0, %s88
      %s106 = sphi 0, %s106
      %s108 = sphi 0, %s106
      %s109 = sphi 0, %s108
      %s123 = sphi 0, %s109
      %s127 = sphi 0, %s127
      %s129 = sphi 0, %s127
      %s130 = sphi 0, %s129
      %s144 = sphi 0, %s130
      %s148 = sphi 0, %s148
      %s150 = sphi 0, %s148
      %s151 = sphi 0, %s150
      %s165 = sphi 0, %s151
      %s169 = sphi 0, %s169
      %s171 = sphi 0, %s169
      %s172 = sphi 0, %s171
      %s186 = sphi 0, %s172
      %s190 = sphi 0, %s190
      %s192 = sphi 0, %s190
      %s193 = sphi 0, %s192
      %s207 = sphi 0, %s193
      %s213 = sphi 0, %s215
      %s216 = sphi 0, %s213
      %s217 = sphi 0, %s216
      %s233 = sphi 0, %s217
    $region4: #{_bilinear_pooling_padded.1} parent=1 // loop_header_branch
      %28 = sbr.rel (%p26) target = $region8
    $region5: #{_bilinear_pooling_padded.1} parent=1 // loop_body
      %s30 = ssub.s32 %s25, 1
      %s31 = ssub.s32 %s25, 2
      %s32 = sadd.s32 %s25, 1
      %s33 = ssub.s32 %s25, %s32
      %p34 = scmp.eq.s32.totalorder %s33, 0
      %s36 = sadd.s32 %s35, 1
      %s37 = scalar_select %p34, %s35, %s36
      %p40 = pneg %p34
      %p41 = scmp.eq.s32.totalorder %s25, 1
      %p42 = por %p40, %p41
      %p43 = scmp.ne.s32.totalorder %s35, %s38
      %p44 = scmp.eq.s32.totalorder %s25, 0
      %p45 = por %p43, %p44
      %p46 = scmp.ne.s32.totalorder %s35, %s38
      %p47 = scmp.eq.s32.totalorder %s30, 1
      %p48 = por %p46, %p47
      %p49 = scmp.ne.s32.totalorder %s38, %s39
      %p50 = scmp.eq.s32.totalorder %s30, 0
      %p51 = por %p49, %p50
      %p52 = scmp.ne.s32.totalorder %s38, %s39
      %p53 = scmp.eq.s32.totalorder %s31, 1
      %p54 = por %p52, %p53
      %p56 = scmp.ne.s32.totalorder %s39, %s55
      %p57 = scmp.eq.s32.totalorder %s31, 0
      %p58 = por %p56, %p57
      %s59 = ssub.s32 %s25, %s32
      %p60 = scmp.eq.s32.totalorder %s59, 0
      %s62 = sadd.s32 %s61, 1
      %s63 = scalar_select %p60, %s61, %s62
      %p66 = pneg %p60
      %p67 = scmp.eq.s32.totalorder %s25, 1
      %p68 = por %p66, %p67
      %p69 = scmp.ne.s32.totalorder %s61, %s64
      %p70 = scmp.eq.s32.totalorder %s25, 0
      %p71 = por %p69, %p70
      %p72 = scmp.ne.s32.totalorder %s61, %s64
      %p73 = scmp.eq.s32.totalorder %s30, 1
      %p74 = por %p72, %p73
      %p75 = scmp.ne.s32.totalorder %s64, %s65
      %p76 = scmp.eq.s32.totalorder %s30, 0
      %p77 = por %p75, %p76
      %p78 = scmp.ne.s32.totalorder %s64, %s65
      %p79 = scmp.eq.s32.totalorder %s31, 1
      %p80 = por %p78, %p79
      %p82 = scmp.ne.s32.totalorder %s65, %s81
      %p83 = scmp.eq.s32.totalorder %s31, 0
      %p84 = por %p82, %p83
      %s86 = sadd.s32 %s85, 1
      %p89 = scmp.eq.s32.totalorder %s25, 1
      %p90 = scmp.ne.s32.totalorder %s85, %s87
      %p91 = scmp.eq.s32.totalorder %s25, 0
      %p92 = por %p90, %p91
      %p93 = scmp.ne.s32.totalorder %s85, %s87
      %p94 = scmp.eq.s32.totalorder %s30, 1
      %p95 = por %p93, %p94
      %p96 = scmp.ne.s32.totalorder %s87, %s88
      %p97 = scmp.eq.s32.totalorder %s30, 0
      %p98 = por %p96, %p97
      %p99 = scmp.ne.s32.totalorder %s87, %s88
      %p100 = scmp.eq.s32.totalorder %s31, 1
      %p101 = por %p99, %p100
      %p103 = scmp.ne.s32.totalorder %s88, %s102
      %p104 = scmp.eq.s32.totalorder %s31, 0
      %p105 = por %p103, %p104
      %s107 = sadd.s32 %s106, 1
      %p110 = scmp.eq.s32.totalorder %s25, 1
      %p111 = scmp.ne.s32.totalorder %s106, %s108
      %p112 = scmp.eq.s32.totalorder %s25, 0
      %p113 = por %p111, %p112
      %p114 = scmp.ne.s32.totalorder %s106, %s108
      %p115 = scmp.eq.s32.totalorder %s30, 1
      %p116 = por %p114, %p115
      %p117 = scmp.ne.s32.totalorder %s108, %s109
      %p118 = scmp.eq.s32.totalorder %s30, 0
      %p119 = por %p117, %p118
      %p120 = scmp.ne.s32.totalorder %s108, %s109
      %p121 = scmp.eq.s32.totalorder %s31, 1
      %p122 = por %p120, %p121
      %p124 = scmp.ne.s32.totalorder %s109, %s123
      %p125 = scmp.eq.s32.totalorder %s31, 0
      %p126 = por %p124, %p125
      %s128 = sadd.s32 %s127, 1
      %p131 = scmp.eq.s32.totalorder %s25, 1
      %p132 = scmp.ne.s32.totalorder %s127, %s129
      %p133 = scmp.eq.s32.totalorder %s25, 0
      %p134 = por %p132, %p133
      %p135 = scmp.ne.s32.totalorder %s127, %s129
      %p136 = scmp.eq.s32.totalorder %s30, 1
      %p137 = por %p135, %p136
      %p138 = scmp.ne.s32.totalorder %s129, %s130
      %p139 = scmp.eq.s32.totalorder %s30, 0
      %p140 = por %p138, %p139
      %p141 = scmp.ne.s32.totalorder %s129, %s130
      %p142 = scmp.eq.s32.totalorder %s31, 1
      %p143 = por %p141, %p142
      %p145 = scmp.ne.s32.totalorder %s130, %s144
      %p146 = scmp.eq.s32.totalorder %s31, 0
      %p147 = por %p145, %p146
      %s149 = sadd.s32 %s148, 1
      %p152 = scmp.eq.s32.totalorder %s25, 1
      %p153 = scmp.ne.s32.totalorder %s148, %s150
      %p154 = scmp.eq.s32.totalorder %s25, 0
      %p155 = por %p153, %p154
      %p156 = scmp.ne.s32.totalorder %s148, %s150
      %p157 = scmp.eq.s32.totalorder %s30, 1
      %p158 = por %p156, %p157
      %p159 = scmp.ne.s32.totalorder %s150, %s151
      %p160 = scmp.eq.s32.totalorder %s30, 0
      %p161 = por %p159, %p160
      %p162 = scmp.ne.s32.totalorder %s150, %s151
      %p163 = scmp.eq.s32.totalorder %s31, 1
      %p164 = por %p162, %p163
      %p166 = scmp.ne.s32.totalorder %s151, %s165
      %p167 = scmp.eq.s32.totalorder %s31, 0
      %p168 = por %p166, %p167
      %s170 = sadd.s32 %s169, 1
      %p173 = scmp.eq.s32.totalorder %s25, 1
      %p174 = scmp.ne.s32.totalorder %s169, %s171
      %p175 = scmp.eq.s32.totalorder %s25, 0
      %p176 = por %p174, %p175
      %p177 = scmp.ne.s32.totalorder %s169, %s171
      %p178 = scmp.eq.s32.totalorder %s30, 1
      %p179 = por %p177, %p178
      %p180 = scmp.ne.s32.totalorder %s171, %s172
      %p181 = scmp.eq.s32.totalorder %s30, 0
      %p182 = por %p180, %p181
      %p183 = scmp.ne.s32.totalorder %s171, %s172
      %p184 = scmp.eq.s32.totalorder %s31, 1
      %p185 = por %p183, %p184
      %p187 = scmp.ne.s32.totalorder %s172, %s186
      %p188 = scmp.eq.s32.totalorder %s31, 0
      %p189 = por %p187, %p188
      %s191 = sadd.s32 %s190, 1
      %p194 = scmp.eq.s32.totalorder %s25, 1
      %p195 = scmp.ne.s32.totalorder %s190, %s192
      %p196 = scmp.eq.s32.totalorder %s25, 0
      %p197 = por %p195, %p196
      %p198 = scmp.ne.s32.totalorder %s190, %s192
      %p199 = scmp.eq.s32.totalorder %s30, 1
      %p200 = por %p198, %p199
      %p201 = scmp.ne.s32.totalorder %s192, %s193
      %p202 = scmp.eq.s32.totalorder %s30, 0
      %p203 = por %p201, %p202
      %p204 = scmp.ne.s32.totalorder %s192, %s193
      %p205 = scmp.eq.s32.totalorder %s31, 1
      %p206 = por %p204, %p205
      %p208 = scmp.ne.s32.totalorder %s193, %s207
      %p209 = scmp.eq.s32.totalorder %s31, 0
      %p210 = por %p208, %p209
      %s211 = ssub.s32 %s25, %s32
      %p212 = scmp.eq.s32.totalorder %s211, 0
      %s214 = sadd.s32 %s213, 1
      %s215 = scalar_select %p212, %s213, %s214
      %p218 = pneg %p212
      %p219 = scmp.eq.s32.totalorder %s25, 1
      %p220 = por %p218, %p219
      %p221 = scmp.ne.s32.totalorder %s213, %s216
      %p222 = scmp.eq.s32.totalorder %s25, 0
      %p223 = por %p221, %p222
      %p224 = scmp.ne.s32.totalorder %s213, %s216
      %p225 = scmp.eq.s32.totalorder %s30, 1
      %p226 = por %p224, %p225
      %p227 = scmp.ne.s32.totalorder %s216, %s217
      %p228 = scmp.eq.s32.totalorder %s30, 0
      %p229 = por %p227, %p228
      %p230 = scmp.ne.s32.totalorder %s216, %s217
      %p231 = scmp.eq.s32.totalorder %s31, 1
      %p232 = por %p230, %p231
      %p234 = scmp.ne.s32.totalorder %s217, %s233
      %p235 = scmp.eq.s32.totalorder %s31, 0
      %p236 = por %p234, %p235
      %p237 = scmp.le.s32.totalorder 1, %s25
      %p238 = scmp.lt.s32.totalorder %s25, 3
      %p239 = pnand %p237, %p238
      %p240 = pneg %p239
      // Predicated region
      $region9: #{_bilinear_pooling_padded.1} parent=5 // pred_check
        _
      $region10: #{_bilinear_pooling_padded.1} parent=5 // pred_check_branch
        %242 = sbr.rel (%p239) target = $region12
      $region11: #{_bilinear_pooling_padded.1} parent=5 // pred_region
        %s243 = ssub.s32 %s25, 1
        // Predicated region
        $region13: #{_bilinear_pooling_padded.1} parent=11 // pred_check
          %p244 = pneg %p98
        $region14: #{_bilinear_pooling_padded.1} parent=11 // pred_check_branch
          %246 = sbr.rel (%p244) target = $region16
        $region15: #{_bilinear_pooling_padded.1} parent=11 // pred_region
          %s248 = ssub.s32 24576, 24576
          %249 = vsyncadd [#allocation6], %s248
          %s250 = sshll.u32 [#allocation7], 4
          %s251 = int_to_ptr.vmem [resolvable:$true] %s250
          %256 = dma.hbm_to_vmem [thread:$0]  %s2, 24576, %s251, [#allocation6], 256, 256, 16
        $region16: #{_bilinear_pooling_padded.1} parent=11 // pred_fallthru
          _
        // Predicated region
        $region17: #{_bilinear_pooling_padded.1} parent=11 // pred_check
          %p257 = pneg %p119
        $region18: #{_bilinear_pooling_padded.1} parent=11 // pred_check_branch
          %259 = sbr.rel (%p257) target = $region20
        $region19: #{_bilinear_pooling_padded.1} parent=11 // pred_region
          %s261 = ssub.s32 24576, 24576
          %262 = vsyncadd [#allocation9], %s261
          %s263 = sshll.u32 [#allocation8], 4
          %s264 = int_to_ptr.vmem [resolvable:$true] %s263
          %269 = dma.hbm_to_vmem [thread:$0]  %s3, 24576, %s264, [#allocation9], 256, 256, 16
        $region20: #{_bilinear_pooling_padded.1} parent=11 // pred_fallthru
          _
        // Predicated region
        $region21: #{_bilinear_pooling_padded.1} parent=11 // pred_check
          %p270 = pneg %p140
        $region22: #{_bilinear_pooling_padded.1} parent=11 // pred_check_branch
          %272 = sbr.rel (%p270) target = $region24
        $region23: #{_bilinear_pooling_padded.1} parent=11 // pred_region
          %s274 = ssub.s32 8192, 8192
          %275 = vsyncadd [#allocation9], %s274
          %s276 = sshll.u32 [#allocation10], 4
          %s277 = int_to_ptr.vmem [resolvable:$true] %s276
          %282 = dma.hbm_to_vmem [thread:$0]  %s4, 8192, %s277, [#allocation9], 256, 256, 16
        $region24: #{_bilinear_pooling_padded.1} parent=11 // pred_fallthru
          _
        // Predicated region
        $region25: #{_bilinear_pooling_padded.1} parent=11 // pred_check
          %p283 = pneg %p161
        $region26: #{_bilinear_pooling_padded.1} parent=11 // pred_check_branch
          %285 = sbr.rel (%p283) target = $region28
        $region27: #{_bilinear_pooling_padded.1} parent=11 // pred_region
          %s287 = ssub.s32 24576, 24576
          %288 = vsyncadd [#allocation12], %s287
          %s289 = sshll.u32 [#allocation11], 4
          %s290 = int_to_ptr.vmem [resolvable:$true] %s289
          %295 = dma.hbm_to_vmem [thread:$0]  %s5, 24576, %s290, [#allocation12], 256, 256, 16
        $region28: #{_bilinear_pooling_padded.1} parent=11 // pred_fallthru
          _
        // Predicated region
        $region29: #{_bilinear_pooling_padded.1} parent=11 // pred_check
          %p296 = pneg %p182
        $region30: #{_bilinear_pooling_padded.1} parent=11 // pred_check_branch
          %298 = sbr.rel (%p296) target = $region32
        $region31: #{_bilinear_pooling_padded.1} parent=11 // pred_region
          %s300 = ssub.s32 24576, 24576
          %301 = vsyncadd [#allocation12], %s300
          %s302 = sshll.u32 [#allocation13], 4
          %s303 = int_to_ptr.vmem [resolvable:$true] %s302
          %308 = dma.hbm_to_vmem [thread:$0]  %s6, 24576, %s303, [#allocation12], 256, 256, 16
        $region32: #{_bilinear_pooling_padded.1} parent=11 // pred_fallthru
          _
        // Predicated region
        $region33: #{_bilinear_pooling_padded.1} parent=11 // pred_check
          %p309 = pneg %p203
        $region34: #{_bilinear_pooling_padded.1} parent=11 // pred_check_branch
          %311 = sbr.rel (%p309) target = $region36
        $region35: #{_bilinear_pooling_padded.1} parent=11 // pred_region
          _
        $region36: #{_bilinear_pooling_padded.1} parent=11 // pred_fallthru
          _
      $region12: #{_bilinear_pooling_padded.1} parent=5 // pred_fallthru
        _
      %p312 = scmp.lt.s32.totalorder %s25, 2
      // Predicated region
      $region37: #{_bilinear_pooling_padded.1} parent=5 // pred_check
        %p313 = pneg %p312
      $region38: #{_bilinear_pooling_padded.1} parent=5 // pred_check_branch
        %315 = sbr.rel (%p313) target = $region40
      $region39: #{_bilinear_pooling_padded.1} parent=5 // pred_region
        // Predicated region
        $region41: #{_bilinear_pooling_padded.1} parent=39 // pred_check
          %p316 = pneg %p45
        $region42: #{_bilinear_pooling_padded.1} parent=39 // pred_check_branch
          %318 = sbr.rel (%p316) target = $region44
        $region43: #{_bilinear_pooling_padded.1} parent=39 // pred_region
          %s319 = sand.u32 %s35, 1
          %s320 = scalar_lea.sflag [#allocation3], %s319
          %s321 = sand.u32 %s35, 1
          %s322 = smul.addr %s321, 768
          %s323 = scalar_lea.vmem [#allocation2], %s322
          %s324 = smul.u32 16, %s25
          %s326 = ssub.s32 12288, 12288
          %327 = vsyncadd %s320, %s326
          %s328 = smul.addr %s324, 6
          %s329 = smul.addr %s328, 128
          %s330 = scalar_lea.hbm %s0, %s329
          %s331 = sshll.u32 %s323, 4
          %s332 = int_to_ptr.vmem [resolvable:$true] %s331
          %337 = dma.hbm_to_vmem [thread:$0]  %s330, 12288, %s332, %s320, 768, 768, 48
        $region44: #{_bilinear_pooling_padded.1} parent=39 // pred_fallthru
          _
        // Predicated region
        $region45: #{_bilinear_pooling_padded.1} parent=39 // pred_check
          %p338 = pneg %p71
        $region46: #{_bilinear_pooling_padded.1} parent=39 // pred_check_branch
          %340 = sbr.rel (%p338) target = $region48
        $region47: #{_bilinear_pooling_padded.1} parent=39 // pred_region
          %s341 = sand.u32 %s25, 1
          %s342 = scalar_lea.sflag [#allocation6], %s341
          %s343 = sand.u32 %s61, 1
          %s344 = smul.addr %s343, 768
          %s345 = scalar_lea.vmem [#allocation5], %s344
          %s346 = smul.u32 16, %s25
          %s348 = ssub.s32 12288, 12288
          %349 = vsyncadd %s342, %s348
          %s350 = smul.addr %s346, 6
          %s351 = smul.addr %s350, 128
          %s352 = scalar_lea.hbm %s1, %s351
          %s353 = sshll.u32 %s345, 4
          %s354 = int_to_ptr.vmem [resolvable:$true] %s353
          %359 = dma.hbm_to_vmem [thread:$0]  %s352, 12288, %s354, %s342, 768, 768, 48
        $region48: #{_bilinear_pooling_padded.1} parent=39 // pred_fallthru
          _
      $region40: #{_bilinear_pooling_padded.1} parent=5 // pred_fallthru
        _
      %p360 = scmp.le.s32.totalorder 1, %s25
      %p361 = scmp.lt.s32.totalorder %s25, 3
      %p362 = pnand %p360, %p361
      %p363 = pneg %p362
      // Predicated region
      $region49: #{_bilinear_pooling_padded.1} parent=5 // pred_check
        _
      $region50: #{_bilinear_pooling_padded.1} parent=5 // pred_check_branch
        %365 = sbr.rel (%p362) target = $region52
      $region51: #{_bilinear_pooling_padded.1} parent=5 // pred_region
        %s366 = ssub.s32 %s25, 1
        %s367 = sand.u32 %s38, 1
        %s368 = scalar_lea.sflag [#allocation3], %s367
        %s369 = sand.u32 %s38, 1
        %s370 = smul.addr %s369, 768
        %s371 = scalar_lea.vmem [#allocation2], %s370
        // Predicated region
        $region53: #{_bilinear_pooling_padded.1} parent=51 // pred_check
          %p372 = pneg %p51
        $region54: #{_bilinear_pooling_padded.1} parent=51 // pred_check_branch
          %374 = sbr.rel (%p372) target = $region56
        $region55: #{_bilinear_pooling_padded.1} parent=51 // pred_region
          %375 = dma.done %s368, 12288
        $region56: #{_bilinear_pooling_padded.1} parent=51 // pred_fallthru
          _
        %s376 = sand.u32 %s30, 1
        %s377 = scalar_lea.sflag [#allocation6], %s376
        %s378 = sand.u32 %s64, 1
        %s379 = smul.addr %s378, 768
        %s380 = scalar_lea.vmem [#allocation5], %s379
        // Predicated region
        $region57: #{_bilinear_pooling_padded.1} parent=51 // pred_check
          %p381 = pneg %p77
        $region58: #{_bilinear_pooling_padded.1} parent=51 // pred_check_branch
          %383 = sbr.rel (%p381) target = $region60
        $region59: #{_bilinear_pooling_padded.1} parent=51 // pred_region
          %384 = dma.done %s377, 12288
        $region60: #{_bilinear_pooling_padded.1} parent=51 // pred_fallthru
          _
        // Predicated region
        $region61: #{_bilinear_pooling_padded.1} parent=51 // pred_check
          %p385 = pneg %p98
        $region62: #{_bilinear_pooling_padded.1} parent=51 // pred_check_branch
          %387 = sbr.rel (%p385) target = $region64
        $region63: #{_bilinear_pooling_padded.1} parent=51 // pred_region
          %388 = dma.done [#allocation6], 24576
        $region64: #{_bilinear_pooling_padded.1} parent=51 // pred_fallthru
          _
        // Predicated region
        $region65: #{_bilinear_pooling_padded.1} parent=51 // pred_check
          %p389 = pneg %p119
        $region66: #{_bilinear_pooling_padded.1} parent=51 // pred_check_branch
          %391 = sbr.rel (%p389) target = $region68
        $region67: #{_bilinear_pooling_padded.1} parent=51 // pred_region
          %392 = dma.done [#allocation9], 24576
        $region68: #{_bilinear_pooling_padded.1} parent=51 // pred_fallthru
          _
        // Predicated region
        $region69: #{_bilinear_pooling_padded.1} parent=51 // pred_check
          %p393 = pneg %p140
        $region70: #{_bilinear_pooling_padded.1} parent=51 // pred_check_branch
          %395 = sbr.rel (%p393) target = $region72
        $region71: #{_bilinear_pooling_padded.1} parent=51 // pred_region
          %396 = dma.done [#allocation9], 8192
        $region72: #{_bilinear_pooling_padded.1} parent=51 // pred_fallthru
          _
        // Predicated region
        $region73: #{_bilinear_pooling_padded.1} parent=51 // pred_check
          %p397 = pneg %p161
        $region74: #{_bilinear_pooling_padded.1} parent=51 // pred_check_branch
          %399 = sbr.rel (%p397) target = $region76
        $region75: #{_bilinear_pooling_padded.1} parent=51 // pred_region
          %400 = dma.done [#allocation12], 24576
        $region76: #{_bilinear_pooling_padded.1} parent=51 // pred_fallthru
          _
        // Predicated region
        $region77: #{_bilinear_pooling_padded.1} parent=51 // pred_check
          %p401 = pneg %p182
        $region78: #{_bilinear_pooling_padded.1} parent=51 // pred_check_branch
          %403 = sbr.rel (%p401) target = $region80
        $region79: #{_bilinear_pooling_padded.1} parent=51 // pred_region
          %404 = dma.done [#allocation12], 24576
        $region80: #{_bilinear_pooling_padded.1} parent=51 // pred_fallthru
          _
        %s405 = sand.u32 %s38, 1
        %s406 = scalar_lea.sflag [#allocation3], %s405
        %s407 = sand.u32 %s38, 1
        %s408 = smul.addr %s407, 768
        %s409 = scalar_lea.vmem [#allocation2], %s408
        %p410 = pneg %p51
        %p411 = pneg %p48
        %s412 = sand.u32 %s30, 1
        %s413 = scalar_lea.sflag [#allocation6], %s412
        %s414 = sand.u32 %s64, 1
        %s415 = smul.addr %s414, 768
        %s416 = scalar_lea.vmem [#allocation5], %s415
        %p417 = pneg %p77
        %p418 = pneg %p74
        %p419 = pneg %p98
        %p420 = pneg %p95
        %p421 = pneg %p119
        %p422 = pneg %p116
        %p423 = pneg %p140
        %p424 = pneg %p137
        %p425 = pneg %p161
        %p426 = pneg %p158
        %p427 = pneg %p182
        %p428 = pneg %p179
        %p429 = pneg %p203
        %p430 = pneg %p200
        %p431 = pneg %p229
        %p432 = pneg %p226
        %s433 = sand.u32 %s216, 1
        %s434 = scalar_lea.sflag [#allocation4], %s433
        %s435 = sand.u32 %s216, 1
        %s436 = smul.addr %s435, 256
        %s437 = scalar_lea.vmem [#allocation14], %s436
        %s438 = smul.u32 16, %s30
        %s439 = smul.u32 16, %s30
        %s440 = smul.u32 16, %s30
        %v441 = vld [vmem:[%s371] sm:$0xff]
        %v442 = vld [vmem:[%s371 + $0x8] sm:$0xff]
        %v443 = vld [vmem:[%s371 + $0x10] sm:$0xff]
        %v444 = vld [vmem:[%s371 + $0x18] sm:$0xff]
        %v445 = vld [vmem:[%s371 + $0x20] sm:$0xff]
        %v446 = vld [vmem:[%s371 + $0x28] sm:$0xff]
        %v447 = vld [vmem:[%s371 + $0x30] sm:$0xff]
        %v448 = vld [vmem:[%s371 + $0x38] sm:$0xff]
        %v449 = vld [vmem:[%s371 + $0x40] sm:$0xff]
        %v450 = vld [vmem:[%s371 + $0x48] sm:$0xff]
        %v451 = vld [vmem:[%s371 + $0x50] sm:$0xff]
        %v452 = vld [vmem:[%s371 + $0x58] sm:$0xff]
        %v453 = vld [vmem:[%s371 + $0x60] sm:$0xff]
        %v454 = vld [vmem:[%s371 + $0x68] sm:$0xff]
        %v455 = vld [vmem:[%s371 + $0x70] sm:$0xff]
        %v456 = vld [vmem:[%s371 + $0x78] sm:$0xff]
        %v457 = vld [vmem:[%s371 + $0x80] sm:$0xff]
        %v458 = vld [vmem:[%s371 + $0x88] sm:$0xff]
        %v459 = vld [vmem:[%s371 + $0x90] sm:$0xff]
        %v460 = vld [vmem:[%s371 + $0x98] sm:$0xff]
        %v461 = vld [vmem:[%s371 + $0xa0] sm:$0xff]
        %v462 = vld [vmem:[%s371 + $0xa8] sm:$0xff]
        %v463 = vld [vmem:[%s371 + $0xb0] sm:$0xff]
        %v464 = vld [vmem:[%s371 + $0xb8] sm:$0xff]
        %v465 = vld [vmem:[%s371 + $0xc0] sm:$0xff]
        %v466 = vld [vmem:[%s371 + $0xc8] sm:$0xff]
        %v467 = vld [vmem:[%s371 + $0xd0] sm:$0xff]
        %v468 = vld [vmem:[%s371 + $0xd8] sm:$0xff]
        %v469 = vld [vmem:[%s371 + $0xe0] sm:$0xff]
        %v470 = vld [vmem:[%s371 + $0xe8] sm:$0xff]
        %v471 = vld [vmem:[%s371 + $0xf0] sm:$0xff]
        %v472 = vld [vmem:[%s371 + $0xf8] sm:$0xff]
        %v473 = vld [vmem:[%s371 + $0x100] sm:$0xff]
        %v474 = vld [vmem:[%s371 + $0x108] sm:$0xff]
        %v475 = vld [vmem:[%s371 + $0x110] sm:$0xff]
        %v476 = vld [vmem:[%s371 + $0x118] sm:$0xff]
        %v477 = vld [vmem:[%s371 + $0x120] sm:$0xff]
        %v478 = vld [vmem:[%s371 + $0x128] sm:$0xff]
        %v479 = vld [vmem:[%s371 + $0x130] sm:$0xff]
        %v480 = vld [vmem:[%s371 + $0x138] sm:$0xff]
        %v481 = vld [vmem:[%s371 + $0x140] sm:$0xff]
        %v482 = vld [vmem:[%s371 + $0x148] sm:$0xff]
        %v483 = vld [vmem:[%s371 + $0x150] sm:$0xff]
        %v484 = vld [vmem:[%s371 + $0x158] sm:$0xff]
        %v485 = vld [vmem:[%s371 + $0x160] sm:$0xff]
        %v486 = vld [vmem:[%s371 + $0x168] sm:$0xff]
        %v487 = vld [vmem:[%s371 + $0x170] sm:$0xff]
        %v488 = vld [vmem:[%s371 + $0x178] sm:$0xff]
        %v489 = vld [vmem:[%s371 + $0x180] sm:$0xff]
        %v490 = vld [vmem:[%s371 + $0x188] sm:$0xff]
        %v491 = vld [vmem:[%s371 + $0x190] sm:$0xff]
        %v492 = vld [vmem:[%s371 + $0x198] sm:$0xff]
        %v493 = vld [vmem:[%s371 + $0x1a0] sm:$0xff]
        %v494 = vld [vmem:[%s371 + $0x1a8] sm:$0xff]
        %v495 = vld [vmem:[%s371 + $0x1b0] sm:$0xff]
        %v496 = vld [vmem:[%s371 + $0x1b8] sm:$0xff]
        %v497 = vld [vmem:[%s371 + $0x1c0] sm:$0xff]
        %v498 = vld [vmem:[%s371 + $0x1c8] sm:$0xff]
        %v499 = vld [vmem:[%s371 + $0x1d0] sm:$0xff]
        %v500 = vld [vmem:[%s371 + $0x1d8] sm:$0xff]
        %v501 = vld [vmem:[%s371 + $0x1e0] sm:$0xff]
        %v502 = vld [vmem:[%s371 + $0x1e8] sm:$0xff]
        %v503 = vld [vmem:[%s371 + $0x1f0] sm:$0xff]
        %v504 = vld [vmem:[%s371 + $0x1f8] sm:$0xff]
        %v505 = vld [vmem:[%s371 + $0x200] sm:$0xff]
        %v506 = vld [vmem:[%s371 + $0x208] sm:$0xff]
        %v507 = vld [vmem:[%s371 + $0x210] sm:$0xff]
        %v508 = vld [vmem:[%s371 + $0x218] sm:$0xff]
        %v509 = vld [vmem:[%s371 + $0x220] sm:$0xff]
        %v510 = vld [vmem:[%s371 + $0x228] sm:$0xff]
        %v511 = vld [vmem:[%s371 + $0x230] sm:$0xff]
        %v512 = vld [vmem:[%s371 + $0x238] sm:$0xff]
        %v513 = vld [vmem:[%s371 + $0x240] sm:$0xff]
        %v514 = vld [vmem:[%s371 + $0x248] sm:$0xff]
        %v515 = vld [vmem:[%s371 + $0x250] sm:$0xff]
        %v516 = vld [vmem:[%s371 + $0x258] sm:$0xff]
        %v517 = vld [vmem:[%s371 + $0x260] sm:$0xff]
        %v518 = vld [vmem:[%s371 + $0x268] sm:$0xff]
        %v519 = vld [vmem:[%s371 + $0x270] sm:$0xff]
        %v520 = vld [vmem:[%s371 + $0x278] sm:$0xff]
        %v521 = vld [vmem:[%s371 + $0x280] sm:$0xff]
        %v522 = vld [vmem:[%s371 + $0x288] sm:$0xff]
        %v523 = vld [vmem:[%s371 + $0x290] sm:$0xff]
        %v524 = vld [vmem:[%s371 + $0x298] sm:$0xff]
        %v525 = vld [vmem:[%s371 + $0x2a0] sm:$0xff]
        %v526 = vld [vmem:[%s371 + $0x2a8] sm:$0xff]
        %v527 = vld [vmem:[%s371 + $0x2b0] sm:$0xff]
        %v528 = vld [vmem:[%s371 + $0x2b8] sm:$0xff]
        %v529 = vld [vmem:[%s371 + $0x2c0] sm:$0xff]
        %v530 = vld [vmem:[%s371 + $0x2c8] sm:$0xff]
        %v531 = vld [vmem:[%s371 + $0x2d0] sm:$0xff]
        %v532 = vld [vmem:[%s371 + $0x2d8] sm:$0xff]
        %v533 = vld [vmem:[%s371 + $0x2e0] sm:$0xff]
        %v534 = vld [vmem:[%s371 + $0x2e8] sm:$0xff]
        %v535 = vld [vmem:[%s371 + $0x2f0] sm:$0xff]
        %v536 = vld [vmem:[%s371 + $0x2f8] sm:$0xff]
        %v537 = vld [vmem:[%s380] sm:$0xff]
        %v538 = vld [vmem:[%s380 + $0x8] sm:$0xff]
        %v539 = vld [vmem:[%s380 + $0x10] sm:$0xff]
        %v540 = vld [vmem:[%s380 + $0x18] sm:$0xff]
        %v541 = vld [vmem:[%s380 + $0x20] sm:$0xff]
        %v542 = vld [vmem:[%s380 + $0x28] sm:$0xff]
        %v543 = vld [vmem:[%s380 + $0x30] sm:$0xff]
        %v544 = vld [vmem:[%s380 + $0x38] sm:$0xff]
        %v545 = vld [vmem:[%s380 + $0x40] sm:$0xff]
        %v546 = vld [vmem:[%s380 + $0x48] sm:$0xff]
        %v547 = vld [vmem:[%s380 + $0x50] sm:$0xff]
        %v548 = vld [vmem:[%s380 + $0x58] sm:$0xff]
        %v549 = vld [vmem:[%s380 + $0x60] sm:$0xff]
        %v550 = vld [vmem:[%s380 + $0x68] sm:$0xff]
        %v551 = vld [vmem:[%s380 + $0x70] sm:$0xff]
        %v552 = vld [vmem:[%s380 + $0x78] sm:$0xff]
        %v553 = vld [vmem:[%s380 + $0x80] sm:$0xff]
        %v554 = vld [vmem:[%s380 + $0x88] sm:$0xff]
        %v555 = vld [vmem:[%s380 + $0x90] sm:$0xff]
        %v556 = vld [vmem:[%s380 + $0x98] sm:$0xff]
        %v557 = vld [vmem:[%s380 + $0xa0] sm:$0xff]
        %v558 = vld [vmem:[%s380 + $0xa8] sm:$0xff]
        %v559 = vld [vmem:[%s380 + $0xb0] sm:$0xff]
        %v560 = vld [vmem:[%s380 + $0xb8] sm:$0xff]
        %v561 = vld [vmem:[%s380 + $0xc0] sm:$0xff]
        %v562 = vld [vmem:[%s380 + $0xc8] sm:$0xff]
        %v563 = vld [vmem:[%s380 + $0xd0] sm:$0xff]
        %v564 = vld [vmem:[%s380 + $0xd8] sm:$0xff]
        %v565 = vld [vmem:[%s380 + $0xe0] sm:$0xff]
        %v566 = vld [vmem:[%s380 + $0xe8] sm:$0xff]
        %v567 = vld [vmem:[%s380 + $0xf0] sm:$0xff]
        %v568 = vld [vmem:[%s380 + $0xf8] sm:$0xff]
        %v569 = vld [vmem:[%s380 + $0x100] sm:$0xff]
        %v570 = vld [vmem:[%s380 + $0x108] sm:$0xff]
        %v571 = vld [vmem:[%s380 + $0x110] sm:$0xff]
        %v572 = vld [vmem:[%s380 + $0x118] sm:$0xff]
        %v573 = vld [vmem:[%s380 + $0x120] sm:$0xff]
        %v574 = vld [vmem:[%s380 + $0x128] sm:$0xff]
        %v575 = vld [vmem:[%s380 + $0x130] sm:$0xff]
        %v576 = vld [vmem:[%s380 + $0x138] sm:$0xff]
        %v577 = vld [vmem:[%s380 + $0x140] sm:$0xff]
        %v578 = vld [vmem:[%s380 + $0x148] sm:$0xff]
        %v579 = vld [vmem:[%s380 + $0x150] sm:$0xff]
        %v580 = vld [vmem:[%s380 + $0x158] sm:$0xff]
        %v581 = vld [vmem:[%s380 + $0x160] sm:$0xff]
        %v582 = vld [vmem:[%s380 + $0x168] sm:$0xff]
        %v583 = vld [vmem:[%s380 + $0x170] sm:$0xff]
        %v584 = vld [vmem:[%s380 + $0x178] sm:$0xff]
        %v585 = vld [vmem:[%s380 + $0x180] sm:$0xff]
        %v586 = vld [vmem:[%s380 + $0x188] sm:$0xff]
        %v587 = vld [vmem:[%s380 + $0x190] sm:$0xff]
        %v588 = vld [vmem:[%s380 + $0x198] sm:$0xff]
        %v589 = vld [vmem:[%s380 + $0x1a0] sm:$0xff]
        %v590 = vld [vmem:[%s380 + $0x1a8] sm:$0xff]
        %v591 = vld [vmem:[%s380 + $0x1b0] sm:$0xff]
        %v592 = vld [vmem:[%s380 + $0x1b8] sm:$0xff]
        %v593 = vld [vmem:[%s380 + $0x1c0] sm:$0xff]
        %v594 = vld [vmem:[%s380 + $0x1c8] sm:$0xff]
        %v595 = vld [vmem:[%s380 + $0x1d0] sm:$0xff]
        %v596 = vld [vmem:[%s380 + $0x1d8] sm:$0xff]
        %v597 = vld [vmem:[%s380 + $0x1e0] sm:$0xff]
        %v598 = vld [vmem:[%s380 + $0x1e8] sm:$0xff]
        %v599 = vld [vmem:[%s380 + $0x1f0] sm:$0xff]
        %v600 = vld [vmem:[%s380 + $0x1f8] sm:$0xff]
        %v601 = vld [vmem:[%s380 + $0x200] sm:$0xff]
        %v602 = vld [vmem:[%s380 + $0x208] sm:$0xff]
        %v603 = vld [vmem:[%s380 + $0x210] sm:$0xff]
        %v604 = vld [vmem:[%s380 + $0x218] sm:$0xff]
        %v605 = vld [vmem:[%s380 + $0x220] sm:$0xff]
        %v606 = vld [vmem:[%s380 + $0x228] sm:$0xff]
        %v607 = vld [vmem:[%s380 + $0x230] sm:$0xff]
        %v608 = vld [vmem:[%s380 + $0x238] sm:$0xff]
        %v609 = vld [vmem:[%s380 + $0x240] sm:$0xff]
        %v610 = vld [vmem:[%s380 + $0x248] sm:$0xff]
        %v611 = vld [vmem:[%s380 + $0x250] sm:$0xff]
        %v612 = vld [vmem:[%s380 + $0x258] sm:$0xff]
        %v613 = vld [vmem:[%s380 + $0x260] sm:$0xff]
        %v614 = vld [vmem:[%s380 + $0x268] sm:$0xff]
        %v615 = vld [vmem:[%s380 + $0x270] sm:$0xff]
        %v616 = vld [vmem:[%s380 + $0x278] sm:$0xff]
        %v617 = vld [vmem:[%s380 + $0x280] sm:$0xff]
        %v618 = vld [vmem:[%s380 + $0x288] sm:$0xff]
        %v619 = vld [vmem:[%s380 + $0x290] sm:$0xff]
        %v620 = vld [vmem:[%s380 + $0x298] sm:$0xff]
        %v621 = vld [vmem:[%s380 + $0x2a0] sm:$0xff]
        %v622 = vld [vmem:[%s380 + $0x2a8] sm:$0xff]
        %v623 = vld [vmem:[%s380 + $0x2b0] sm:$0xff]
        %v624 = vld [vmem:[%s380 + $0x2b8] sm:$0xff]
        %v625 = vld [vmem:[%s380 + $0x2c0] sm:$0xff]
        %v626 = vld [vmem:[%s380 + $0x2c8] sm:$0xff]
        %v627 = vld [vmem:[%s380 + $0x2d0] sm:$0xff]
        %v628 = vld [vmem:[%s380 + $0x2d8] sm:$0xff]
        %v629 = vld [vmem:[%s380 + $0x2e0] sm:$0xff]
        %v630 = vld [vmem:[%s380 + $0x2e8] sm:$0xff]
        %v631 = vld [vmem:[%s380 + $0x2f0] sm:$0xff]
        %v632 = vld [vmem:[%s380 + $0x2f8] sm:$0xff]
        %v633 = vld [vmem:[#allocation7] sm:$0xff]
        %v634 = vld [vmem:[#allocation7 + $0x8] sm:$0xff]
        %v635 = vld [vmem:[#allocation7 + $0x10] sm:$0xff]
        %v636 = vld [vmem:[#allocation7 + $0x18] sm:$0xff]
        %v637 = vld [vmem:[#allocation7 + $0x20] sm:$0xff]
        %v638 = vld [vmem:[#allocation7 + $0x28] sm:$0xff]
        %v639 = vld [vmem:[#allocation7 + $0x30] sm:$0xff]
        %v640 = vld [vmem:[#allocation7 + $0x38] sm:$0xff]
        %v641 = vld [vmem:[#allocation7 + $0x40] sm:$0xff]
        %v642 = vld [vmem:[#allocation7 + $0x48] sm:$0xff]
        %v643 = vld [vmem:[#allocation7 + $0x50] sm:$0xff]
        %v644 = vld [vmem:[#allocation7 + $0x58] sm:$0xff]
        %v645 = vld [vmem:[#allocation7 + $0x60] sm:$0xff]
        %v646 = vld [vmem:[#allocation7 + $0x68] sm:$0xff]
        %v647 = vld [vmem:[#allocation7 + $0x70] sm:$0xff]
        %v648 = vld [vmem:[#allocation7 + $0x78] sm:$0xff]
        %v649 = vld [vmem:[#allocation7 + $0x80] sm:$0xff]
        %v650 = vld [vmem:[#allocation7 + $0x88] sm:$0xff]
        %v651 = vld [vmem:[#allocation7 + $0x90] sm:$0xff]
        %v652 = vld [vmem:[#allocation7 + $0x98] sm:$0xff]
        %v653 = vld [vmem:[#allocation7 + $0xa0] sm:$0xff]
        %v654 = vld [vmem:[#allocation7 + $0xa8] sm:$0xff]
        %v655 = vld [vmem:[#allocation7 + $0xb0] sm:$0xff]
        %v656 = vld [vmem:[#allocation7 + $0xb8] sm:$0xff]
        %v657 = vld [vmem:[#allocation7 + $0xc0] sm:$0xff]
        %v658 = vld [vmem:[#allocation7 + $0xc8] sm:$0xff]
        %v659 = vld [vmem:[#allocation7 + $0xd0] sm:$0xff]
        %v660 = vld [vmem:[#allocation7 + $0xd8] sm:$0xff]
        %v661 = vld [vmem:[#allocation7 + $0xe0] sm:$0xff]
        %v662 = vld [vmem:[#allocation7 + $0xe8] sm:$0xff]
        %v663 = vld [vmem:[#allocation7 + $0xf0] sm:$0xff]
        %v664 = vld [vmem:[#allocation7 + $0xf8] sm:$0xff]
        %v665 = vld [vmem:[#allocation7 + $0x100] sm:$0xff]
        %v666 = vld [vmem:[#allocation7 + $0x108] sm:$0xff]
        %v667 = vld [vmem:[#allocation7 + $0x110] sm:$0xff]
        %v668 = vld [vmem:[#allocation7 + $0x118] sm:$0xff]
        %v669 = vld [vmem:[#allocation7 + $0x120] sm:$0xff]
        %v670 = vld [vmem:[#allocation7 + $0x128] sm:$0xff]
        %v671 = vld [vmem:[#allocation7 + $0x130] sm:$0xff]
        %v672 = vld [vmem:[#allocation7 + $0x138] sm:$0xff]
        %v673 = vld [vmem:[#allocation7 + $0x140] sm:$0xff]
        %v674 = vld [vmem:[#allocation7 + $0x148] sm:$0xff]
        %v675 = vld [vmem:[#allocation7 + $0x150] sm:$0xff]
        %v676 = vld [vmem:[#allocation7 + $0x158] sm:$0xff]
        %v677 = vld [vmem:[#allocation7 + $0x160] sm:$0xff]
        %v678 = vld [vmem:[#allocation7 + $0x168] sm:$0xff]
        %v679 = vld [vmem:[#allocation7 + $0x170] sm:$0xff]
        %v680 = vld [vmem:[#allocation7 + $0x178] sm:$0xff]
        %v681 = vld [vmem:[#allocation7 + $0x180] sm:$0xff]
        %v682 = vld [vmem:[#allocation7 + $0x188] sm:$0xff]
        %v683 = vld [vmem:[#allocation7 + $0x190] sm:$0xff]
        %v684 = vld [vmem:[#allocation7 + $0x198] sm:$0xff]
        %v685 = vld [vmem:[#allocation7 + $0x1a0] sm:$0xff]
        %v686 = vld [vmem:[#allocation7 + $0x1a8] sm:$0xff]
        %v687 = vld [vmem:[#allocation7 + $0x1b0] sm:$0xff]
        %v688 = vld [vmem:[#allocation7 + $0x1b8] sm:$0xff]
        %v689 = vld [vmem:[#allocation7 + $0x1c0] sm:$0xff]
        %v690 = vld [vmem:[#allocation7 + $0x1c8] sm:$0xff]
        %v691 = vld [vmem:[#allocation7 + $0x1d0] sm:$0xff]
        %v692 = vld [vmem:[#allocation7 + $0x1d8] sm:$0xff]
        %v693 = vld [vmem:[#allocation7 + $0x1e0] sm:$0xff]
        %v694 = vld [vmem:[#allocation7 + $0x1e8] sm:$0xff]
        %v695 = vld [vmem:[#allocation7 + $0x1f0] sm:$0xff]
        %v696 = vld [vmem:[#allocation7 + $0x1f8] sm:$0xff]
        %v697 = vld [vmem:[#allocation7 + $0x200] sm:$0xff]
        %v698 = vld [vmem:[#allocation7 + $0x208] sm:$0xff]
        %v699 = vld [vmem:[#allocation7 + $0x210] sm:$0xff]
        %v700 = vld [vmem:[#allocation7 + $0x218] sm:$0xff]
        %v701 = vld [vmem:[#allocation7 + $0x220] sm:$0xff]
        %v702 = vld [vmem:[#allocation7 + $0x228] sm:$0xff]
        %v703 = vld [vmem:[#allocation7 + $0x230] sm:$0xff]
        %v704 = vld [vmem:[#allocation7 + $0x238] sm:$0xff]
        %v705 = vld [vmem:[#allocation7 + $0x240] sm:$0xff]
        %v706 = vld [vmem:[#allocation7 + $0x248] sm:$0xff]
        %v707 = vld [vmem:[#allocation7 + $0x250] sm:$0xff]
        %v708 = vld [vmem:[#allocation7 + $0x258] sm:$0xff]
        %v709 = vld [vmem:[#allocation7 + $0x260] sm:$0xff]
        %v710 = vld [vmem:[#allocation7 + $0x268] sm:$0xff]
        %v711 = vld [vmem:[#allocation7 + $0x270] sm:$0xff]
        %v712 = vld [vmem:[#allocation7 + $0x278] sm:$0xff]
        %v713 = vld [vmem:[#allocation7 + $0x280] sm:$0xff]
        %v714 = vld [vmem:[#allocation7 + $0x288] sm:$0xff]
        %v715 = vld [vmem:[#allocation7 + $0x290] sm:$0xff]
        %v716 = vld [vmem:[#allocation7 + $0x298] sm:$0xff]
        %v717 = vld [vmem:[#allocation7 + $0x2a0] sm:$0xff]
        %v718 = vld [vmem:[#allocation7 + $0x2a8] sm:$0xff]
        %v719 = vld [vmem:[#allocation7 + $0x2b0] sm:$0xff]
        %v720 = vld [vmem:[#allocation7 + $0x2b8] sm:$0xff]
        %v721 = vld [vmem:[#allocation7 + $0x2c0] sm:$0xff]
        %v722 = vld [vmem:[#allocation7 + $0x2c8] sm:$0xff]
        %v723 = vld [vmem:[#allocation7 + $0x2d0] sm:$0xff]
        %v724 = vld [vmem:[#allocation7 + $0x2d8] sm:$0xff]
        %v725 = vld [vmem:[#allocation7 + $0x2e0] sm:$0xff]
        %v726 = vld [vmem:[#allocation7 + $0x2e8] sm:$0xff]
        %v727 = vld [vmem:[#allocation7 + $0x2f0] sm:$0xff]
        %v728 = vld [vmem:[#allocation7 + $0x2f8] sm:$0xff]
        %v729 = vld [vmem:[#allocation7 + $0x300] sm:$0xff]
        %v730 = vld [vmem:[#allocation7 + $0x308] sm:$0xff]
        %v731 = vld [vmem:[#allocation7 + $0x310] sm:$0xff]
        %v732 = vld [vmem:[#allocation7 + $0x318] sm:$0xff]
        %v733 = vld [vmem:[#allocation7 + $0x320] sm:$0xff]
        %v734 = vld [vmem:[#allocation7 + $0x328] sm:$0xff]
        %v735 = vld [vmem:[#allocation7 + $0x330] sm:$0xff]
        %v736 = vld [vmem:[#allocation7 + $0x338] sm:$0xff]
        %v737 = vld [vmem:[#allocation7 + $0x340] sm:$0xff]
        %v738 = vld [vmem:[#allocation7 + $0x348] sm:$0xff]
        %v739 = vld [vmem:[#allocation7 + $0x350] sm:$0xff]
        %v740 = vld [vmem:[#allocation7 + $0x358] sm:$0xff]
        %v741 = vld [vmem:[#allocation7 + $0x360] sm:$0xff]
        %v742 = vld [vmem:[#allocation7 + $0x368] sm:$0xff]
        %v743 = vld [vmem:[#allocation7 + $0x370] sm:$0xff]
        %v744 = vld [vmem:[#allocation7 + $0x378] sm:$0xff]
        %v745 = vld [vmem:[#allocation7 + $0x380] sm:$0xff]
        %v746 = vld [vmem:[#allocation7 + $0x388] sm:$0xff]
        %v747 = vld [vmem:[#allocation7 + $0x390] sm:$0xff]
        %v748 = vld [vmem:[#allocation7 + $0x398] sm:$0xff]
        %v749 = vld [vmem:[#allocation7 + $0x3a0] sm:$0xff]
        %v750 = vld [vmem:[#allocation7 + $0x3a8] sm:$0xff]
        %v751 = vld [vmem:[#allocation7 + $0x3b0] sm:$0xff]
        %v752 = vld [vmem:[#allocation7 + $0x3b8] sm:$0xff]
        %v753 = vld [vmem:[#allocation7 + $0x3c0] sm:$0xff]
        %v754 = vld [vmem:[#allocation7 + $0x3c8] sm:$0xff]
        %v755 = vld [vmem:[#allocation7 + $0x3d0] sm:$0xff]
        %v756 = vld [vmem:[#allocation7 + $0x3d8] sm:$0xff]
        %v757 = vld [vmem:[#allocation7 + $0x3e0] sm:$0xff]
        %v758 = vld [vmem:[#allocation7 + $0x3e8] sm:$0xff]
        %v759 = vld [vmem:[#allocation7 + $0x3f0] sm:$0xff]
        %v760 = vld [vmem:[#allocation7 + $0x3f8] sm:$0xff]
        %v761 = vld [vmem:[#allocation7 + $0x400] sm:$0xff]
        %v762 = vld [vmem:[#allocation7 + $0x408] sm:$0xff]
        %v763 = vld [vmem:[#allocation7 + $0x410] sm:$0xff]
        %v764 = vld [vmem:[#allocation7 + $0x418] sm:$0xff]
        %v765 = vld [vmem:[#allocation7 + $0x420] sm:$0xff]
        %v766 = vld [vmem:[#allocation7 + $0x428] sm:$0xff]
        %v767 = vld [vmem:[#allocation7 + $0x430] sm:$0xff]
        %v768 = vld [vmem:[#allocation7 + $0x438] sm:$0xff]
        %v769 = vld [vmem:[#allocation7 + $0x440] sm:$0xff]
        %v770 = vld [vmem:[#allocation7 + $0x448] sm:$0xff]
        %v771 = vld [vmem:[#allocation7 + $0x450] sm:$0xff]
        %v772 = vld [vmem:[#allocation7 + $0x458] sm:$0xff]
        %v773 = vld [vmem:[#allocation7 + $0x460] sm:$0xff]
        %v774 = vld [vmem:[#allocation7 + $0x468] sm:$0xff]
        %v775 = vld [vmem:[#allocation7 + $0x470] sm:$0xff]
        %v776 = vld [vmem:[#allocation7 + $0x478] sm:$0xff]
        %v777 = vld [vmem:[#allocation7 + $0x480] sm:$0xff]
        %v778 = vld [vmem:[#allocation7 + $0x488] sm:$0xff]
        %v779 = vld [vmem:[#allocation7 + $0x490] sm:$0xff]
        %v780 = vld [vmem:[#allocation7 + $0x498] sm:$0xff]
        %v781 = vld [vmem:[#allocation7 + $0x4a0] sm:$0xff]
        %v782 = vld [vmem:[#allocation7 + $0x4a8] sm:$0xff]
        %v783 = vld [vmem:[#allocation7 + $0x4b0] sm:$0xff]
        %v784 = vld [vmem:[#allocation7 + $0x4b8] sm:$0xff]
        %v785 = vld [vmem:[#allocation7 + $0x4c0] sm:$0xff]
        %v786 = vld [vmem:[#allocation7 + $0x4c8] sm:$0xff]
        %v787 = vld [vmem:[#allocation7 + $0x4d0] sm:$0xff]
        %v788 = vld [vmem:[#allocation7 + $0x4d8] sm:$0xff]
        %v789 = vld [vmem:[#allocation7 + $0x4e0] sm:$0xff]
        %v790 = vld [vmem:[#allocation7 + $0x4e8] sm:$0xff]
        %v791 = vld [vmem:[#allocation7 + $0x4f0] sm:$0xff]
        %v792 = vld [vmem:[#allocation7 + $0x4f8] sm:$0xff]
        %v793 = vld [vmem:[#allocation7 + $0x500] sm:$0xff]
        %v794 = vld [vmem:[#allocation7 + $0x508] sm:$0xff]
        %v795 = vld [vmem:[#allocation7 + $0x510] sm:$0xff]
        %v796 = vld [vmem:[#allocation7 + $0x518] sm:$0xff]
        %v797 = vld [vmem:[#allocation7 + $0x520] sm:$0xff]
        %v798 = vld [vmem:[#allocation7 + $0x528] sm:$0xff]
        %v799 = vld [vmem:[#allocation7 + $0x530] sm:$0xff]
        %v800 = vld [vmem:[#allocation7 + $0x538] sm:$0xff]
        %v801 = vld [vmem:[#allocation7 + $0x540] sm:$0xff]
        %v802 = vld [vmem:[#allocation7 + $0x548] sm:$0xff]
        %v803 = vld [vmem:[#allocation7 + $0x550] sm:$0xff]
        %v804 = vld [vmem:[#allocation7 + $0x558] sm:$0xff]
        %v805 = vld [vmem:[#allocation7 + $0x560] sm:$0xff]
        %v806 = vld [vmem:[#allocation7 + $0x568] sm:$0xff]
        %v807 = vld [vmem:[#allocation7 + $0x570] sm:$0xff]
        %v808 = vld [vmem:[#allocation7 + $0x578] sm:$0xff]
        %v809 = vld [vmem:[#allocation7 + $0x580] sm:$0xff]
        %v810 = vld [vmem:[#allocation7 + $0x588] sm:$0xff]
        %v811 = vld [vmem:[#allocation7 + $0x590] sm:$0xff]
        %v812 = vld [vmem:[#allocation7 + $0x598] sm:$0xff]
        %v813 = vld [vmem:[#allocation7 + $0x5a0] sm:$0xff]
        %v814 = vld [vmem:[#allocation7 + $0x5a8] sm:$0xff]
        %v815 = vld [vmem:[#allocation7 + $0x5b0] sm:$0xff]
        %v816 = vld [vmem:[#allocation7 + $0x5b8] sm:$0xff]
        %v817 = vld [vmem:[#allocation7 + $0x5c0] sm:$0xff]
        %v818 = vld [vmem:[#allocation7 + $0x5c8] sm:$0xff]
        %v819 = vld [vmem:[#allocation7 + $0x5d0] sm:$0xff]
        %v820 = vld [vmem:[#allocation7 + $0x5d8] sm:$0xff]
        %v821 = vld [vmem:[#allocation7 + $0x5e0] sm:$0xff]
        %v822 = vld [vmem:[#allocation7 + $0x5e8] sm:$0xff]
        %v823 = vld [vmem:[#allocation7 + $0x5f0] sm:$0xff]
        %v824 = vld [vmem:[#allocation7 + $0x5f8] sm:$0xff]
        %825 = vmatprep.subr.mxu0 %v634
        %826 = vmatpush1.msra.mxu0 %v633
        %827 = vmatprep.subr.mxu0 %v636
        %828 = vmatpush1.msra.mxu0 %v635
        %829 = vmatprep.subr.mxu0 %v638
        %830 = vmatpush1.msra.mxu0 %v637
        %831 = vmatprep.subr.mxu0 %v640
        %832 = vmatpush1.msra.mxu0 %v639
        %833 = vmatprep.subr.mxu0 %v642
        %834 = vmatpush1.msra.mxu0 %v641
        %835 = vmatprep.subr.mxu0 %v644
        %836 = vmatpush1.msra.mxu0 %v643
        %837 = vmatprep.subr.mxu0 %v646
        %838 = vmatpush1.msra.mxu0 %v645
        %839 = vmatprep.subr.mxu0 %v648
        %840 = vmatpush1.msra.mxu0 %v647
        %841 = vmatprep.subr.mxu0 %v650
        %842 = vmatpush1.msra.mxu0 %v649
        %843 = vmatprep.subr.mxu0 %v652
        %844 = vmatpush1.msra.mxu0 %v651
        %845 = vmatprep.subr.mxu0 %v654
        %846 = vmatpush1.msra.mxu0 %v653
        %847 = vmatprep.subr.mxu0 %v656
        %848 = vmatpush1.msra.mxu0 %v655
        %849 = vmatprep.subr.mxu0 %v658
        %850 = vmatpush1.msra.mxu0 %v657
        %851 = vmatprep.subr.mxu0 %v660
        %852 = vmatpush1.msra.mxu0 %v659
        %853 = vmatprep.subr.mxu0 %v662
        %854 = vmatpush1.msra.mxu0 %v661
        %855 = vmatprep.subr.mxu0 %v664
        %856 = vmatpush1.msra.mxu0 %v663
        %857 = vmatprep.subr.mxu0 %v666
        %858 = vmatpush1.msra.mxu0 %v665
        %859 = vmatprep.subr.mxu0 %v668
        %860 = vmatpush1.msra.mxu0 %v667
        %861 = vmatprep.subr.mxu0 %v670
        %862 = vmatpush1.msra.mxu0 %v669
        %863 = vmatprep.subr.mxu0 %v672
        %864 = vmatpush1.msra.mxu0 %v671
        %865 = vmatprep.subr.mxu0 %v674
        %866 = vmatpush1.msra.mxu0 %v673
        %867 = vmatprep.subr.mxu0 %v676
        %868 = vmatpush1.msra.mxu0 %v675
        %869 = vmatprep.subr.mxu0 %v678
        %870 = vmatpush1.msra.mxu0 %v677
        %871 = vmatprep.subr.mxu0 %v680
        %872 = vmatpush1.msra.mxu0 %v679
        %873 = vmatprep.subr.mxu0 %v682
        %874 = vmatpush1.msra.mxu0 %v681
        %875 = vmatprep.subr.mxu0 %v684
        %876 = vmatpush1.msra.mxu0 %v683
        %877 = vmatprep.subr.mxu0 %v686
        %878 = vmatpush1.msra.mxu0 %v685
        %879 = vmatprep.subr.mxu0 %v688
        %880 = vmatpush1.msra.mxu0 %v687
        %881 = vmatprep.subr.mxu0 %v690
        %882 = vmatpush1.msra.mxu0 %v689
        %883 = vmatprep.subr.mxu0 %v692
        %884 = vmatpush1.msra.mxu0 %v691
        %885 = vmatprep.subr.mxu0 %v694
        %886 = vmatpush1.msra.mxu0 %v693
        %887 = vmatprep.subr.mxu0 %v696
        %888 = vmatpush1.msra.mxu0 %v695
        %889 = vmatprep.mubr.f32.mxu0 %v442
        %890 = vmatmul.mubr.f32.gmra.mrb[0].mxu0 %v441
        %v891 = vpop.f32.mrb[0].mxu0
        %v892 = vadd.f32 0.0, %v891
        %v893 = vpop.f32.mrb[0].mxu0
        %v894 = vadd.f32 0.0, %v893
        %895 = vmatprep.mubr.f32.mxu0 %v448
        %896 = vmatmul.mubr.f32.gmra.mrb[0].mxu0 %v447
        %v897 = vpop.f32.mrb[0].mxu0
        %v898 = vadd.f32 0.0, %v897
        %v899 = vpop.f32.mrb[0].mxu0
        %v900 = vadd.f32 0.0, %v899
        %901 = vmatprep.mubr.f32.mxu0 %v454
        %902 = vmatmul.mubr.f32.gmra.mrb[0].mxu0 %v453
        %v903 = vpop.f32.mrb[0].mxu0
        %v904 = vadd.f32 0.0, %v903
        %v905 = vpop.f32.mrb[0].mxu0
        %v906 = vadd.f32 0.0, %v905
        %907 = vmatprep.mubr.f32.mxu0 %v460
        %908 = vmatmul.mubr.f32.gmra.mrb[0].mxu0 %v459
        %v909 = vpop.f32.mrb[0].mxu0
        %v910 = vadd.f32 0.0, %v909
        %v911 = vpop.f32.mrb[0].mxu0
        %v912 = vadd.f32 0.0, %v911
        %913 = vmatprep.mubr.f32.mxu0 %v466
        %914 = vmatmul.mubr.f32.gmra.mrb[0].mxu0 %v465
        %v915 = vpop.f32.mrb[0].mxu0
        %v916 = vadd.f32 0.0, %v915
        %v917 = vpop.f32.mrb[0].mxu0
        %v918 = vadd.f32 0.0, %v917
        %919 = vmatprep.mubr.f32.mxu0 %v472
        %920 = vmatmul.mubr.f32.gmra.mrb[0].mxu0 %v471
        %v921 = vpop.f32.mrb[0].mxu0
        %v922 = vadd.f32 0.0, %v921
        %v923 = vpop.f32.mrb[0].mxu0
        %v924 = vadd.f32 0.0, %v923
        %925 = vmatprep.mubr.f32.mxu0 %v478
        %926 = vmatmul.mubr.f32.gmra.mrb[0].mxu0 %v477
        %v927 = vpop.f32.mrb[0].mxu0
        %v928 = vadd.f32 0.0, %v927
        %v929 = vpop.f32.mrb[0].mxu0
        %v930 = vadd.f32 0.0, %v929
        %931 = vmatprep.mubr.f32.mxu0 %v484
        %932 = vmatmul.mubr.f32.gmra.mrb[0].mxu0 %v483
        %v933 = vpop.f32.mrb[0].mxu0
        %v934 = vadd.f32 0.0, %v933
        %v935 = vpop.f32.mrb[0].mxu0
        %v936 = vadd.f32 0.0, %v935
        %937 = vmatprep.mubr.f32.mxu0 %v490
        %938 = vmatmul.mubr.f32.gmra.mrb[0].mxu0 %v489
        %v939 = vpop.f32.mrb[0].mxu0
        %v940 = vadd.f32 0.0, %v939
        %v941 = vpop.f32.mrb[0].mxu0
        %v942 = vadd.f32 0.0, %v941
        %943 = vmatprep.mubr.f32.mxu0 %v496
        %944 = vmatmul.mubr.f32.gmra.mrb[0].mxu0 %v495
        %v945 = vpop.f32.mrb[0].mxu0
        %v946 = vadd.f32 0.0, %v945
        %v947 = vpop.f32.mrb[0].mxu0
        %v948 = vadd.f32 0.0, %v947
        %949 = vmatprep.mubr.f32.mxu0 %v502
        %950 = vmatmul.mubr.f32.gmra.mrb[0].mxu0 %v501
        %v951 = vpop.f32.mrb[0].mxu0
        %v952 = vadd.f32 0.0, %v951
        %v953 = vpop.f32.mrb[0].mxu0
        %v954 = vadd.f32 0.0, %v953
        %955 = vmatprep.mubr.f32.mxu0 %v508
        %956 = vmatmul.mubr.f32.gmra.mrb[0].mxu0 %v507
        %v957 = vpop.f32.mrb[0].mxu0
        %v958 = vadd.f32 0.0, %v957
        %v959 = vpop.f32.mrb[0].mxu0
        %v960 = vadd.f32 0.0, %v959
        %961 = vmatprep.mubr.f32.mxu0 %v514
        %962 = vmatmul.mubr.f32.gmra.mrb[0].mxu0 %v513
        %v963 = vpop.f32.mrb[0].mxu0
        %v964 = vadd.f32 0.0, %v963
        %v965 = vpop.f32.mrb[0].mxu0
        %v966 = vadd.f32 0.0, %v965
        %967 = vmatprep.mubr.f32.mxu0 %v520
        %968 = vmatmul.mubr.f32.gmra.mrb[0].mxu0 %v519
        %v969 = vpop.f32.mrb[0].mxu0
        %v970 = vadd.f32 0.0, %v969
        %v971 = vpop.f32.mrb[0].mxu0
        %v972 = vadd.f32 0.0, %v971
        %973 = vmatprep.mubr.f32.mxu0 %v526
        %974 = vmatmul.mubr.f32.gmra.mrb[0].mxu0 %v525
        %v975 = vpop.f32.mrb[0].mxu0
        %v976 = vadd.f32 0.0, %v975
        %v977 = vpop.f32.mrb[0].mxu0
        %v978 = vadd.f32 0.0, %v977
        %979 = vmatprep.mubr.f32.mxu0 %v532
        %980 = vmatmul.mubr.f32.gmra.mrb[0].mxu0 %v531
        %v981 = vpop.f32.mrb[0].mxu0
        %v982 = vadd.f32 0.0, %v981
        %v983 = vpop.f32.mrb[0].mxu0
        %v984 = vadd.f32 0.0, %v983
        %985 = vdwg.mxu0
        %986 = vmatprep.subr.mxu0 %v698
        %987 = vmatpush1.msra.mxu0 %v697
        %988 = vmatprep.subr.mxu0 %v700
        %989 = vmatpush1.msra.mxu0 %v699
        %990 = vmatprep.subr.mxu0 %v702
        %991 = vmatpush1.msra.mxu0 %v701
        %992 = vmatprep.subr.mxu0 %v704
        %993 = vmatpush1.msra.mxu0 %v703
        %994 = vmatprep.subr.mxu0 %v706
        %995 = vmatpush1.msra.mxu0 %v705
        %996 = vmatprep.subr.mxu0 %v708
        %997 = vmatpush1.msra.mxu0 %v707
        %998 = vmatprep.subr.mxu0 %v710
        %999 = vmatpush1.msra.mxu0 %v709
        %1000 = vmatprep.subr.mxu0 %v712
        %1001 = vmatpush1.msra.mxu0 %v711
        %1002 = vmatprep.subr.mxu0 %v714
        %1003 = vmatpush1.msra.mxu0 %v713
        %1004 = vmatprep.subr.mxu0 %v716
        %1005 = vmatpush1.msra.mxu0 %v715
        %1006 = vmatprep.subr.mxu0 %v718
        %1007 = vmatpush1.msra.mxu0 %v717
        %1008 = vmatprep.subr.mxu0 %v720
        %1009 = vmatpush1.msra.mxu0 %v719
        %1010 = vmatprep.subr.mxu0 %v722
        %1011 = vmatpush1.msra.mxu0 %v721
        %1012 = vmatprep.subr.mxu0 %v724
        %1013 = vmatpush1.msra.mxu0 %v723
        %1014 = vmatprep.subr.mxu0 %v726
        %1015 = vmatpush1.msra.mxu0 %v725
        %1016 = vmatprep.subr.mxu0 %v728
        %1017 = vmatpush1.msra.mxu0 %v727
        %1018 = vmatprep.subr.mxu0 %v730
        %1019 = vmatpush1.msra.mxu0 %v729
        %1020 = vmatprep.subr.mxu0 %v732
        %1021 = vmatpush1.msra.mxu0 %v731
        %1022 = vmatprep.subr.mxu0 %v734
        %1023 = vmatpush1.msra.mxu0 %v733
        %1024 = vmatprep.subr.mxu0 %v736
        %1025 = vmatpush1.msra.mxu0 %v735
        %1026 = vmatprep.subr.mxu0 %v738
        %1027 = vmatpush1.msra.mxu0 %v737
        %1028 = vmatprep.subr.mxu0 %v740
        %1029 = vmatpush1.msra.mxu0 %v739
        %1030 = vmatprep.subr.mxu0 %v742
        %1031 = vmatpush1.msra.mxu0 %v741
        %1032 = vmatprep.subr.mxu0 %v744
        %1033 = vmatpush1.msra.mxu0 %v743
        %1034 = vmatprep.subr.mxu0 %v746
        %1035 = vmatpush1.msra.mxu0 %v745
        %1036 = vmatprep.subr.mxu0 %v748
        %1037 = vmatpush1.msra.mxu0 %v747
        %1038 = vmatprep.subr.mxu0 %v750
        %1039 = vmatpush1.msra.mxu0 %v749
        %1040 = vmatprep.subr.mxu0 %v752
        %1041 = vmatpush1.msra.mxu0 %v751
        %1042 = vmatprep.subr.mxu0 %v754
        %1043 = vmatpush1.msra.mxu0 %v753
        %1044 = vmatprep.subr.mxu0 %v756
        %1045 = vmatpush1.msra.mxu0 %v755
        %1046 = vmatprep.subr.mxu0 %v758
        %1047 = vmatpush1.msra.mxu0 %v757
        %1048 = vmatprep.subr.mxu0 %v760
        %1049 = vmatpush1.msra.mxu0 %v759
        %1050 = vmatprep.mubr.f32.mxu0 %v444
        %1051 = vmatmul.mubr.f32.gmra.mrb[0].mxu0 %v443
        %v1052 = vpop.f32.mrb[0].mxu0
        %v1053 = vadd.f32 %v892, %v1052
        %v1054 = vpop.f32.mrb[0].mxu0
        %v1055 = vadd.f32 %v894, %v1054
        %1056 = vmatprep.mubr.f32.mxu0 %v450
        %1057 = vmatmul.mubr.f32.gmra.mrb[0].mxu0 %v449
        %v1058 = vpop.f32.mrb[0].mxu0
        %v1059 = vadd.f32 %v898, %v1058
        %v1060 = vpop.f32.mrb[0].mxu0
        %v1061 = vadd.f32 %v900, %v1060
        %1062 = vmatprep.mubr.f32.mxu0 %v456
        %1063 = vmatmul.mubr.f32.gmra.mrb[0].mxu0 %v455
        %v1064 = vpop.f32.mrb[0].mxu0
        %v1065 = vadd.f32 %v904, %v1064
        %v1066 = vpop.f32.mrb[0].mxu0
        %v1067 = vadd.f32 %v906, %v1066
        %1068 = vmatprep.mubr.f32.mxu0 %v462
        %1069 = vmatmul.mubr.f32.gmra.mrb[0].mxu0 %v461
        %v1070 = vpop.f32.mrb[0].mxu0
        %v1071 = vadd.f32 %v910, %v1070
        %v1072 = vpop.f32.mrb[0].mxu0
        %v1073 = vadd.f32 %v912, %v1072
        %1074 = vmatprep.mubr.f32.mxu0 %v468
        %1075 = vmatmul.mubr.f32.gmra.mrb[0].mxu0 %v467
        %v1076 = vpop.f32.mrb[0].mxu0
        %v1077 = vadd.f32 %v916, %v1076
        %v1078 = vpop.f32.mrb[0].mxu0
        %v1079 = vadd.f32 %v918, %v1078
        %1080 = vmatprep.mubr.f32.mxu0 %v474
        %1081 = vmatmul.mubr.f32.gmra.mrb[0].mxu0 %v473
        %v1082 = vpop.f32.mrb[0].mxu0
        %v1083 = vadd.f32 %v922, %v1082
        %v1084 = vpop.f32.mrb[0].mxu0
        %v1085 = vadd.f32 %v924, %v1084
        %1086 = vmatprep.mubr.f32.mxu0 %v480
        %1087 = vmatmul.mubr.f32.gmra.mrb[0].mxu0 %v479
        %v1088 = vpop.f32.mrb[0].mxu0
        %v1089 = vadd.f32 %v928, %v1088
        %v1090 = vpop.f32.mrb[0].mxu0
        %v1091 = vadd.f32 %v930, %v1090
        %1092 = vmatprep.mubr.f32.mxu0 %v486
        %1093 = vmatmul.mubr.f32.gmra.mrb[0].mxu0 %v485
        %v1094 = vpop.f32.mrb[0].mxu0
        %v1095 = vadd.f32 %v934, %v1094
        %v1096 = vpop.f32.mrb[0].mxu0
        %v1097 = vadd.f32 %v936, %v1096
        %1098 = vmatprep.mubr.f32.mxu0 %v492
        %1099 = vmatmul.mubr.f32.gmra.mrb[0].mxu0 %v491
        %v1100 = vpop.f32.mrb[0].mxu0
        %v1101 = vadd.f32 %v940, %v1100
        %v1102 = vpop.f32.mrb[0].mxu0
        %v1103 = vadd.f32 %v942, %v1102
        %1104 = vmatprep.mubr.f32.mxu0 %v498
        %1105 = vmatmul.mubr.f32.gmra.mrb[0].mxu0 %v497
        %v1106 = vpop.f32.mrb[0].mxu0
        %v1107 = vadd.f32 %v946, %v1106
        %v1108 = vpop.f32.mrb[0].mxu0
        %v1109 = vadd.f32 %v948, %v1108
        %1110 = vmatprep.mubr.f32.mxu0 %v504
        %1111 = vmatmul.mubr.f32.gmra.mrb[0].mxu0 %v503
        %v1112 = vpop.f32.mrb[0].mxu0
        %v1113 = vadd.f32 %v952, %v1112
        %v1114 = vpop.f32.mrb[0].mxu0
        %v1115 = vadd.f32 %v954, %v1114
        %1116 = vmatprep.mubr.f32.mxu0 %v510
        %1117 = vmatmul.mubr.f32.gmra.mrb[0].mxu0 %v509
        %v1118 = vpop.f32.mrb[0].mxu0
        %v1119 = vadd.f32 %v958, %v1118
        %v1120 = vpop.f32.mrb[0].mxu0
        %v1121 = vadd.f32 %v960, %v1120
        %1122 = vmatprep.mubr.f32.mxu0 %v516
        %1123 = vmatmul.mubr.f32.gmra.mrb[0].mxu0 %v515
        %v1124 = vpop.f32.mrb[0].mxu0
        %v1125 = vadd.f32 %v964, %v1124
        %v1126 = vpop.f32.mrb[0].mxu0
        %v1127 = vadd.f32 %v966, %v1126
        %1128 = vmatprep.mubr.f32.mxu0 %v522
        %1129 = vmatmul.mubr.f32.gmra.mrb[0].mxu0 %v521
        %v1130 = vpop.f32.mrb[0].mxu0
        %v1131 = vadd.f32 %v970, %v1130
        %v1132 = vpop.f32.mrb[0].mxu0
        %v1133 = vadd.f32 %v972, %v1132
        %1134 = vmatprep.mubr.f32.mxu0 %v528
        %1135 = vmatmul.mubr.f32.gmra.mrb[0].mxu0 %v527
        %v1136 = vpop.f32.mrb[0].mxu0
        %v1137 = vadd.f32 %v976, %v1136
        %v1138 = vpop.f32.mrb[0].mxu0
        %v1139 = vadd.f32 %v978, %v1138
        %1140 = vmatprep.mubr.f32.mxu0 %v534
        %1141 = vmatmul.mubr.f32.gmra.mrb[0].mxu0 %v533
        %v1142 = vpop.f32.mrb[0].mxu0
        %v1143 = vadd.f32 %v982, %v1142
        %v1144 = vpop.f32.mrb[0].mxu0
        %v1145 = vadd.f32 %v984, %v1144
        %1146 = vdwg.mxu0
        %1147 = vmatprep.subr.mxu0 %v762
        %1148 = vmatpush1.msra.mxu0 %v761
        %1149 = vmatprep.subr.mxu0 %v764
        %1150 = vmatpush1.msra.mxu0 %v763
        %1151 = vmatprep.subr.mxu0 %v766
        %1152 = vmatpush1.msra.mxu0 %v765
        %1153 = vmatprep.subr.mxu0 %v768
        %1154 = vmatpush1.msra.mxu0 %v767
        %1155 = vmatprep.subr.mxu0 %v770
        %1156 = vmatpush1.msra.mxu0 %v769
        %1157 = vmatprep.subr.mxu0 %v772
        %1158 = vmatpush1.msra.mxu0 %v771
        %1159 = vmatprep.subr.mxu0 %v774
        %1160 = vmatpush1.msra.mxu0 %v773
        %1161 = vmatprep.subr.mxu0 %v776
        %1162 = vmatpush1.msra.mxu0 %v775
        %1163 = vmatprep.subr.mxu0 %v778
        %1164 = vmatpush1.msra.mxu0 %v777
        %1165 = vmatprep.subr.mxu0 %v780
        %1166 = vmatpush1.msra.mxu0 %v779
        %1167 = vmatprep.subr.mxu0 %v782
        %1168 = vmatpush1.msra.mxu0 %v781
        %1169 = vmatprep.subr.mxu0 %v784
        %1170 = vmatpush1.msra.mxu0 %v783
        %1171 = vmatprep.subr.mxu0 %v786
        %1172 = vmatpush1.msra.mxu0 %v785
        %1173 = vmatprep.subr.mxu0 %v788
        %1174 = vmatpush1.msra.mxu0 %v787
        %1175 = vmatprep.subr.mxu0 %v790
        %1176 = vmatpush1.msra.mxu0 %v789
        %1177 = vmatprep.subr.mxu0 %v792
        %1178 = vmatpush1.msra.mxu0 %v791
        %1179 = vmatprep.subr.mxu0 %v794
        %1180 = vmatpush1.msra.mxu0 %v793
        %1181 = vmatprep.subr.mxu0 %v796
        %1182 = vmatpush1.msra.mxu0 %v795
        %1183 = vmatprep.subr.mxu0 %v798
        %1184 = vmatpush1.msra.mxu0 %v797
        %1185 = vmatprep.subr.mxu0 %v800
        %1186 = vmatpush1.msra.mxu0 %v799
        %1187 = vmatprep.subr.mxu0 %v802
        %1188 = vmatpush1.msra.mxu0 %v801
        %1189 = vmatprep.subr.mxu0 %v804
        %1190 = vmatpush1.msra.mxu0 %v803
        %1191 = vmatprep.subr.mxu0 %v806
        %1192 = vmatpush1.msra.mxu0 %v805
        %1193 = vmatprep.subr.mxu0 %v808
        %1194 = vmatpush1.msra.mxu0 %v807
        %1195 = vmatprep.subr.mxu0 %v810
        %1196 = vmatpush1.msra.mxu0 %v809
        %1197 = vmatprep.subr.mxu0 %v812
        %1198 = vmatpush1.msra.mxu0 %v811
        %1199 = vmatprep.subr.mxu0 %v814
        %1200 = vmatpush1.msra.mxu0 %v813
        %1201 = vmatprep.subr.mxu0 %v816
        %1202 = vmatpush1.msra.mxu0 %v815
        %1203 = vmatprep.subr.mxu0 %v818
        %1204 = vmatpush1.msra.mxu0 %v817
        %1205 = vmatprep.subr.mxu0 %v820
        %1206 = vmatpush1.msra.mxu0 %v819
        %1207 = vmatprep.subr.mxu0 %v822
        %1208 = vmatpush1.msra.mxu0 %v821
        %1209 = vmatprep.subr.mxu0 %v824
        %1210 = vmatpush1.msra.mxu0 %v823
        %1211 = vmatprep.mubr.f32.mxu0 %v446
        %1212 = vmatmul.mubr.f32.gmra.mrb[0].mxu0 %v445
        %v1213 = vpop.f32.mrb[0].mxu0
        %v1214 = vadd.f32 %v1053, %v1213
        %v1215 = vpop.f32.mrb[0].mxu0
        %v1216 = vadd.f32 %v1055, %v1215
        %1217 = vmatprep.mubr.f32.mxu0 %v452
        %1218 = vmatmul.mubr.f32.gmra.mrb[0].mxu0 %v451
        %v1219 = vpop.f32.mrb[0].mxu0
        %v1220 = vadd.f32 %v1059, %v1219
        %v1221 = vpop.f32.mrb[0].mxu0
        %v1222 = vadd.f32 %v1061, %v1221
        %1223 = vmatprep.mubr.f32.mxu0 %v458
        %1224 = vmatmul.mubr.f32.gmra.mrb[0].mxu0 %v457
        %v1225 = vpop.f32.mrb[0].mxu0
        %v1226 = vadd.f32 %v1065, %v1225
        %v1227 = vpop.f32.mrb[0].mxu0
        %v1228 = vadd.f32 %v1067, %v1227
        %1229 = vmatprep.mubr.f32.mxu0 %v464
        %1230 = vmatmul.mubr.f32.gmra.mrb[0].mxu0 %v463
        %v1231 = vpop.f32.mrb[0].mxu0
        %v1232 = vadd.f32 %v1071, %v1231
        %v1233 = vpop.f32.mrb[0].mxu0
        %v1234 = vadd.f32 %v1073, %v1233
        %1235 = vmatprep.mubr.f32.mxu0 %v470
        %1236 = vmatmul.mubr.f32.gmra.mrb[0].mxu0 %v469
        %v1237 = vpop.f32.mrb[0].mxu0
        %v1238 = vadd.f32 %v1077, %v1237
        %v1239 = vpop.f32.mrb[0].mxu0
        %v1240 = vadd.f32 %v1079, %v1239
        %1241 = vmatprep.mubr.f32.mxu0 %v476
        %1242 = vmatmul.mubr.f32.gmra.mrb[0].mxu0 %v475
        %v1243 = vpop.f32.mrb[0].mxu0
        %v1244 = vadd.f32 %v1083, %v1243
        %v1245 = vpop.f32.mrb[0].mxu0
        %v1246 = vadd.f32 %v1085, %v1245
        %1247 = vmatprep.mubr.f32.mxu0 %v482
        %1248 = vmatmul.mubr.f32.gmra.mrb[0].mxu0 %v481
        %v1249 = vpop.f32.mrb[0].mxu0
        %v1250 = vadd.f32 %v1089, %v1249
        %v1251 = vpop.f32.mrb[0].mxu0
        %v1252 = vadd.f32 %v1091, %v1251
        %1253 = vmatprep.mubr.f32.mxu0 %v488
        %1254 = vmatmul.mubr.f32.gmra.mrb[0].mxu0 %v487
        %v1255 = vpop.f32.mrb[0].mxu0
        %v1256 = vadd.f32 %v1095, %v1255
        %v1257 = vpop.f32.mrb[0].mxu0
        %v1258 = vadd.f32 %v1097, %v1257
        %1259 = vmatprep.mubr.f32.mxu0 %v494
        %1260 = vmatmul.mubr.f32.gmra.mrb[0].mxu0 %v493
        %v1261 = vpop.f32.mrb[0].mxu0
        %v1262 = vadd.f32 %v1101, %v1261
        %v1263 = vpop.f32.mrb[0].mxu0
        %v1264 = vadd.f32 %v1103, %v1263
        %1265 = vmatprep.mubr.f32.mxu0 %v500
        %1266 = vmatmul.mubr.f32.gmra.mrb[0].mxu0 %v499
        %v1267 = vpop.f32.mrb[0].mxu0
        %v1268 = vadd.f32 %v1107, %v1267
        %v1269 = vpop.f32.mrb[0].mxu0
        %v1270 = vadd.f32 %v1109, %v1269
        %1271 = vmatprep.mubr.f32.mxu0 %v506
        %1272 = vmatmul.mubr.f32.gmra.mrb[0].mxu0 %v505
        %v1273 = vpop.f32.mrb[0].mxu0
        %v1274 = vadd.f32 %v1113, %v1273
        %v1275 = vpop.f32.mrb[0].mxu0
        %v1276 = vadd.f32 %v1115, %v1275
        %1277 = vmatprep.mubr.f32.mxu0 %v512
        %1278 = vmatmul.mubr.f32.gmra.mrb[0].mxu0 %v511
        %v1279 = vpop.f32.mrb[0].mxu0
        %v1280 = vadd.f32 %v1119, %v1279
        %v1281 = vpop.f32.mrb[0].mxu0
        %v1282 = vadd.f32 %v1121, %v1281
        %1283 = vmatprep.mubr.f32.mxu0 %v518
        %1284 = vmatmul.mubr.f32.gmra.mrb[0].mxu0 %v517
        %v1285 = vpop.f32.mrb[0].mxu0
        %v1286 = vadd.f32 %v1125, %v1285
        %v1287 = vpop.f32.mrb[0].mxu0
        %v1288 = vadd.f32 %v1127, %v1287
        %1289 = vmatprep.mubr.f32.mxu0 %v524
        %1290 = vmatmul.mubr.f32.gmra.mrb[0].mxu0 %v523
        %v1291 = vpop.f32.mrb[0].mxu0
        %v1292 = vadd.f32 %v1131, %v1291
        %v1293 = vpop.f32.mrb[0].mxu0
        %v1294 = vadd.f32 %v1133, %v1293
        %1295 = vmatprep.mubr.f32.mxu0 %v530
        %1296 = vmatmul.mubr.f32.gmra.mrb[0].mxu0 %v529
        %v1297 = vpop.f32.mrb[0].mxu0
        %v1298 = vadd.f32 %v1137, %v1297
        %v1299 = vpop.f32.mrb[0].mxu0
        %v1300 = vadd.f32 %v1139, %v1299
        %1301 = vmatprep.mubr.f32.mxu0 %v536
        %1302 = vmatmul.mubr.f32.gmra.mrb[0].mxu0 %v535
        %v1303 = vpop.f32.mrb[0].mxu0
        %v1304 = vadd.f32 %v1143, %v1303
        %v1305 = vpop.f32.mrb[0].mxu0
        %v1306 = vadd.f32 %v1145, %v1305
        %1307 = vdwg.mxu0
        %v1308 = vxor.u32 %v1214, 2147483648
        %v1309 = vxor.u32 %v1216, 2147483648
        %v1310 = vxor.u32 %v1220, 2147483648
        %v1311 = vxor.u32 %v1222, 2147483648
        %v1312 = vxor.u32 %v1226, 2147483648
        %v1313 = vxor.u32 %v1228, 2147483648
        %v1314 = vxor.u32 %v1232, 2147483648
        %v1315 = vxor.u32 %v1234, 2147483648
        %v1316 = vxor.u32 %v1238, 2147483648
        %v1317 = vxor.u32 %v1240, 2147483648
        %v1318 = vxor.u32 %v1244, 2147483648
        %v1319 = vxor.u32 %v1246, 2147483648
        %v1320 = vxor.u32 %v1250, 2147483648
        %v1321 = vxor.u32 %v1252, 2147483648
        %v1322 = vxor.u32 %v1256, 2147483648
        %v1323 = vxor.u32 %v1258, 2147483648
        %v1324 = vxor.u32 %v1262, 2147483648
        %v1325 = vxor.u32 %v1264, 2147483648
        %v1326 = vxor.u32 %v1268, 2147483648
        %v1327 = vxor.u32 %v1270, 2147483648
        %v1328 = vxor.u32 %v1274, 2147483648
        %v1329 = vxor.u32 %v1276, 2147483648
        %v1330 = vxor.u32 %v1280, 2147483648
        %v1331 = vxor.u32 %v1282, 2147483648
        %v1332 = vxor.u32 %v1286, 2147483648
        %v1333 = vxor.u32 %v1288, 2147483648
        %v1334 = vxor.u32 %v1292, 2147483648
        %v1335 = vxor.u32 %v1294, 2147483648
        %v1336 = vxor.u32 %v1298, 2147483648
        %v1337 = vxor.u32 %v1300, 2147483648
        %v1338 = vxor.u32 %v1304, 2147483648
        %v1339 = vxor.u32 %v1306, 2147483648
        %v1340 = vmul.f32 %v1308, 1.442695
        %v1341 = vpow.pop %v1340
        %v1342 = vmul.f32 %v1309, 1.442695
        %v1343 = vpow.pop %v1342
        %v1344 = vmul.f32 %v1310, 1.442695
        %v1345 = vpow.pop %v1344
        %v1346 = vmul.f32 %v1311, 1.442695
        %v1347 = vpow.pop %v1346
        %v1348 = vmul.f32 %v1312, 1.442695
        %v1349 = vpow.pop %v1348
        %v1350 = vmul.f32 %v1313, 1.442695
        %v1351 = vpow.pop %v1350
        %v1352 = vmul.f32 %v1314, 1.442695
        %v1353 = vpow.pop %v1352
        %v1354 = vmul.f32 %v1315, 1.442695
        %v1355 = vpow.pop %v1354
        %v1356 = vmul.f32 %v1316, 1.442695
        %v1357 = vpow.pop %v1356
        %v1358 = vmul.f32 %v1317, 1.442695
        %v1359 = vpow.pop %v1358
        %v1360 = vmul.f32 %v1318, 1.442695
        %v1361 = vpow.pop %v1360
        %v1362 = vmul.f32 %v1319, 1.442695
        %v1363 = vpow.pop %v1362
        %v1364 = vmul.f32 %v1320, 1.442695
        %v1365 = vpow.pop %v1364
        %v1366 = vmul.f32 %v1321, 1.442695
        %v1367 = vpow.pop %v1366
        %v1368 = vmul.f32 %v1322, 1.442695
        %v1369 = vpow.pop %v1368
        %v1370 = vmul.f32 %v1323, 1.442695
        %v1371 = vpow.pop %v1370
        %v1372 = vmul.f32 %v1324, 1.442695
        %v1373 = vpow.pop %v1372
        %v1374 = vmul.f32 %v1325, 1.442695
        %v1375 = vpow.pop %v1374
        %v1376 = vmul.f32 %v1326, 1.442695
        %v1377 = vpow.pop %v1376
        %v1378 = vmul.f32 %v1327, 1.442695
        %v1379 = vpow.pop %v1378
        %v1380 = vmul.f32 %v1328, 1.442695
        %v1381 = vpow.pop %v1380
        %v1382 = vmul.f32 %v1329, 1.442695
        %v1383 = vpow.pop %v1382
        %v1384 = vmul.f32 %v1330, 1.442695
        %v1385 = vpow.pop %v1384
        %v1386 = vmul.f32 %v1331, 1.442695
        %v1387 = vpow.pop %v1386
        %v1388 = vmul.f32 %v1332, 1.442695
        %v1389 = vpow.pop %v1388
        %v1390 = vmul.f32 %v1333, 1.442695
        %v1391 = vpow.pop %v1390
        %v1392 = vmul.f32 %v1334, 1.442695
        %v1393 = vpow.pop %v1392
        %v1394 = vmul.f32 %v1335, 1.442695
        %v1395 = vpow.pop %v1394
        %v1396 = vmul.f32 %v1336, 1.442695
        %v1397 = vpow.pop %v1396
        %v1398 = vmul.f32 %v1337, 1.442695
        %v1399 = vpow.pop %v1398
        %v1400 = vmul.f32 %v1338, 1.442695
        %v1401 = vpow.pop %v1400
        %v1402 = vmul.f32 %v1339, 1.442695
        %v1403 = vpow.pop %v1402
        %v1404 = vadd.f32 %v1341, 1.0
        %v1405 = vadd.f32 %v1343, 1.0
        %v1406 = vadd.f32 %v1345, 1.0
        %v1407 = vadd.f32 %v1347, 1.0
        %v1408 = vadd.f32 %v1349, 1.0
        %v1409 = vadd.f32 %v1351, 1.0
        %v1410 = vadd.f32 %v1353, 1.0
        %v1411 = vadd.f32 %v1355, 1.0
        %v1412 = vadd.f32 %v1357, 1.0
        %v1413 = vadd.f32 %v1359, 1.0
        %v1414 = vadd.f32 %v1361, 1.0
        %v1415 = vadd.f32 %v1363, 1.0
        %v1416 = vadd.f32 %v1365, 1.0
        %v1417 = vadd.f32 %v1367, 1.0
        %v1418 = vadd.f32 %v1369, 1.0
        %v1419 = vadd.f32 %v1371, 1.0
        %v1420 = vadd.f32 %v1373, 1.0
        %v1421 = vadd.f32 %v1375, 1.0
        %v1422 = vadd.f32 %v1377, 1.0
        %v1423 = vadd.f32 %v1379, 1.0
        %v1424 = vadd.f32 %v1381, 1.0
        %v1425 = vadd.f32 %v1383, 1.0
        %v1426 = vadd.f32 %v1385, 1.0
        %v1427 = vadd.f32 %v1387, 1.0
        %v1428 = vadd.f32 %v1389, 1.0
        %v1429 = vadd.f32 %v1391, 1.0
        %v1430 = vadd.f32 %v1393, 1.0
        %v1431 = vadd.f32 %v1395, 1.0
        %v1432 = vadd.f32 %v1397, 1.0
        %v1433 = vadd.f32 %v1399, 1.0
        %v1434 = vadd.f32 %v1401, 1.0
        %v1435 = vadd.f32 %v1403, 1.0
        %v1436 = vrcp.pop %v1404
        %v1437 = vmul.f32 1.0, %v1436
        %v1438 = vrcp.pop %v1405
        %v1439 = vmul.f32 1.0, %v1438
        %v1440 = vrcp.pop %v1406
        %v1441 = vmul.f32 1.0, %v1440
        %v1442 = vrcp.pop %v1407
        %v1443 = vmul.f32 1.0, %v1442
        %v1444 = vrcp.pop %v1408
        %v1445 = vmul.f32 1.0, %v1444
        %v1446 = vrcp.pop %v1409
        %v1447 = vmul.f32 1.0, %v1446
        %v1448 = vrcp.pop %v1410
        %v1449 = vmul.f32 1.0, %v1448
        %v1450 = vrcp.pop %v1411
        %v1451 = vmul.f32 1.0, %v1450
        %v1452 = vrcp.pop %v1412
        %v1453 = vmul.f32 1.0, %v1452
        %v1454 = vrcp.pop %v1413
        %v1455 = vmul.f32 1.0, %v1454
        %v1456 = vrcp.pop %v1414
        %v1457 = vmul.f32 1.0, %v1456
        %v1458 = vrcp.pop %v1415
        %v1459 = vmul.f32 1.0, %v1458
        %v1460 = vrcp.pop %v1416
        %v1461 = vmul.f32 1.0, %v1460
        %v1462 = vrcp.pop %v1417
        %v1463 = vmul.f32 1.0, %v1462
        %v1464 = vrcp.pop %v1418
        %v1465 = vmul.f32 1.0, %v1464
        %v1466 = vrcp.pop %v1419
        %v1467 = vmul.f32 1.0, %v1466
        %v1468 = vrcp.pop %v1420
        %v1469 = vmul.f32 1.0, %v1468
        %v1470 = vrcp.pop %v1421
        %v1471 = vmul.f32 1.0, %v1470
        %v1472 = vrcp.pop %v1422
        %v1473 = vmul.f32 1.0, %v1472
        %v1474 = vrcp.pop %v1423
        %v1475 = vmul.f32 1.0, %v1474
        %v1476 = vrcp.pop %v1424
        %v1477 = vmul.f32 1.0, %v1476
        %v1478 = vrcp.pop %v1425
        %v1479 = vmul.f32 1.0, %v1478
        %v1480 = vrcp.pop %v1426
        %v1481 = vmul.f32 1.0, %v1480
        %v1482 = vrcp.pop %v1427
        %v1483 = vmul.f32 1.0, %v1482
        %v1484 = vrcp.pop %v1428
        %v1485 = vmul.f32 1.0, %v1484
        %v1486 = vrcp.pop %v1429
        %v1487 = vmul.f32 1.0, %v1486
        %v1488 = vrcp.pop %v1430
        %v1489 = vmul.f32 1.0, %v1488
        %v1490 = vrcp.pop %v1431
        %v1491 = vmul.f32 1.0, %v1490
        %v1492 = vrcp.pop %v1432
        %v1493 = vmul.f32 1.0, %v1492
        %v1494 = vrcp.pop %v1433
        %v1495 = vmul.f32 1.0, %v1494
        %v1496 = vrcp.pop %v1434
        %v1497 = vmul.f32 1.0, %v1496
        %v1498 = vrcp.pop %v1435
        %v1499 = vmul.f32 1.0, %v1498
        %v1500 = vld [vmem:[#allocation8] sm:$0xff]
        %v1501 = vld [vmem:[#allocation8 + $0x8] sm:$0xff]
        %v1502 = vld [vmem:[#allocation8 + $0x10] sm:$0xff]
        %v1503 = vld [vmem:[#allocation8 + $0x18] sm:$0xff]
        %v1504 = vld [vmem:[#allocation8 + $0x20] sm:$0xff]
        %v1505 = vld [vmem:[#allocation8 + $0x28] sm:$0xff]
        %v1506 = vld [vmem:[#allocation8 + $0x30] sm:$0xff]
        %v1507 = vld [vmem:[#allocation8 + $0x38] sm:$0xff]
        %v1508 = vld [vmem:[#allocation8 + $0x40] sm:$0xff]
        %v1509 = vld [vmem:[#allocation8 + $0x48] sm:$0xff]
        %v1510 = vld [vmem:[#allocation8 + $0x50] sm:$0xff]
        %v1511 = vld [vmem:[#allocation8 + $0x58] sm:$0xff]
        %v1512 = vld [vmem:[#allocation8 + $0x60] sm:$0xff]
        %v1513 = vld [vmem:[#allocation8 + $0x68] sm:$0xff]
        %v1514 = vld [vmem:[#allocation8 + $0x70] sm:$0xff]
        %v1515 = vld [vmem:[#allocation8 + $0x78] sm:$0xff]
        %v1516 = vld [vmem:[#allocation8 + $0x80] sm:$0xff]
        %v1517 = vld [vmem:[#allocation8 + $0x88] sm:$0xff]
        %v1518 = vld [vmem:[#allocation8 + $0x90] sm:$0xff]
        %v1519 = vld [vmem:[#allocation8 + $0x98] sm:$0xff]
        %v1520 = vld [vmem:[#allocation8 + $0xa0] sm:$0xff]
        %v1521 = vld [vmem:[#allocation8 + $0xa8] sm:$0xff]
        %v1522 = vld [vmem:[#allocation8 + $0xb0] sm:$0xff]
        %v1523 = vld [vmem:[#allocation8 + $0xb8] sm:$0xff]
        %v1524 = vld [vmem:[#allocation8 + $0xc0] sm:$0xff]
        %v1525 = vld [vmem:[#allocation8 + $0xc8] sm:$0xff]
        %v1526 = vld [vmem:[#allocation8 + $0xd0] sm:$0xff]
        %v1527 = vld [vmem:[#allocation8 + $0xd8] sm:$0xff]
        %v1528 = vld [vmem:[#allocation8 + $0xe0] sm:$0xff]
        %v1529 = vld [vmem:[#allocation8 + $0xe8] sm:$0xff]
        %v1530 = vld [vmem:[#allocation8 + $0xf0] sm:$0xff]
        %v1531 = vld [vmem:[#allocation8 + $0xf8] sm:$0xff]
        %v1532 = vld [vmem:[#allocation8 + $0x100] sm:$0xff]
        %v1533 = vld [vmem:[#allocation8 + $0x108] sm:$0xff]
        %v1534 = vld [vmem:[#allocation8 + $0x110] sm:$0xff]
        %v1535 = vld [vmem:[#allocation8 + $0x118] sm:$0xff]
        %v1536 = vld [vmem:[#allocation8 + $0x120] sm:$0xff]
        %v1537 = vld [vmem:[#allocation8 + $0x128] sm:$0xff]
        %v1538 = vld [vmem:[#allocation8 + $0x130] sm:$0xff]
        %v1539 = vld [vmem:[#allocation8 + $0x138] sm:$0xff]
        %v1540 = vld [vmem:[#allocation8 + $0x140] sm:$0xff]
        %v1541 = vld [vmem:[#allocation8 + $0x148] sm:$0xff]
        %v1542 = vld [vmem:[#allocation8 + $0x150] sm:$0xff]
        %v1543 = vld [vmem:[#allocation8 + $0x158] sm:$0xff]
        %v1544 = vld [vmem:[#allocation8 + $0x160] sm:$0xff]
        %v1545 = vld [vmem:[#allocation8 + $0x168] sm:$0xff]
        %v1546 = vld [vmem:[#allocation8 + $0x170] sm:$0xff]
        %v1547 = vld [vmem:[#allocation8 + $0x178] sm:$0xff]
        %v1548 = vld [vmem:[#allocation8 + $0x180] sm:$0xff]
        %v1549 = vld [vmem:[#allocation8 + $0x188] sm:$0xff]
        %v1550 = vld [vmem:[#allocation8 + $0x190] sm:$0xff]
        %v1551 = vld [vmem:[#allocation8 + $0x198] sm:$0xff]
        %v1552 = vld [vmem:[#allocation8 + $0x1a0] sm:$0xff]
        %v1553 = vld [vmem:[#allocation8 + $0x1a8] sm:$0xff]
        %v1554 = vld [vmem:[#allocation8 + $0x1b0] sm:$0xff]
        %v1555 = vld [vmem:[#allocation8 + $0x1b8] sm:$0xff]
        %v1556 = vld [vmem:[#allocation8 + $0x1c0] sm:$0xff]
        %v1557 = vld [vmem:[#allocation8 + $0x1c8] sm:$0xff]
        %v1558 = vld [vmem:[#allocation8 + $0x1d0] sm:$0xff]
        %v1559 = vld [vmem:[#allocation8 + $0x1d8] sm:$0xff]
        %v1560 = vld [vmem:[#allocation8 + $0x1e0] sm:$0xff]
        %v1561 = vld [vmem:[#allocation8 + $0x1e8] sm:$0xff]
        %v1562 = vld [vmem:[#allocation8 + $0x1f0] sm:$0xff]
        %v1563 = vld [vmem:[#allocation8 + $0x1f8] sm:$0xff]
        %v1564 = vld [vmem:[#allocation8 + $0x200] sm:$0xff]
        %v1565 = vld [vmem:[#allocation8 + $0x208] sm:$0xff]
        %v1566 = vld [vmem:[#allocation8 + $0x210] sm:$0xff]
        %v1567 = vld [vmem:[#allocation8 + $0x218] sm:$0xff]
        %v1568 = vld [vmem:[#allocation8 + $0x220] sm:$0xff]
        %v1569 = vld [vmem:[#allocation8 + $0x228] sm:$0xff]
        %v1570 = vld [vmem:[#allocation8 + $0x230] sm:$0xff]
        %v1571 = vld [vmem:[#allocation8 + $0x238] sm:$0xff]
        %v1572 = vld [vmem:[#allocation8 + $0x240] sm:$0xff]
        %v1573 = vld [vmem:[#allocation8 + $0x248] sm:$0xff]
        %v1574 = vld [vmem:[#allocation8 + $0x250] sm:$0xff]
        %v1575 = vld [vmem:[#allocation8 + $0x258] sm:$0xff]
        %v1576 = vld [vmem:[#allocation8 + $0x260] sm:$0xff]
        %v1577 = vld [vmem:[#allocation8 + $0x268] sm:$0xff]
        %v1578 = vld [vmem:[#allocation8 + $0x270] sm:$0xff]
        %v1579 = vld [vmem:[#allocation8 + $0x278] sm:$0xff]
        %v1580 = vld [vmem:[#allocation8 + $0x280] sm:$0xff]
        %v1581 = vld [vmem:[#allocation8 + $0x288] sm:$0xff]
        %v1582 = vld [vmem:[#allocation8 + $0x290] sm:$0xff]
        %v1583 = vld [vmem:[#allocation8 + $0x298] sm:$0xff]
        %v1584 = vld [vmem:[#allocation8 + $0x2a0] sm:$0xff]
        %v1585 = vld [vmem:[#allocation8 + $0x2a8] sm:$0xff]
        %v1586 = vld [vmem:[#allocation8 + $0x2b0] sm:$0xff]
        %v1587 = vld [vmem:[#allocation8 + $0x2b8] sm:$0xff]
        %v1588 = vld [vmem:[#allocation8 + $0x2c0] sm:$0xff]
        %v1589 = vld [vmem:[#allocation8 + $0x2c8] sm:$0xff]
        %v1590 = vld [vmem:[#allocation8 + $0x2d0] sm:$0xff]
        %v1591 = vld [vmem:[#allocation8 + $0x2d8] sm:$0xff]
        %v1592 = vld [vmem:[#allocation8 + $0x2e0] sm:$0xff]
        %v1593 = vld [vmem:[#allocation8 + $0x2e8] sm:$0xff]
        %v1594 = vld [vmem:[#allocation8 + $0x2f0] sm:$0xff]
        %v1595 = vld [vmem:[#allocation8 + $0x2f8] sm:$0xff]
        %v1596 = vld [vmem:[#allocation8 + $0x300] sm:$0xff]
        %v1597 = vld [vmem:[#allocation8 + $0x308] sm:$0xff]
        %v1598 = vld [vmem:[#allocation8 + $0x310] sm:$0xff]
        %v1599 = vld [vmem:[#allocation8 + $0x318] sm:$0xff]
        %v1600 = vld [vmem:[#allocation8 + $0x320] sm:$0xff]
        %v1601 = vld [vmem:[#allocation8 + $0x328] sm:$0xff]
        %v1602 = vld [vmem:[#allocation8 + $0x330] sm:$0xff]
        %v1603 = vld [vmem:[#allocation8 + $0x338] sm:$0xff]
        %v1604 = vld [vmem:[#allocation8 + $0x340] sm:$0xff]
        %v1605 = vld [vmem:[#allocation8 + $0x348] sm:$0xff]
        %v1606 = vld [vmem:[#allocation8 + $0x350] sm:$0xff]
        %v1607 = vld [vmem:[#allocation8 + $0x358] sm:$0xff]
        %v1608 = vld [vmem:[#allocation8 + $0x360] sm:$0xff]
        %v1609 = vld [vmem:[#allocation8 + $0x368] sm:$0xff]
        %v1610 = vld [vmem:[#allocation8 + $0x370] sm:$0xff]
        %v1611 = vld [vmem:[#allocation8 + $0x378] sm:$0xff]
        %v1612 = vld [vmem:[#allocation8 + $0x380] sm:$0xff]
        %v1613 = vld [vmem:[#allocation8 + $0x388] sm:$0xff]
        %v1614 = vld [vmem:[#allocation8 + $0x390] sm:$0xff]
        %v1615 = vld [vmem:[#allocation8 + $0x398] sm:$0xff]
        %v1616 = vld [vmem:[#allocation8 + $0x3a0] sm:$0xff]
        %v1617 = vld [vmem:[#allocation8 + $0x3a8] sm:$0xff]
        %v1618 = vld [vmem:[#allocation8 + $0x3b0] sm:$0xff]
        %v1619 = vld [vmem:[#allocation8 + $0x3b8] sm:$0xff]
        %v1620 = vld [vmem:[#allocation8 + $0x3c0] sm:$0xff]
        %v1621 = vld [vmem:[#allocation8 + $0x3c8] sm:$0xff]
        %v1622 = vld [vmem:[#allocation8 + $0x3d0] sm:$0xff]
        %v1623 = vld [vmem:[#allocation8 + $0x3d8] sm:$0xff]
        %v1624 = vld [vmem:[#allocation8 + $0x3e0] sm:$0xff]
        %v1625 = vld [vmem:[#allocation8 + $0x3e8] sm:$0xff]
        %v1626 = vld [vmem:[#allocation8 + $0x3f0] sm:$0xff]
        %v1627 = vld [vmem:[#allocation8 + $0x3f8] sm:$0xff]
        %v1628 = vld [vmem:[#allocation8 + $0x400] sm:$0xff]
        %v1629 = vld [vmem:[#allocation8 + $0x408] sm:$0xff]
        %v1630 = vld [vmem:[#allocation8 + $0x410] sm:$0xff]
        %v1631 = vld [vmem:[#allocation8 + $0x418] sm:$0xff]
        %v1632 = vld [vmem:[#allocation8 + $0x420] sm:$0xff]
        %v1633 = vld [vmem:[#allocation8 + $0x428] sm:$0xff]
        %v1634 = vld [vmem:[#allocation8 + $0x430] sm:$0xff]
        %v1635 = vld [vmem:[#allocation8 + $0x438] sm:$0xff]
        %v1636 = vld [vmem:[#allocation8 + $0x440] sm:$0xff]
        %v1637 = vld [vmem:[#allocation8 + $0x448] sm:$0xff]
        %v1638 = vld [vmem:[#allocation8 + $0x450] sm:$0xff]
        %v1639 = vld [vmem:[#allocation8 + $0x458] sm:$0xff]
        %v1640 = vld [vmem:[#allocation8 + $0x460] sm:$0xff]
        %v1641 = vld [vmem:[#allocation8 + $0x468] sm:$0xff]
        %v1642 = vld [vmem:[#allocation8 + $0x470] sm:$0xff]
        %v1643 = vld [vmem:[#allocation8 + $0x478] sm:$0xff]
        %v1644 = vld [vmem:[#allocation8 + $0x480] sm:$0xff]
        %v1645 = vld [vmem:[#allocation8 + $0x488] sm:$0xff]
        %v1646 = vld [vmem:[#allocation8 + $0x490] sm:$0xff]
        %v1647 = vld [vmem:[#allocation8 + $0x498] sm:$0xff]
        %v1648 = vld [vmem:[#allocation8 + $0x4a0] sm:$0xff]
        %v1649 = vld [vmem:[#allocation8 + $0x4a8] sm:$0xff]
        %v1650 = vld [vmem:[#allocation8 + $0x4b0] sm:$0xff]
        %v1651 = vld [vmem:[#allocation8 + $0x4b8] sm:$0xff]
        %v1652 = vld [vmem:[#allocation8 + $0x4c0] sm:$0xff]
        %v1653 = vld [vmem:[#allocation8 + $0x4c8] sm:$0xff]
        %v1654 = vld [vmem:[#allocation8 + $0x4d0] sm:$0xff]
        %v1655 = vld [vmem:[#allocation8 + $0x4d8] sm:$0xff]
        %v1656 = vld [vmem:[#allocation8 + $0x4e0] sm:$0xff]
        %v1657 = vld [vmem:[#allocation8 + $0x4e8] sm:$0xff]
        %v1658 = vld [vmem:[#allocation8 + $0x4f0] sm:$0xff]
        %v1659 = vld [vmem:[#allocation8 + $0x4f8] sm:$0xff]
        %v1660 = vld [vmem:[#allocation8 + $0x500] sm:$0xff]
        %v1661 = vld [vmem:[#allocation8 + $0x508] sm:$0xff]
        %v1662 = vld [vmem:[#allocation8 + $0x510] sm:$0xff]
        %v1663 = vld [vmem:[#allocation8 + $0x518] sm:$0xff]
        %v1664 = vld [vmem:[#allocation8 + $0x520] sm:$0xff]
        %v1665 = vld [vmem:[#allocation8 + $0x528] sm:$0xff]
        %v1666 = vld [vmem:[#allocation8 + $0x530] sm:$0xff]
        %v1667 = vld [vmem:[#allocation8 + $0x538] sm:$0xff]
        %v1668 = vld [vmem:[#allocation8 + $0x540] sm:$0xff]
        %v1669 = vld [vmem:[#allocation8 + $0x548] sm:$0xff]
        %v1670 = vld [vmem:[#allocation8 + $0x550] sm:$0xff]
        %v1671 = vld [vmem:[#allocation8 + $0x558] sm:$0xff]
        %v1672 = vld [vmem:[#allocation8 + $0x560] sm:$0xff]
        %v1673 = vld [vmem:[#allocation8 + $0x568] sm:$0xff]
        %v1674 = vld [vmem:[#allocation8 + $0x570] sm:$0xff]
        %v1675 = vld [vmem:[#allocation8 + $0x578] sm:$0xff]
        %v1676 = vld [vmem:[#allocation8 + $0x580] sm:$0xff]
        %v1677 = vld [vmem:[#allocation8 + $0x588] sm:$0xff]
        %v1678 = vld [vmem:[#allocation8 + $0x590] sm:$0xff]
        %v1679 = vld [vmem:[#allocation8 + $0x598] sm:$0xff]
        %v1680 = vld [vmem:[#allocation8 + $0x5a0] sm:$0xff]
        %v1681 = vld [vmem:[#allocation8 + $0x5a8] sm:$0xff]
        %v1682 = vld [vmem:[#allocation8 + $0x5b0] sm:$0xff]
        %v1683 = vld [vmem:[#allocation8 + $0x5b8] sm:$0xff]
        %v1684 = vld [vmem:[#allocation8 + $0x5c0] sm:$0xff]
        %v1685 = vld [vmem:[#allocation8 + $0x5c8] sm:$0xff]
        %v1686 = vld [vmem:[#allocation8 + $0x5d0] sm:$0xff]
        %v1687 = vld [vmem:[#allocation8 + $0x5d8] sm:$0xff]
        %v1688 = vld [vmem:[#allocation8 + $0x5e0] sm:$0xff]
        %v1689 = vld [vmem:[#allocation8 + $0x5e8] sm:$0xff]
        %v1690 = vld [vmem:[#allocation8 + $0x5f0] sm:$0xff]
        %v1691 = vld [vmem:[#allocation8 + $0x5f8] sm:$0xff]
        %1692 = vmatprep.subr.mxu0 %v1501
        %1693 = vmatpush1.msra.mxu0 %v1500
        %1694 = vmatprep.subr.mxu0 %v1503
        %1695 = vmatpush1.msra.mxu0 %v1502
        %1696 = vmatprep.subr.mxu0 %v1505
        %1697 = vmatpush1.msra.mxu0 %v1504
        %1698 = vmatprep.subr.mxu0 %v1507
        %1699 = vmatpush1.msra.mxu0 %v1506
        %1700 = vmatprep.subr.mxu0 %v1509
        %1701 = vmatpush1.msra.mxu0 %v1508
        %1702 = vmatprep.subr.mxu0 %v1511
        %1703 = vmatpush1.msra.mxu0 %v1510
        %1704 = vmatprep.subr.mxu0 %v1513
        %1705 = vmatpush1.msra.mxu0 %v1512
        %1706 = vmatprep.subr.mxu0 %v1515
        %1707 = vmatpush1.msra.mxu0 %v1514
        %1708 = vmatprep.subr.mxu0 %v1517
        %1709 = vmatpush1.msra.mxu0 %v1516
        %1710 = vmatprep.subr.mxu0 %v1519
        %1711 = vmatpush1.msra.mxu0 %v1518
        %1712 = vmatprep.subr.mxu0 %v1521
        %1713 = vmatpush1.msra.mxu0 %v1520
        %1714 = vmatprep.subr.mxu0 %v1523
        %1715 = vmatpush1.msra.mxu0 %v1522
        %1716 = vmatprep.subr.mxu0 %v1525
        %1717 = vmatpush1.msra.mxu0 %v1524
        %1718 = vmatprep.subr.mxu0 %v1527
        %1719 = vmatpush1.msra.mxu0 %v1526
        %1720 = vmatprep.subr.mxu0 %v1529
        %1721 = vmatpush1.msra.mxu0 %v1528
        %1722 = vmatprep.subr.mxu0 %v1531
        %1723 = vmatpush1.msra.mxu0 %v1530
        %1724 = vmatprep.subr.mxu0 %v1533
        %1725 = vmatpush1.msra.mxu0 %v1532
        %1726 = vmatprep.subr.mxu0 %v1535
        %1727 = vmatpush1.msra.mxu0 %v1534
        %1728 = vmatprep.subr.mxu0 %v1537
        %1729 = vmatpush1.msra.mxu0 %v1536
        %1730 = vmatprep.subr.mxu0 %v1539
        %1731 = vmatpush1.msra.mxu0 %v1538
        %1732 = vmatprep.subr.mxu0 %v1541
        %1733 = vmatpush1.msra.mxu0 %v1540
        %1734 = vmatprep.subr.mxu0 %v1543
        %1735 = vmatpush1.msra.mxu0 %v1542
        %1736 = vmatprep.subr.mxu0 %v1545
        %1737 = vmatpush1.msra.mxu0 %v1544
        %1738 = vmatprep.subr.mxu0 %v1547
        %1739 = vmatpush1.msra.mxu0 %v1546
        %1740 = vmatprep.subr.mxu0 %v1549
        %1741 = vmatpush1.msra.mxu0 %v1548
        %1742 = vmatprep.subr.mxu0 %v1551
        %1743 = vmatpush1.msra.mxu0 %v1550
        %1744 = vmatprep.subr.mxu0 %v1553
        %1745 = vmatpush1.msra.mxu0 %v1552
        %1746 = vmatprep.subr.mxu0 %v1555
        %1747 = vmatpush1.msra.mxu0 %v1554
        %1748 = vmatprep.subr.mxu0 %v1557
        %1749 = vmatpush1.msra.mxu0 %v1556
        %1750 = vmatprep.subr.mxu0 %v1559
        %1751 = vmatpush1.msra.mxu0 %v1558
        %1752 = vmatprep.subr.mxu0 %v1561
        %1753 = vmatpush1.msra.mxu0 %v1560
        %1754 = vmatprep.subr.mxu0 %v1563
        %1755 = vmatpush1.msra.mxu0 %v1562
        %1756 = vmatprep.mubr.f32.mxu0 %v538
        %1757 = vmatmul.mubr.f32.gmra.mrb[0].mxu0 %v537
        %v1758 = vpop.f32.mrb[0].mxu0
        %v1759 = vadd.f32 0.0, %v1758
        %v1760 = vpop.f32.mrb[0].mxu0
        %v1761 = vadd.f32 0.0, %v1760
        %1762 = vmatprep.mubr.f32.mxu0 %v544
        %1763 = vmatmul.mubr.f32.gmra.mrb[0].mxu0 %v543
        %v1764 = vpop.f32.mrb[0].mxu0
        %v1765 = vadd.f32 0.0, %v1764
        %v1766 = vpop.f32.mrb[0].mxu0
        %v1767 = vadd.f32 0.0, %v1766
        %1768 = vmatprep.mubr.f32.mxu0 %v550
        %1769 = vmatmul.mubr.f32.gmra.mrb[0].mxu0 %v549
        %v1770 = vpop.f32.mrb[0].mxu0
        %v1771 = vadd.f32 0.0, %v1770
        %v1772 = vpop.f32.mrb[0].mxu0
        %v1773 = vadd.f32 0.0, %v1772
        %1774 = vmatprep.mubr.f32.mxu0 %v556
        %1775 = vmatmul.mubr.f32.gmra.mrb[0].mxu0 %v555
        %v1776 = vpop.f32.mrb[0].mxu0
        %v1777 = vadd.f32 0.0, %v1776
        %v1778 = vpop.f32.mrb[0].mxu0
        %v1779 = vadd.f32 0.0, %v1778
        %1780 = vmatprep.mubr.f32.mxu0 %v562
        %1781 = vmatmul.mubr.f32.gmra.mrb[0].mxu0 %v561
        %v1782 = vpop.f32.mrb[0].mxu0
        %v1783 = vadd.f32 0.0, %v1782
        %v1784 = vpop.f32.mrb[0].mxu0
        %v1785 = vadd.f32 0.0, %v1784
        %1786 = vmatprep.mubr.f32.mxu0 %v568
        %1787 = vmatmul.mubr.f32.gmra.mrb[0].mxu0 %v567
        %v1788 = vpop.f32.mrb[0].mxu0
        %v1789 = vadd.f32 0.0, %v1788
        %v1790 = vpop.f32.mrb[0].mxu0
        %v1791 = vadd.f32 0.0, %v1790
        %1792 = vmatprep.mubr.f32.mxu0 %v574
        %1793 = vmatmul.mubr.f32.gmra.mrb[0].mxu0 %v573
        %v1794 = vpop.f32.mrb[0].mxu0
        %v1795 = vadd.f32 0.0, %v1794
        %v1796 = vpop.f32.mrb[0].mxu0
        %v1797 = vadd.f32 0.0, %v1796
        %1798 = vmatprep.mubr.f32.mxu0 %v580
        %1799 = vmatmul.mubr.f32.gmra.mrb[0].mxu0 %v579
        %v1800 = vpop.f32.mrb[0].mxu0
        %v1801 = vadd.f32 0.0, %v1800
        %v1802 = vpop.f32.mrb[0].mxu0
        %v1803 = vadd.f32 0.0, %v1802
        %1804 = vmatprep.mubr.f32.mxu0 %v586
        %1805 = vmatmul.mubr.f32.gmra.mrb[0].mxu0 %v585
        %v1806 = vpop.f32.mrb[0].mxu0
        %v1807 = vadd.f32 0.0, %v1806
        %v1808 = vpop.f32.mrb[0].mxu0
        %v1809 = vadd.f32 0.0, %v1808
        %1810 = vmatprep.mubr.f32.mxu0 %v592
        %1811 = vmatmul.mubr.f32.gmra.mrb[0].mxu0 %v591
        %v1812 = vpop.f32.mrb[0].mxu0
        %v1813 = vadd.f32 0.0, %v1812
        %v1814 = vpop.f32.mrb[0].mxu0
        %v1815 = vadd.f32 0.0, %v1814
        %1816 = vmatprep.mubr.f32.mxu0 %v598
        %1817 = vmatmul.mubr.f32.gmra.mrb[0].mxu0 %v597
        %v1818 = vpop.f32.mrb[0].mxu0
        %v1819 = vadd.f32 0.0, %v1818
        %v1820 = vpop.f32.mrb[0].mxu0
        %v1821 = vadd.f32 0.0, %v1820
        %1822 = vmatprep.mubr.f32.mxu0 %v604
        %1823 = vmatmul.mubr.f32.gmra.mrb[0].mxu0 %v603
        %v1824 = vpop.f32.mrb[0].mxu0
        %v1825 = vadd.f32 0.0, %v1824
        %v1826 = vpop.f32.mrb[0].mxu0
        %v1827 = vadd.f32 0.0, %v1826
        %1828 = vmatprep.mubr.f32.mxu0 %v610
        %1829 = vmatmul.mubr.f32.gmra.mrb[0].mxu0 %v609
        %v1830 = vpop.f32.mrb[0].mxu0
        %v1831 = vadd.f32 0.0, %v1830
        %v1832 = vpop.f32.mrb[0].mxu0
        %v1833 = vadd.f32 0.0, %v1832
        %1834 = vmatprep.mubr.f32.mxu0 %v616
        %1835 = vmatmul.mubr.f32.gmra.mrb[0].mxu0 %v615
        %v1836 = vpop.f32.mrb[0].mxu0
        %v1837 = vadd.f32 0.0, %v1836
        %v1838 = vpop.f32.mrb[0].mxu0
        %v1839 = vadd.f32 0.0, %v1838
        %1840 = vmatprep.mubr.f32.mxu0 %v622
        %1841 = vmatmul.mubr.f32.gmra.mrb[0].mxu0 %v621
        %v1842 = vpop.f32.mrb[0].mxu0
        %v1843 = vadd.f32 0.0, %v1842
        %v1844 = vpop.f32.mrb[0].mxu0
        %v1845 = vadd.f32 0.0, %v1844
        %1846 = vmatprep.mubr.f32.mxu0 %v628
        %1847 = vmatmul.mubr.f32.gmra.mrb[0].mxu0 %v627
        %v1848 = vpop.f32.mrb[0].mxu0
        %v1849 = vadd.f32 0.0, %v1848
        %v1850 = vpop.f32.mrb[0].mxu0
        %v1851 = vadd.f32 0.0, %v1850
        %1852 = vdwg.mxu0
        %1853 = vmatprep.subr.mxu0 %v1565
        %1854 = vmatpush1.msra.mxu0 %v1564
        %1855 = vmatprep.subr.mxu0 %v1567
        %1856 = vmatpush1.msra.mxu0 %v1566
        %1857 = vmatprep.subr.mxu0 %v1569
        %1858 = vmatpush1.msra.mxu0 %v1568
        %1859 = vmatprep.subr.mxu0 %v1571
        %1860 = vmatpush1.msra.mxu0 %v1570
        %1861 = vmatprep.subr.mxu0 %v1573
        %1862 = vmatpush1.msra.mxu0 %v1572
        %1863 = vmatprep.subr.mxu0 %v1575
        %1864 = vmatpush1.msra.mxu0 %v1574
        %1865 = vmatprep.subr.mxu0 %v1577
        %1866 = vmatpush1.msra.mxu0 %v1576
        %1867 = vmatprep.subr.mxu0 %v1579
        %1868 = vmatpush1.msra.mxu0 %v1578
        %1869 = vmatprep.subr.mxu0 %v1581
        %1870 = vmatpush1.msra.mxu0 %v1580
        %1871 = vmatprep.subr.mxu0 %v1583
        %1872 = vmatpush1.msra.mxu0 %v1582
        %1873 = vmatprep.subr.mxu0 %v1585
        %1874 = vmatpush1.msra.mxu0 %v1584
        %1875 = vmatprep.subr.mxu0 %v1587
        %1876 = vmatpush1.msra.mxu0 %v1586
        %1877 = vmatprep.subr.mxu0 %v1589
        %1878 = vmatpush1.msra.mxu0 %v1588
        %1879 = vmatprep.subr.mxu0 %v1591
        %1880 = vmatpush1.msra.mxu0 %v1590
        %1881 = vmatprep.subr.mxu0 %v1593
        %1882 = vmatpush1.msra.mxu0 %v1592
        %1883 = vmatprep.subr.mxu0 %v1595
        %1884 = vmatpush1.msra.mxu0 %v1594
        %1885 = vmatprep.subr.mxu0 %v1597
        %1886 = vmatpush1.msra.mxu0 %v1596
        %1887 = vmatprep.subr.mxu0 %v1599
        %1888 = vmatpush1.msra.mxu0 %v1598
        %1889 = vmatprep.subr.mxu0 %v1601
        %1890 = vmatpush1.msra.mxu0 %v1600
        %1891 = vmatprep.subr.mxu0 %v1603
        %1892 = vmatpush1.msra.mxu0 %v1602
        %1893 = vmatprep.subr.mxu0 %v1605
        %1894 = vmatpush1.msra.mxu0 %v1604
        %1895 = vmatprep.subr.mxu0 %v1607
        %1896 = vmatpush1.msra.mxu0 %v1606
        %1897 = vmatprep.subr.mxu0 %v1609
        %1898 = vmatpush1.msra.mxu0 %v1608
        %1899 = vmatprep.subr.mxu0 %v1611
        %1900 = vmatpush1.msra.mxu0 %v1610
        %1901 = vmatprep.subr.mxu0 %v1613
        %1902 = vmatpush1.msra.mxu0 %v1612
        %1903 = vmatprep.subr.mxu0 %v1615
        %1904 = vmatpush1.msra.mxu0 %v1614
        %1905 = vmatprep.subr.mxu0 %v1617
        %1906 = vmatpush1.msra.mxu0 %v1616
        %1907 = vmatprep.subr.mxu0 %v1619
        %1908 = vmatpush1.msra.mxu0 %v1618
        %1909 = vmatprep.subr.mxu0 %v1621
        %1910 = vmatpush1.msra.mxu0 %v1620
        %1911 = vmatprep.subr.mxu0 %v1623
        %1912 = vmatpush1.msra.mxu0 %v1622
        %1913 = vmatprep.subr.mxu0 %v1625
        %1914 = vmatpush1.msra.mxu0 %v1624
        %1915 = vmatprep.subr.mxu0 %v1627
        %1916 = vmatpush1.msra.mxu0 %v1626
        %1917 = vmatprep.mubr.f32.mxu0 %v540
        %1918 = vmatmul.mubr.f32.gmra.mrb[0].mxu0 %v539
        %v1919 = vpop.f32.mrb[0].mxu0
        %v1920 = vadd.f32 %v1759, %v1919
        %v1921 = vpop.f32.mrb[0].mxu0
        %v1922 = vadd.f32 %v1761, %v1921
        %1923 = vmatprep.mubr.f32.mxu0 %v546
        %1924 = vmatmul.mubr.f32.gmra.mrb[0].mxu0 %v545
        %v1925 = vpop.f32.mrb[0].mxu0
        %v1926 = vadd.f32 %v1765, %v1925
        %v1927 = vpop.f32.mrb[0].mxu0
        %v1928 = vadd.f32 %v1767, %v1927
        %1929 = vmatprep.mubr.f32.mxu0 %v552
        %1930 = vmatmul.mubr.f32.gmra.mrb[0].mxu0 %v551
        %v1931 = vpop.f32.mrb[0].mxu0
        %v1932 = vadd.f32 %v1771, %v1931
        %v1933 = vpop.f32.mrb[0].mxu0
        %v1934 = vadd.f32 %v1773, %v1933
        %1935 = vmatprep.mubr.f32.mxu0 %v558
        %1936 = vmatmul.mubr.f32.gmra.mrb[0].mxu0 %v557
        %v1937 = vpop.f32.mrb[0].mxu0
        %v1938 = vadd.f32 %v1777, %v1937
        %v1939 = vpop.f32.mrb[0].mxu0
        %v1940 = vadd.f32 %v1779, %v1939
        %1941 = vmatprep.mubr.f32.mxu0 %v564
        %1942 = vmatmul.mubr.f32.gmra.mrb[0].mxu0 %v563
        %v1943 = vpop.f32.mrb[0].mxu0
        %v1944 = vadd.f32 %v1783, %v1943
        %v1945 = vpop.f32.mrb[0].mxu0
        %v1946 = vadd.f32 %v1785, %v1945
        %1947 = vmatprep.mubr.f32.mxu0 %v570
        %1948 = vmatmul.mubr.f32.gmra.mrb[0].mxu0 %v569
        %v1949 = vpop.f32.mrb[0].mxu0
        %v1950 = vadd.f32 %v1789, %v1949
        %v1951 = vpop.f32.mrb[0].mxu0
        %v1952 = vadd.f32 %v1791, %v1951
        %1953 = vmatprep.mubr.f32.mxu0 %v576
        %1954 = vmatmul.mubr.f32.gmra.mrb[0].mxu0 %v575
        %v1955 = vpop.f32.mrb[0].mxu0
        %v1956 = vadd.f32 %v1795, %v1955
        %v1957 = vpop.f32.mrb[0].mxu0
        %v1958 = vadd.f32 %v1797, %v1957
        %1959 = vmatprep.mubr.f32.mxu0 %v582
        %1960 = vmatmul.mubr.f32.gmra.mrb[0].mxu0 %v581
        %v1961 = vpop.f32.mrb[0].mxu0
        %v1962 = vadd.f32 %v1801, %v1961
        %v1963 = vpop.f32.mrb[0].mxu0
        %v1964 = vadd.f32 %v1803, %v1963
        %1965 = vmatprep.mubr.f32.mxu0 %v588
        %1966 = vmatmul.mubr.f32.gmra.mrb[0].mxu0 %v587
        %v1967 = vpop.f32.mrb[0].mxu0
        %v1968 = vadd.f32 %v1807, %v1967
        %v1969 = vpop.f32.mrb[0].mxu0
        %v1970 = vadd.f32 %v1809, %v1969
        %1971 = vmatprep.mubr.f32.mxu0 %v594
        %1972 = vmatmul.mubr.f32.gmra.mrb[0].mxu0 %v593
        %v1973 = vpop.f32.mrb[0].mxu0
        %v1974 = vadd.f32 %v1813, %v1973
        %v1975 = vpop.f32.mrb[0].mxu0
        %v1976 = vadd.f32 %v1815, %v1975
        %1977 = vmatprep.mubr.f32.mxu0 %v600
        %1978 = vmatmul.mubr.f32.gmra.mrb[0].mxu0 %v599
        %v1979 = vpop.f32.mrb[0].mxu0
        %v1980 = vadd.f32 %v1819, %v1979
        %v1981 = vpop.f32.mrb[0].mxu0
        %v1982 = vadd.f32 %v1821, %v1981
        %1983 = vmatprep.mubr.f32.mxu0 %v606
        %1984 = vmatmul.mubr.f32.gmra.mrb[0].mxu0 %v605
        %v1985 = vpop.f32.mrb[0].mxu0
        %v1986 = vadd.f32 %v1825, %v1985
        %v1987 = vpop.f32.mrb[0].mxu0
        %v1988 = vadd.f32 %v1827, %v1987
        %1989 = vmatprep.mubr.f32.mxu0 %v612
        %1990 = vmatmul.mubr.f32.gmra.mrb[0].mxu0 %v611
        %v1991 = vpop.f32.mrb[0].mxu0
        %v1992 = vadd.f32 %v1831, %v1991
        %v1993 = vpop.f32.mrb[0].mxu0
        %v1994 = vadd.f32 %v1833, %v1993
        %1995 = vmatprep.mubr.f32.mxu0 %v618
        %1996 = vmatmul.mubr.f32.gmra.mrb[0].mxu0 %v617
        %v1997 = vpop.f32.mrb[0].mxu0
        %v1998 = vadd.f32 %v1837, %v1997
        %v1999 = vpop.f32.mrb[0].mxu0
        %v2000 = vadd.f32 %v1839, %v1999
        %2001 = vmatprep.mubr.f32.mxu0 %v624
        %2002 = vmatmul.mubr.f32.gmra.mrb[0].mxu0 %v623
        %v2003 = vpop.f32.mrb[0].mxu0
        %v2004 = vadd.f32 %v1843, %v2003
        %v2005 = vpop.f32.mrb[0].mxu0
        %v2006 = vadd.f32 %v1845, %v2005
        %2007 = vmatprep.mubr.f32.mxu0 %v630
        %2008 = vmatmul.mubr.f32.gmra.mrb[0].mxu0 %v629
        %v2009 = vpop.f32.mrb[0].mxu0
        %v2010 = vadd.f32 %v1849, %v2009
        %v2011 = vpop.f32.mrb[0].mxu0
        %v2012 = vadd.f32 %v1851, %v2011
        %2013 = vdwg.mxu0
        %2014 = vmatprep.subr.mxu0 %v1629
        %2015 = vmatpush1.msra.mxu0 %v1628
        %2016 = vmatprep.subr.mxu0 %v1631
        %2017 = vmatpush1.msra.mxu0 %v1630
        %2018 = vmatprep.subr.mxu0 %v1633
        %2019 = vmatpush1.msra.mxu0 %v1632
        %2020 = vmatprep.subr.mxu0 %v1635
        %2021 = vmatpush1.msra.mxu0 %v1634
        %2022 = vmatprep.subr.mxu0 %v1637
        %2023 = vmatpush1.msra.mxu0 %v1636
        %2024 = vmatprep.subr.mxu0 %v1639
        %2025 = vmatpush1.msra.mxu0 %v1638
        %2026 = vmatprep.subr.mxu0 %v1641
        %2027 = vmatpush1.msra.mxu0 %v1640
        %2028 = vmatprep.subr.mxu0 %v1643
        %2029 = vmatpush1.msra.mxu0 %v1642
        %2030 = vmatprep.subr.mxu0 %v1645
        %2031 = vmatpush1.msra.mxu0 %v1644
        %2032 = vmatprep.subr.mxu0 %v1647
        %2033 = vmatpush1.msra.mxu0 %v1646
        %2034 = vmatprep.subr.mxu0 %v1649
        %2035 = vmatpush1.msra.mxu0 %v1648
        %2036 = vmatprep.subr.mxu0 %v1651
        %2037 = vmatpush1.msra.mxu0 %v1650
        %2038 = vmatprep.subr.mxu0 %v1653
        %2039 = vmatpush1.msra.mxu0 %v1652
        %2040 = vmatprep.subr.mxu0 %v1655
        %2041 = vmatpush1.msra.mxu0 %v1654
        %2042 = vmatprep.subr.mxu0 %v1657
        %2043 = vmatpush1.msra.mxu0 %v1656
        %2044 = vmatprep.subr.mxu0 %v1659
        %2045 = vmatpush1.msra.mxu0 %v1658
        %2046 = vmatprep.subr.mxu0 %v1661
        %2047 = vmatpush1.msra.mxu0 %v1660
        %2048 = vmatprep.subr.mxu0 %v1663
        %2049 = vmatpush1.msra.mxu0 %v1662
        %2050 = vmatprep.subr.mxu0 %v1665
        %2051 = vmatpush1.msra.mxu0 %v1664
        %2052 = vmatprep.subr.mxu0 %v1667
        %2053 = vmatpush1.msra.mxu0 %v1666
        %2054 = vmatprep.subr.mxu0 %v1669
        %2055 = vmatpush1.msra.mxu0 %v1668
        %2056 = vmatprep.subr.mxu0 %v1671
        %2057 = vmatpush1.msra.mxu0 %v1670
        %2058 = vmatprep.subr.mxu0 %v1673
        %2059 = vmatpush1.msra.mxu0 %v1672
        %2060 = vmatprep.subr.mxu0 %v1675
        %2061 = vmatpush1.msra.mxu0 %v1674
        %2062 = vmatprep.subr.mxu0 %v1677
        %2063 = vmatpush1.msra.mxu0 %v1676
        %2064 = vmatprep.subr.mxu0 %v1679
        %2065 = vmatpush1.msra.mxu0 %v1678
        %2066 = vmatprep.subr.mxu0 %v1681
        %2067 = vmatpush1.msra.mxu0 %v1680
        %2068 = vmatprep.subr.mxu0 %v1683
        %2069 = vmatpush1.msra.mxu0 %v1682
        %2070 = vmatprep.subr.mxu0 %v1685
        %2071 = vmatpush1.msra.mxu0 %v1684
        %2072 = vmatprep.subr.mxu0 %v1687
        %2073 = vmatpush1.msra.mxu0 %v1686
        %2074 = vmatprep.subr.mxu0 %v1689
        %2075 = vmatpush1.msra.mxu0 %v1688
        %2076 = vmatprep.subr.mxu0 %v1691
        %2077 = vmatpush1.msra.mxu0 %v1690
        %2078 = vmatprep.mubr.f32.mxu0 %v542
        %2079 = vmatmul.mubr.f32.gmra.mrb[0].mxu0 %v541
        %v2080 = vpop.f32.mrb[0].mxu0
        %v2081 = vadd.f32 %v1920, %v2080
        %v2082 = vpop.f32.mrb[0].mxu0
        %v2083 = vadd.f32 %v1922, %v2082
        %2084 = vmatprep.mubr.f32.mxu0 %v548
        %2085 = vmatmul.mubr.f32.gmra.mrb[0].mxu0 %v547
        %v2086 = vpop.f32.mrb[0].mxu0
        %v2087 = vadd.f32 %v1926, %v2086
        %v2088 = vpop.f32.mrb[0].mxu0
        %v2089 = vadd.f32 %v1928, %v2088
        %2090 = vmatprep.mubr.f32.mxu0 %v554
        %2091 = vmatmul.mubr.f32.gmra.mrb[0].mxu0 %v553
        %v2092 = vpop.f32.mrb[0].mxu0
        %v2093 = vadd.f32 %v1932, %v2092
        %v2094 = vpop.f32.mrb[0].mxu0
        %v2095 = vadd.f32 %v1934, %v2094
        %2096 = vmatprep.mubr.f32.mxu0 %v560
        %2097 = vmatmul.mubr.f32.gmra.mrb[0].mxu0 %v559
        %v2098 = vpop.f32.mrb[0].mxu0
        %v2099 = vadd.f32 %v1938, %v2098
        %v2100 = vpop.f32.mrb[0].mxu0
        %v2101 = vadd.f32 %v1940, %v2100
        %2102 = vmatprep.mubr.f32.mxu0 %v566
        %2103 = vmatmul.mubr.f32.gmra.mrb[0].mxu0 %v565
        %v2104 = vpop.f32.mrb[0].mxu0
        %v2105 = vadd.f32 %v1944, %v2104
        %v2106 = vpop.f32.mrb[0].mxu0
        %v2107 = vadd.f32 %v1946, %v2106
        %2108 = vmatprep.mubr.f32.mxu0 %v572
        %2109 = vmatmul.mubr.f32.gmra.mrb[0].mxu0 %v571
        %v2110 = vpop.f32.mrb[0].mxu0
        %v2111 = vadd.f32 %v1950, %v2110
        %v2112 = vpop.f32.mrb[0].mxu0
        %v2113 = vadd.f32 %v1952, %v2112
        %2114 = vmatprep.mubr.f32.mxu0 %v578
        %2115 = vmatmul.mubr.f32.gmra.mrb[0].mxu0 %v577
        %v2116 = vpop.f32.mrb[0].mxu0
        %v2117 = vadd.f32 %v1956, %v2116
        %v2118 = vpop.f32.mrb[0].mxu0
        %v2119 = vadd.f32 %v1958, %v2118
        %2120 = vmatprep.mubr.f32.mxu0 %v584
        %2121 = vmatmul.mubr.f32.gmra.mrb[0].mxu0 %v583
        %v2122 = vpop.f32.mrb[0].mxu0
        %v2123 = vadd.f32 %v1962, %v2122
        %v2124 = vpop.f32.mrb[0].mxu0
        %v2125 = vadd.f32 %v1964, %v2124
        %2126 = vmatprep.mubr.f32.mxu0 %v590
        %2127 = vmatmul.mubr.f32.gmra.mrb[0].mxu0 %v589
        %v2128 = vpop.f32.mrb[0].mxu0
        %v2129 = vadd.f32 %v1968, %v2128
        %v2130 = vpop.f32.mrb[0].mxu0
        %v2131 = vadd.f32 %v1970, %v2130
        %2132 = vmatprep.mubr.f32.mxu0 %v596
        %2133 = vmatmul.mubr.f32.gmra.mrb[0].mxu0 %v595
        %v2134 = vpop.f32.mrb[0].mxu0
        %v2135 = vadd.f32 %v1974, %v2134
        %v2136 = vpop.f32.mrb[0].mxu0
        %v2137 = vadd.f32 %v1976, %v2136
        %2138 = vmatprep.mubr.f32.mxu0 %v602
        %2139 = vmatmul.mubr.f32.gmra.mrb[0].mxu0 %v601
        %v2140 = vpop.f32.mrb[0].mxu0
        %v2141 = vadd.f32 %v1980, %v2140
        %v2142 = vpop.f32.mrb[0].mxu0
        %v2143 = vadd.f32 %v1982, %v2142
        %2144 = vmatprep.mubr.f32.mxu0 %v608
        %2145 = vmatmul.mubr.f32.gmra.mrb[0].mxu0 %v607
        %v2146 = vpop.f32.mrb[0].mxu0
        %v2147 = vadd.f32 %v1986, %v2146
        %v2148 = vpop.f32.mrb[0].mxu0
        %v2149 = vadd.f32 %v1988, %v2148
        %2150 = vmatprep.mubr.f32.mxu0 %v614
        %2151 = vmatmul.mubr.f32.gmra.mrb[0].mxu0 %v613
        %v2152 = vpop.f32.mrb[0].mxu0
        %v2153 = vadd.f32 %v1992, %v2152
        %v2154 = vpop.f32.mrb[0].mxu0
        %v2155 = vadd.f32 %v1994, %v2154
        %2156 = vmatprep.mubr.f32.mxu0 %v620
        %2157 = vmatmul.mubr.f32.gmra.mrb[0].mxu0 %v619
        %v2158 = vpop.f32.mrb[0].mxu0
        %v2159 = vadd.f32 %v1998, %v2158
        %v2160 = vpop.f32.mrb[0].mxu0
        %v2161 = vadd.f32 %v2000, %v2160
        %2162 = vmatprep.mubr.f32.mxu0 %v626
        %2163 = vmatmul.mubr.f32.gmra.mrb[0].mxu0 %v625
        %v2164 = vpop.f32.mrb[0].mxu0
        %v2165 = vadd.f32 %v2004, %v2164
        %v2166 = vpop.f32.mrb[0].mxu0
        %v2167 = vadd.f32 %v2006, %v2166
        %2168 = vmatprep.mubr.f32.mxu0 %v632
        %2169 = vmatmul.mubr.f32.gmra.mrb[0].mxu0 %v631
        %v2170 = vpop.f32.mrb[0].mxu0
        %v2171 = vadd.f32 %v2010, %v2170
        %v2172 = vpop.f32.mrb[0].mxu0
        %v2173 = vadd.f32 %v2012, %v2172
        %2174 = vdwg.mxu0
        %v2175 = vxor.u32 %v2081, 2147483648
        %v2176 = vxor.u32 %v2083, 2147483648
        %v2177 = vxor.u32 %v2087, 2147483648
        %v2178 = vxor.u32 %v2089, 2147483648
        %v2179 = vxor.u32 %v2093, 2147483648
        %v2180 = vxor.u32 %v2095, 2147483648
        %v2181 = vxor.u32 %v2099, 2147483648
        %v2182 = vxor.u32 %v2101, 2147483648
        %v2183 = vxor.u32 %v2105, 2147483648
        %v2184 = vxor.u32 %v2107, 2147483648
        %v2185 = vxor.u32 %v2111, 2147483648
        %v2186 = vxor.u32 %v2113, 2147483648
        %v2187 = vxor.u32 %v2117, 2147483648
        %v2188 = vxor.u32 %v2119, 2147483648
        %v2189 = vxor.u32 %v2123, 2147483648
        %v2190 = vxor.u32 %v2125, 2147483648
        %v2191 = vxor.u32 %v2129, 2147483648
        %v2192 = vxor.u32 %v2131, 2147483648
        %v2193 = vxor.u32 %v2135, 2147483648
        %v2194 = vxor.u32 %v2137, 2147483648
        %v2195 = vxor.u32 %v2141, 2147483648
        %v2196 = vxor.u32 %v2143, 2147483648
        %v2197 = vxor.u32 %v2147, 2147483648
        %v2198 = vxor.u32 %v2149, 2147483648
        %v2199 = vxor.u32 %v2153, 2147483648
        %v2200 = vxor.u32 %v2155, 2147483648
        %v2201 = vxor.u32 %v2159, 2147483648
        %v2202 = vxor.u32 %v2161, 2147483648
        %v2203 = vxor.u32 %v2165, 2147483648
        %v2204 = vxor.u32 %v2167, 2147483648
        %v2205 = vxor.u32 %v2171, 2147483648
        %v2206 = vxor.u32 %v2173, 2147483648
        %v2207 = vmul.f32 %v2175, 1.442695
        %v2208 = vpow.pop %v2207
        %v2209 = vmul.f32 %v2176, 1.442695
        %v2210 = vpow.pop %v2209
        %v2211 = vmul.f32 %v2177, 1.442695
        %v2212 = vpow.pop %v2211
        %v2213 = vmul.f32 %v2178, 1.442695
        %v2214 = vpow.pop %v2213
        %v2215 = vmul.f32 %v2179, 1.442695
        %v2216 = vpow.pop %v2215
        %v2217 = vmul.f32 %v2180, 1.442695
        %v2218 = vpow.pop %v2217
        %v2219 = vmul.f32 %v2181, 1.442695
        %v2220 = vpow.pop %v2219
        %v2221 = vmul.f32 %v2182, 1.442695
        %v2222 = vpow.pop %v2221
        %v2223 = vmul.f32 %v2183, 1.442695
        %v2224 = vpow.pop %v2223
        %v2225 = vmul.f32 %v2184, 1.442695
        %v2226 = vpow.pop %v2225
        %v2227 = vmul.f32 %v2185, 1.442695
        %v2228 = vpow.pop %v2227
        %v2229 = vmul.f32 %v2186, 1.442695
        %v2230 = vpow.pop %v2229
        %v2231 = vmul.f32 %v2187, 1.442695
        %v2232 = vpow.pop %v2231
        %v2233 = vmul.f32 %v2188, 1.442695
        %v2234 = vpow.pop %v2233
        %v2235 = vmul.f32 %v2189, 1.442695
        %v2236 = vpow.pop %v2235
        %v2237 = vmul.f32 %v2190, 1.442695
        %v2238 = vpow.pop %v2237
        %v2239 = vmul.f32 %v2191, 1.442695
        %v2240 = vpow.pop %v2239
        %v2241 = vmul.f32 %v2192, 1.442695
        %v2242 = vpow.pop %v2241
        %v2243 = vmul.f32 %v2193, 1.442695
        %v2244 = vpow.pop %v2243
        %v2245 = vmul.f32 %v2194, 1.442695
        %v2246 = vpow.pop %v2245
        %v2247 = vmul.f32 %v2195, 1.442695
        %v2248 = vpow.pop %v2247
        %v2249 = vmul.f32 %v2196, 1.442695
        %v2250 = vpow.pop %v2249
        %v2251 = vmul.f32 %v2197, 1.442695
        %v2252 = vpow.pop %v2251
        %v2253 = vmul.f32 %v2198, 1.442695
        %v2254 = vpow.pop %v2253
        %v2255 = vmul.f32 %v2199, 1.442695
        %v2256 = vpow.pop %v2255
        %v2257 = vmul.f32 %v2200, 1.442695
        %v2258 = vpow.pop %v2257
        %v2259 = vmul.f32 %v2201, 1.442695
        %v2260 = vpow.pop %v2259
        %v2261 = vmul.f32 %v2202, 1.442695
        %v2262 = vpow.pop %v2261
        %v2263 = vmul.f32 %v2203, 1.442695
        %v2264 = vpow.pop %v2263
        %v2265 = vmul.f32 %v2204, 1.442695
        %v2266 = vpow.pop %v2265
        %v2267 = vmul.f32 %v2205, 1.442695
        %v2268 = vpow.pop %v2267
        %v2269 = vmul.f32 %v2206, 1.442695
        %v2270 = vpow.pop %v2269
        %v2271 = vadd.f32 %v2208, 1.0
        %v2272 = vadd.f32 %v2210, 1.0
        %v2273 = vadd.f32 %v2212, 1.0
        %v2274 = vadd.f32 %v2214, 1.0
        %v2275 = vadd.f32 %v2216, 1.0
        %v2276 = vadd.f32 %v2218, 1.0
        %v2277 = vadd.f32 %v2220, 1.0
        %v2278 = vadd.f32 %v2222, 1.0
        %v2279 = vadd.f32 %v2224, 1.0
        %v2280 = vadd.f32 %v2226, 1.0
        %v2281 = vadd.f32 %v2228, 1.0
        %v2282 = vadd.f32 %v2230, 1.0
        %v2283 = vadd.f32 %v2232, 1.0
        %v2284 = vadd.f32 %v2234, 1.0
        %v2285 = vadd.f32 %v2236, 1.0
        %v2286 = vadd.f32 %v2238, 1.0
        %v2287 = vadd.f32 %v2240, 1.0
        %v2288 = vadd.f32 %v2242, 1.0
        %v2289 = vadd.f32 %v2244, 1.0
        %v2290 = vadd.f32 %v2246, 1.0
        %v2291 = vadd.f32 %v2248, 1.0
        %v2292 = vadd.f32 %v2250, 1.0
        %v2293 = vadd.f32 %v2252, 1.0
        %v2294 = vadd.f32 %v2254, 1.0
        %v2295 = vadd.f32 %v2256, 1.0
        %v2296 = vadd.f32 %v2258, 1.0
        %v2297 = vadd.f32 %v2260, 1.0
        %v2298 = vadd.f32 %v2262, 1.0
        %v2299 = vadd.f32 %v2264, 1.0
        %v2300 = vadd.f32 %v2266, 1.0
        %v2301 = vadd.f32 %v2268, 1.0
        %v2302 = vadd.f32 %v2270, 1.0
        %v2303 = vrcp.pop %v2271
        %v2304 = vmul.f32 1.0, %v2303
        %v2305 = vrcp.pop %v2272
        %v2306 = vmul.f32 1.0, %v2305
        %v2307 = vrcp.pop %v2273
        %v2308 = vmul.f32 1.0, %v2307
        %v2309 = vrcp.pop %v2274
        %v2310 = vmul.f32 1.0, %v2309
        %v2311 = vrcp.pop %v2275
        %v2312 = vmul.f32 1.0, %v2311
        %v2313 = vrcp.pop %v2276
        %v2314 = vmul.f32 1.0, %v2313
        %v2315 = vrcp.pop %v2277
        %v2316 = vmul.f32 1.0, %v2315
        %v2317 = vrcp.pop %v2278
        %v2318 = vmul.f32 1.0, %v2317
        %v2319 = vrcp.pop %v2279
        %v2320 = vmul.f32 1.0, %v2319
        %v2321 = vrcp.pop %v2280
        %v2322 = vmul.f32 1.0, %v2321
        %v2323 = vrcp.pop %v2281
        %v2324 = vmul.f32 1.0, %v2323
        %v2325 = vrcp.pop %v2282
        %v2326 = vmul.f32 1.0, %v2325
        %v2327 = vrcp.pop %v2283
        %v2328 = vmul.f32 1.0, %v2327
        %v2329 = vrcp.pop %v2284
        %v2330 = vmul.f32 1.0, %v2329
        %v2331 = vrcp.pop %v2285
        %v2332 = vmul.f32 1.0, %v2331
        %v2333 = vrcp.pop %v2286
        %v2334 = vmul.f32 1.0, %v2333
        %v2335 = vrcp.pop %v2287
        %v2336 = vmul.f32 1.0, %v2335
        %v2337 = vrcp.pop %v2288
        %v2338 = vmul.f32 1.0, %v2337
        %v2339 = vrcp.pop %v2289
        %v2340 = vmul.f32 1.0, %v2339
        %v2341 = vrcp.pop %v2290
        %v2342 = vmul.f32 1.0, %v2341
        %v2343 = vrcp.pop %v2291
        %v2344 = vmul.f32 1.0, %v2343
        %v2345 = vrcp.pop %v2292
        %v2346 = vmul.f32 1.0, %v2345
        %v2347 = vrcp.pop %v2293
        %v2348 = vmul.f32 1.0, %v2347
        %v2349 = vrcp.pop %v2294
        %v2350 = vmul.f32 1.0, %v2349
        %v2351 = vrcp.pop %v2295
        %v2352 = vmul.f32 1.0, %v2351
        %v2353 = vrcp.pop %v2296
        %v2354 = vmul.f32 1.0, %v2353
        %v2355 = vrcp.pop %v2297
        %v2356 = vmul.f32 1.0, %v2355
        %v2357 = vrcp.pop %v2298
        %v2358 = vmul.f32 1.0, %v2357
        %v2359 = vrcp.pop %v2299
        %v2360 = vmul.f32 1.0, %v2359
        %v2361 = vrcp.pop %v2300
        %v2362 = vmul.f32 1.0, %v2361
        %v2363 = vrcp.pop %v2301
        %v2364 = vmul.f32 1.0, %v2363
        %v2365 = vrcp.pop %v2302
        %v2366 = vmul.f32 1.0, %v2365
        %v2367 = vmul.f32 %v1437, %v2304
        %v2368 = vmul.f32 %v1439, %v2306
        %v2369 = vmul.f32 %v1441, %v2308
        %v2370 = vmul.f32 %v1443, %v2310
        %v2371 = vmul.f32 %v1445, %v2312
        %v2372 = vmul.f32 %v1447, %v2314
        %v2373 = vmul.f32 %v1449, %v2316
        %v2374 = vmul.f32 %v1451, %v2318
        %v2375 = vmul.f32 %v1453, %v2320
        %v2376 = vmul.f32 %v1455, %v2322
        %v2377 = vmul.f32 %v1457, %v2324
        %v2378 = vmul.f32 %v1459, %v2326
        %v2379 = vmul.f32 %v1461, %v2328
        %v2380 = vmul.f32 %v1463, %v2330
        %v2381 = vmul.f32 %v1465, %v2332
        %v2382 = vmul.f32 %v1467, %v2334
        %v2383 = vmul.f32 %v1469, %v2336
        %v2384 = vmul.f32 %v1471, %v2338
        %v2385 = vmul.f32 %v1473, %v2340
        %v2386 = vmul.f32 %v1475, %v2342
        %v2387 = vmul.f32 %v1477, %v2344
        %v2388 = vmul.f32 %v1479, %v2346
        %v2389 = vmul.f32 %v1481, %v2348
        %v2390 = vmul.f32 %v1483, %v2350
        %v2391 = vmul.f32 %v1485, %v2352
        %v2392 = vmul.f32 %v1487, %v2354
        %v2393 = vmul.f32 %v1489, %v2356
        %v2394 = vmul.f32 %v1491, %v2358
        %v2395 = vmul.f32 %v1493, %v2360
        %v2396 = vmul.f32 %v1495, %v2362
        %v2397 = vmul.f32 %v1497, %v2364
        %v2398 = vmul.f32 %v1499, %v2366
        %v2399 = vld [vmem:[#allocation10] sm:$0xff]
        %v2400 = vld [vmem:[#allocation10 + $0x8] sm:$0xff]
        %v2401 = vld [vmem:[#allocation10 + $0x10] sm:$0xff]
        %v2402 = vld [vmem:[#allocation10 + $0x18] sm:$0xff]
        %v2403 = vld [vmem:[#allocation10 + $0x20] sm:$0xff]
        %v2404 = vld [vmem:[#allocation10 + $0x28] sm:$0xff]
        %v2405 = vld [vmem:[#allocation10 + $0x30] sm:$0xff]
        %v2406 = vld [vmem:[#allocation10 + $0x38] sm:$0xff]
        %v2407 = vld [vmem:[#allocation10 + $0x40] sm:$0xff]
        %v2408 = vld [vmem:[#allocation10 + $0x48] sm:$0xff]
        %v2409 = vld [vmem:[#allocation10 + $0x50] sm:$0xff]
        %v2410 = vld [vmem:[#allocation10 + $0x58] sm:$0xff]
        %v2411 = vld [vmem:[#allocation10 + $0x60] sm:$0xff]
        %v2412 = vld [vmem:[#allocation10 + $0x68] sm:$0xff]
        %v2413 = vld [vmem:[#allocation10 + $0x70] sm:$0xff]
        %v2414 = vld [vmem:[#allocation10 + $0x78] sm:$0xff]
        %v2415 = vld [vmem:[#allocation10 + $0x80] sm:$0xff]
        %v2416 = vld [vmem:[#allocation10 + $0x88] sm:$0xff]
        %v2417 = vld [vmem:[#allocation10 + $0x90] sm:$0xff]
        %v2418 = vld [vmem:[#allocation10 + $0x98] sm:$0xff]
        %v2419 = vld [vmem:[#allocation10 + $0xa0] sm:$0xff]
        %v2420 = vld [vmem:[#allocation10 + $0xa8] sm:$0xff]
        %v2421 = vld [vmem:[#allocation10 + $0xb0] sm:$0xff]
        %v2422 = vld [vmem:[#allocation10 + $0xb8] sm:$0xff]
        %v2423 = vld [vmem:[#allocation10 + $0xc0] sm:$0xff]
        %v2424 = vld [vmem:[#allocation10 + $0xc8] sm:$0xff]
        %v2425 = vld [vmem:[#allocation10 + $0xd0] sm:$0xff]
        %v2426 = vld [vmem:[#allocation10 + $0xd8] sm:$0xff]
        %v2427 = vld [vmem:[#allocation10 + $0xe0] sm:$0xff]
        %v2428 = vld [vmem:[#allocation10 + $0xe8] sm:$0xff]
        %v2429 = vld [vmem:[#allocation10 + $0xf0] sm:$0xff]
        %v2430 = vld [vmem:[#allocation10 + $0xf8] sm:$0xff]
        %v2431 = vld [vmem:[#allocation10 + $0x100] sm:$0xff]
        %v2432 = vld [vmem:[#allocation10 + $0x108] sm:$0xff]
        %v2433 = vld [vmem:[#allocation10 + $0x110] sm:$0xff]
        %v2434 = vld [vmem:[#allocation10 + $0x118] sm:$0xff]
        %v2435 = vld [vmem:[#allocation10 + $0x120] sm:$0xff]
        %v2436 = vld [vmem:[#allocation10 + $0x128] sm:$0xff]
        %v2437 = vld [vmem:[#allocation10 + $0x130] sm:$0xff]
        %v2438 = vld [vmem:[#allocation10 + $0x138] sm:$0xff]
        %v2439 = vld [vmem:[#allocation10 + $0x140] sm:$0xff]
        %v2440 = vld [vmem:[#allocation10 + $0x148] sm:$0xff]
        %v2441 = vld [vmem:[#allocation10 + $0x150] sm:$0xff]
        %v2442 = vld [vmem:[#allocation10 + $0x158] sm:$0xff]
        %v2443 = vld [vmem:[#allocation10 + $0x160] sm:$0xff]
        %v2444 = vld [vmem:[#allocation10 + $0x168] sm:$0xff]
        %v2445 = vld [vmem:[#allocation10 + $0x170] sm:$0xff]
        %v2446 = vld [vmem:[#allocation10 + $0x178] sm:$0xff]
        %v2447 = vld [vmem:[#allocation10 + $0x180] sm:$0xff]
        %v2448 = vld [vmem:[#allocation10 + $0x188] sm:$0xff]
        %v2449 = vld [vmem:[#allocation10 + $0x190] sm:$0xff]
        %v2450 = vld [vmem:[#allocation10 + $0x198] sm:$0xff]
        %v2451 = vld [vmem:[#allocation10 + $0x1a0] sm:$0xff]
        %v2452 = vld [vmem:[#allocation10 + $0x1a8] sm:$0xff]
        %v2453 = vld [vmem:[#allocation10 + $0x1b0] sm:$0xff]
        %v2454 = vld [vmem:[#allocation10 + $0x1b8] sm:$0xff]
        %v2455 = vld [vmem:[#allocation10 + $0x1c0] sm:$0xff]
        %v2456 = vld [vmem:[#allocation10 + $0x1c8] sm:$0xff]
        %v2457 = vld [vmem:[#allocation10 + $0x1d0] sm:$0xff]
        %v2458 = vld [vmem:[#allocation10 + $0x1d8] sm:$0xff]
        %v2459 = vld [vmem:[#allocation10 + $0x1e0] sm:$0xff]
        %v2460 = vld [vmem:[#allocation10 + $0x1e8] sm:$0xff]
        %v2461 = vld [vmem:[#allocation10 + $0x1f0] sm:$0xff]
        %v2462 = vld [vmem:[#allocation10 + $0x1f8] sm:$0xff]
        %v2463 = vld [vmem:[#allocation11] sm:$0xff]
        %v2464 = vld [vmem:[#allocation11 + $0x8] sm:$0xff]
        %v2465 = vld [vmem:[#allocation11 + $0x10] sm:$0xff]
        %v2466 = vld [vmem:[#allocation11 + $0x18] sm:$0xff]
        %v2467 = vld [vmem:[#allocation11 + $0x20] sm:$0xff]
        %v2468 = vld [vmem:[#allocation11 + $0x28] sm:$0xff]
        %v2469 = vld [vmem:[#allocation11 + $0x30] sm:$0xff]
        %v2470 = vld [vmem:[#allocation11 + $0x38] sm:$0xff]
        %v2471 = vld [vmem:[#allocation11 + $0x40] sm:$0xff]
        %v2472 = vld [vmem:[#allocation11 + $0x48] sm:$0xff]
        %v2473 = vld [vmem:[#allocation11 + $0x50] sm:$0xff]
        %v2474 = vld [vmem:[#allocation11 + $0x58] sm:$0xff]
        %v2475 = vld [vmem:[#allocation11 + $0x60] sm:$0xff]
        %v2476 = vld [vmem:[#allocation11 + $0x68] sm:$0xff]
        %v2477 = vld [vmem:[#allocation11 + $0x70] sm:$0xff]
        %v2478 = vld [vmem:[#allocation11 + $0x78] sm:$0xff]
        %v2479 = vld [vmem:[#allocation11 + $0x80] sm:$0xff]
        %v2480 = vld [vmem:[#allocation11 + $0x88] sm:$0xff]
        %v2481 = vld [vmem:[#allocation11 + $0x90] sm:$0xff]
        %v2482 = vld [vmem:[#allocation11 + $0x98] sm:$0xff]
        %v2483 = vld [vmem:[#allocation11 + $0xa0] sm:$0xff]
        %v2484 = vld [vmem:[#allocation11 + $0xa8] sm:$0xff]
        %v2485 = vld [vmem:[#allocation11 + $0xb0] sm:$0xff]
        %v2486 = vld [vmem:[#allocation11 + $0xb8] sm:$0xff]
        %v2487 = vld [vmem:[#allocation11 + $0xc0] sm:$0xff]
        %v2488 = vld [vmem:[#allocation11 + $0xc8] sm:$0xff]
        %v2489 = vld [vmem:[#allocation11 + $0xd0] sm:$0xff]
        %v2490 = vld [vmem:[#allocation11 + $0xd8] sm:$0xff]
        %v2491 = vld [vmem:[#allocation11 + $0xe0] sm:$0xff]
        %v2492 = vld [vmem:[#allocation11 + $0xe8] sm:$0xff]
        %v2493 = vld [vmem:[#allocation11 + $0xf0] sm:$0xff]
        %v2494 = vld [vmem:[#allocation11 + $0xf8] sm:$0xff]
        %v2495 = vld [vmem:[#allocation11 + $0x100] sm:$0xff]
        %v2496 = vld [vmem:[#allocation11 + $0x108] sm:$0xff]
        %v2497 = vld [vmem:[#allocation11 + $0x110] sm:$0xff]
        %v2498 = vld [vmem:[#allocation11 + $0x118] sm:$0xff]
        %v2499 = vld [vmem:[#allocation11 + $0x120] sm:$0xff]
        %v2500 = vld [vmem:[#allocation11 + $0x128] sm:$0xff]
        %v2501 = vld [vmem:[#allocation11 + $0x130] sm:$0xff]
        %v2502 = vld [vmem:[#allocation11 + $0x138] sm:$0xff]
        %v2503 = vld [vmem:[#allocation11 + $0x140] sm:$0xff]
        %v2504 = vld [vmem:[#allocation11 + $0x148] sm:$0xff]
        %v2505 = vld [vmem:[#allocation11 + $0x150] sm:$0xff]
        %v2506 = vld [vmem:[#allocation11 + $0x158] sm:$0xff]
        %v2507 = vld [vmem:[#allocation11 + $0x160] sm:$0xff]
        %v2508 = vld [vmem:[#allocation11 + $0x168] sm:$0xff]
        %v2509 = vld [vmem:[#allocation11 + $0x170] sm:$0xff]
        %v2510 = vld [vmem:[#allocation11 + $0x178] sm:$0xff]
        %v2511 = vld [vmem:[#allocation11 + $0x180] sm:$0xff]
        %v2512 = vld [vmem:[#allocation11 + $0x188] sm:$0xff]
        %v2513 = vld [vmem:[#allocation11 + $0x190] sm:$0xff]
        %v2514 = vld [vmem:[#allocation11 + $0x198] sm:$0xff]
        %v2515 = vld [vmem:[#allocation11 + $0x1a0] sm:$0xff]
        %v2516 = vld [vmem:[#allocation11 + $0x1a8] sm:$0xff]
        %v2517 = vld [vmem:[#allocation11 + $0x1b0] sm:$0xff]
        %v2518 = vld [vmem:[#allocation11 + $0x1b8] sm:$0xff]
        %v2519 = vld [vmem:[#allocation11 + $0x1c0] sm:$0xff]
        %v2520 = vld [vmem:[#allocation11 + $0x1c8] sm:$0xff]
        %v2521 = vld [vmem:[#allocation11 + $0x1d0] sm:$0xff]
        %v2522 = vld [vmem:[#allocation11 + $0x1d8] sm:$0xff]
        %v2523 = vld [vmem:[#allocation11 + $0x1e0] sm:$0xff]
        %v2524 = vld [vmem:[#allocation11 + $0x1e8] sm:$0xff]
        %v2525 = vld [vmem:[#allocation11 + $0x1f0] sm:$0xff]
        %v2526 = vld [vmem:[#allocation11 + $0x1f8] sm:$0xff]
        %v2527 = vld [vmem:[#allocation11 + $0x200] sm:$0xff]
        %v2528 = vld [vmem:[#allocation11 + $0x208] sm:$0xff]
        %v2529 = vld [vmem:[#allocation11 + $0x210] sm:$0xff]
        %v2530 = vld [vmem:[#allocation11 + $0x218] sm:$0xff]
        %v2531 = vld [vmem:[#allocation11 + $0x220] sm:$0xff]
        %v2532 = vld [vmem:[#allocation11 + $0x228] sm:$0xff]
        %v2533 = vld [vmem:[#allocation11 + $0x230] sm:$0xff]
        %v2534 = vld [vmem:[#allocation11 + $0x238] sm:$0xff]
        %v2535 = vld [vmem:[#allocation11 + $0x240] sm:$0xff]
        %v2536 = vld [vmem:[#allocation11 + $0x248] sm:$0xff]
        %v2537 = vld [vmem:[#allocation11 + $0x250] sm:$0xff]
        %v2538 = vld [vmem:[#allocation11 + $0x258] sm:$0xff]
        %v2539 = vld [vmem:[#allocation11 + $0x260] sm:$0xff]
        %v2540 = vld [vmem:[#allocation11 + $0x268] sm:$0xff]
        %v2541 = vld [vmem:[#allocation11 + $0x270] sm:$0xff]
        %v2542 = vld [vmem:[#allocation11 + $0x278] sm:$0xff]
        %v2543 = vld [vmem:[#allocation11 + $0x280] sm:$0xff]
        %v2544 = vld [vmem:[#allocation11 + $0x288] sm:$0xff]
        %v2545 = vld [vmem:[#allocation11 + $0x290] sm:$0xff]
        %v2546 = vld [vmem:[#allocation11 + $0x298] sm:$0xff]
        %v2547 = vld [vmem:[#allocation11 + $0x2a0] sm:$0xff]
        %v2548 = vld [vmem:[#allocation11 + $0x2a8] sm:$0xff]
        %v2549 = vld [vmem:[#allocation11 + $0x2b0] sm:$0xff]
        %v2550 = vld [vmem:[#allocation11 + $0x2b8] sm:$0xff]
        %v2551 = vld [vmem:[#allocation11 + $0x2c0] sm:$0xff]
        %v2552 = vld [vmem:[#allocation11 + $0x2c8] sm:$0xff]
        %v2553 = vld [vmem:[#allocation11 + $0x2d0] sm:$0xff]
        %v2554 = vld [vmem:[#allocation11 + $0x2d8] sm:$0xff]
        %v2555 = vld [vmem:[#allocation11 + $0x2e0] sm:$0xff]
        %v2556 = vld [vmem:[#allocation11 + $0x2e8] sm:$0xff]
        %v2557 = vld [vmem:[#allocation11 + $0x2f0] sm:$0xff]
        %v2558 = vld [vmem:[#allocation11 + $0x2f8] sm:$0xff]
        %v2559 = vld [vmem:[#allocation11 + $0x300] sm:$0xff]
        %v2560 = vld [vmem:[#allocation11 + $0x308] sm:$0xff]
        %v2561 = vld [vmem:[#allocation11 + $0x310] sm:$0xff]
        %v2562 = vld [vmem:[#allocation11 + $0x318] sm:$0xff]
        %v2563 = vld [vmem:[#allocation11 + $0x320] sm:$0xff]
        %v2564 = vld [vmem:[#allocation11 + $0x328] sm:$0xff]
        %v2565 = vld [vmem:[#allocation11 + $0x330] sm:$0xff]
        %v2566 = vld [vmem:[#allocation11 + $0x338] sm:$0xff]
        %v2567 = vld [vmem:[#allocation11 + $0x340] sm:$0xff]
        %v2568 = vld [vmem:[#allocation11 + $0x348] sm:$0xff]
        %v2569 = vld [vmem:[#allocation11 + $0x350] sm:$0xff]
        %v2570 = vld [vmem:[#allocation11 + $0x358] sm:$0xff]
        %v2571 = vld [vmem:[#allocation11 + $0x360] sm:$0xff]
        %v2572 = vld [vmem:[#allocation11 + $0x368] sm:$0xff]
        %v2573 = vld [vmem:[#allocation11 + $0x370] sm:$0xff]
        %v2574 = vld [vmem:[#allocation11 + $0x378] sm:$0xff]
        %v2575 = vld [vmem:[#allocation11 + $0x380] sm:$0xff]
        %v2576 = vld [vmem:[#allocation11 + $0x388] sm:$0xff]
        %v2577 = vld [vmem:[#allocation11 + $0x390] sm:$0xff]
        %v2578 = vld [vmem:[#allocation11 + $0x398] sm:$0xff]
        %v2579 = vld [vmem:[#allocation11 + $0x3a0] sm:$0xff]
        %v2580 = vld [vmem:[#allocation11 + $0x3a8] sm:$0xff]
        %v2581 = vld [vmem:[#allocation11 + $0x3b0] sm:$0xff]
        %v2582 = vld [vmem:[#allocation11 + $0x3b8] sm:$0xff]
        %v2583 = vld [vmem:[#allocation11 + $0x3c0] sm:$0xff]
        %v2584 = vld [vmem:[#allocation11 + $0x3c8] sm:$0xff]
        %v2585 = vld [vmem:[#allocation11 + $0x3d0] sm:$0xff]
        %v2586 = vld [vmem:[#allocation11 + $0x3d8] sm:$0xff]
        %v2587 = vld [vmem:[#allocation11 + $0x3e0] sm:$0xff]
        %v2588 = vld [vmem:[#allocation11 + $0x3e8] sm:$0xff]
        %v2589 = vld [vmem:[#allocation11 + $0x3f0] sm:$0xff]
        %v2590 = vld [vmem:[#allocation11 + $0x3f8] sm:$0xff]
        %v2591 = vld [vmem:[#allocation11 + $0x400] sm:$0xff]
        %v2592 = vld [vmem:[#allocation11 + $0x408] sm:$0xff]
        %v2593 = vld [vmem:[#allocation11 + $0x410] sm:$0xff]
        %v2594 = vld [vmem:[#allocation11 + $0x418] sm:$0xff]
        %v2595 = vld [vmem:[#allocation11 + $0x420] sm:$0xff]
        %v2596 = vld [vmem:[#allocation11 + $0x428] sm:$0xff]
        %v2597 = vld [vmem:[#allocation11 + $0x430] sm:$0xff]
        %v2598 = vld [vmem:[#allocation11 + $0x438] sm:$0xff]
        %v2599 = vld [vmem:[#allocation11 + $0x440] sm:$0xff]
        %v2600 = vld [vmem:[#allocation11 + $0x448] sm:$0xff]
        %v2601 = vld [vmem:[#allocation11 + $0x450] sm:$0xff]
        %v2602 = vld [vmem:[#allocation11 + $0x458] sm:$0xff]
        %v2603 = vld [vmem:[#allocation11 + $0x460] sm:$0xff]
        %v2604 = vld [vmem:[#allocation11 + $0x468] sm:$0xff]
        %v2605 = vld [vmem:[#allocation11 + $0x470] sm:$0xff]
        %v2606 = vld [vmem:[#allocation11 + $0x478] sm:$0xff]
        %v2607 = vld [vmem:[#allocation11 + $0x480] sm:$0xff]
        %v2608 = vld [vmem:[#allocation11 + $0x488] sm:$0xff]
        %v2609 = vld [vmem:[#allocation11 + $0x490] sm:$0xff]
        %v2610 = vld [vmem:[#allocation11 + $0x498] sm:$0xff]
        %v2611 = vld [vmem:[#allocation11 + $0x4a0] sm:$0xff]
        %v2612 = vld [vmem:[#allocation11 + $0x4a8] sm:$0xff]
        %v2613 = vld [vmem:[#allocation11 + $0x4b0] sm:$0xff]
        %v2614 = vld [vmem:[#allocation11 + $0x4b8] sm:$0xff]
        %v2615 = vld [vmem:[#allocation11 + $0x4c0] sm:$0xff]
        %v2616 = vld [vmem:[#allocation11 + $0x4c8] sm:$0xff]
        %v2617 = vld [vmem:[#allocation11 + $0x4d0] sm:$0xff]
        %v2618 = vld [vmem:[#allocation11 + $0x4d8] sm:$0xff]
        %v2619 = vld [vmem:[#allocation11 + $0x4e0] sm:$0xff]
        %v2620 = vld [vmem:[#allocation11 + $0x4e8] sm:$0xff]
        %v2621 = vld [vmem:[#allocation11 + $0x4f0] sm:$0xff]
        %v2622 = vld [vmem:[#allocation11 + $0x4f8] sm:$0xff]
        %v2623 = vld [vmem:[#allocation11 + $0x500] sm:$0xff]
        %v2624 = vld [vmem:[#allocation11 + $0x508] sm:$0xff]
        %v2625 = vld [vmem:[#allocation11 + $0x510] sm:$0xff]
        %v2626 = vld [vmem:[#allocation11 + $0x518] sm:$0xff]
        %v2627 = vld [vmem:[#allocation11 + $0x520] sm:$0xff]
        %v2628 = vld [vmem:[#allocation11 + $0x528] sm:$0xff]
        %v2629 = vld [vmem:[#allocation11 + $0x530] sm:$0xff]
        %v2630 = vld [vmem:[#allocation11 + $0x538] sm:$0xff]
        %v2631 = vld [vmem:[#allocation11 + $0x540] sm:$0xff]
        %v2632 = vld [vmem:[#allocation11 + $0x548] sm:$0xff]
        %v2633 = vld [vmem:[#allocation11 + $0x550] sm:$0xff]
        %v2634 = vld [vmem:[#allocation11 + $0x558] sm:$0xff]
        %v2635 = vld [vmem:[#allocation11 + $0x560] sm:$0xff]
        %v2636 = vld [vmem:[#allocation11 + $0x568] sm:$0xff]
        %v2637 = vld [vmem:[#allocation11 + $0x570] sm:$0xff]
        %v2638 = vld [vmem:[#allocation11 + $0x578] sm:$0xff]
        %v2639 = vld [vmem:[#allocation11 + $0x580] sm:$0xff]
        %v2640 = vld [vmem:[#allocation11 + $0x588] sm:$0xff]
        %v2641 = vld [vmem:[#allocation11 + $0x590] sm:$0xff]
        %v2642 = vld [vmem:[#allocation11 + $0x598] sm:$0xff]
        %v2643 = vld [vmem:[#allocation11 + $0x5a0] sm:$0xff]
        %v2644 = vld [vmem:[#allocation11 + $0x5a8] sm:$0xff]
        %v2645 = vld [vmem:[#allocation11 + $0x5b0] sm:$0xff]
        %v2646 = vld [vmem:[#allocation11 + $0x5b8] sm:$0xff]
        %v2647 = vld [vmem:[#allocation11 + $0x5c0] sm:$0xff]
        %v2648 = vld [vmem:[#allocation11 + $0x5c8] sm:$0xff]
        %v2649 = vld [vmem:[#allocation11 + $0x5d0] sm:$0xff]
        %v2650 = vld [vmem:[#allocation11 + $0x5d8] sm:$0xff]
        %v2651 = vld [vmem:[#allocation11 + $0x5e0] sm:$0xff]
        %v2652 = vld [vmem:[#allocation11 + $0x5e8] sm:$0xff]
        %v2653 = vld [vmem:[#allocation11 + $0x5f0] sm:$0xff]
        %v2654 = vld [vmem:[#allocation11 + $0x5f8] sm:$0xff]
        %2655 = vmatprep.subr.mxu0 %v2464
        %2656 = vmatpush1.msra.mxu0 %v2463
        %2657 = vmatprep.subr.mxu0 %v2466
        %2658 = vmatpush1.msra.mxu0 %v2465
        %2659 = vmatprep.subr.mxu0 %v2468
        %2660 = vmatpush1.msra.mxu0 %v2467
        %2661 = vmatprep.subr.mxu0 %v2470
        %2662 = vmatpush1.msra.mxu0 %v2469
        %2663 = vmatprep.subr.mxu0 %v2472
        %2664 = vmatpush1.msra.mxu0 %v2471
        %2665 = vmatprep.subr.mxu0 %v2474
        %2666 = vmatpush1.msra.mxu0 %v2473
        %2667 = vmatprep.subr.mxu0 %v2476
        %2668 = vmatpush1.msra.mxu0 %v2475
        %2669 = vmatprep.subr.mxu0 %v2478
        %2670 = vmatpush1.msra.mxu0 %v2477
        %2671 = vmatprep.subr.mxu0 %v2480
        %2672 = vmatpush1.msra.mxu0 %v2479
        %2673 = vmatprep.subr.mxu0 %v2482
        %2674 = vmatpush1.msra.mxu0 %v2481
        %2675 = vmatprep.subr.mxu0 %v2484
        %2676 = vmatpush1.msra.mxu0 %v2483
        %2677 = vmatprep.subr.mxu0 %v2486
        %2678 = vmatpush1.msra.mxu0 %v2485
        %2679 = vmatprep.subr.mxu0 %v2488
        %2680 = vmatpush1.msra.mxu0 %v2487
        %2681 = vmatprep.subr.mxu0 %v2490
        %2682 = vmatpush1.msra.mxu0 %v2489
        %2683 = vmatprep.subr.mxu0 %v2492
        %2684 = vmatpush1.msra.mxu0 %v2491
        %2685 = vmatprep.subr.mxu0 %v2494
        %2686 = vmatpush1.msra.mxu0 %v2493
        %2687 = vmatprep.subr.mxu0 %v2496
        %2688 = vmatpush1.msra.mxu0 %v2495
        %2689 = vmatprep.subr.mxu0 %v2498
        %2690 = vmatpush1.msra.mxu0 %v2497
        %2691 = vmatprep.subr.mxu0 %v2500
        %2692 = vmatpush1.msra.mxu0 %v2499
        %2693 = vmatprep.subr.mxu0 %v2502
        %2694 = vmatpush1.msra.mxu0 %v2501
        %2695 = vmatprep.subr.mxu0 %v2504
        %2696 = vmatpush1.msra.mxu0 %v2503
        %2697 = vmatprep.subr.mxu0 %v2506
        %2698 = vmatpush1.msra.mxu0 %v2505
        %2699 = vmatprep.subr.mxu0 %v2508
        %2700 = vmatpush1.msra.mxu0 %v2507
        %2701 = vmatprep.subr.mxu0 %v2510
        %2702 = vmatpush1.msra.mxu0 %v2509
        %2703 = vmatprep.subr.mxu0 %v2512
        %2704 = vmatpush1.msra.mxu0 %v2511
        %2705 = vmatprep.subr.mxu0 %v2514
        %2706 = vmatpush1.msra.mxu0 %v2513
        %2707 = vmatprep.subr.mxu0 %v2516
        %2708 = vmatpush1.msra.mxu0 %v2515
        %2709 = vmatprep.subr.mxu0 %v2518
        %2710 = vmatpush1.msra.mxu0 %v2517
        %2711 = vmatprep.subr.mxu0 %v2520
        %2712 = vmatpush1.msra.mxu0 %v2519
        %2713 = vmatprep.subr.mxu0 %v2522
        %2714 = vmatpush1.msra.mxu0 %v2521
        %2715 = vmatprep.subr.mxu0 %v2524
        %2716 = vmatpush1.msra.mxu0 %v2523
        %2717 = vmatprep.subr.mxu0 %v2526
        %2718 = vmatpush1.msra.mxu0 %v2525
        %2719 = vmatprep.mubr.f32.mxu0 %v442
        %2720 = vmatmul.mubr.f32.gmra.mrb[0].mxu0 %v441
        %v2721 = vpop.f32.mrb[0].mxu0
        %v2722 = vadd.f32 0.0, %v2721
        %v2723 = vpop.f32.mrb[0].mxu0
        %v2724 = vadd.f32 0.0, %v2723
        %2725 = vmatprep.mubr.f32.mxu0 %v448
        %2726 = vmatmul.mubr.f32.gmra.mrb[0].mxu0 %v447
        %v2727 = vpop.f32.mrb[0].mxu0
        %v2728 = vadd.f32 0.0, %v2727
        %v2729 = vpop.f32.mrb[0].mxu0
        %v2730 = vadd.f32 0.0, %v2729
        %2731 = vmatprep.mubr.f32.mxu0 %v454
        %2732 = vmatmul.mubr.f32.gmra.mrb[0].mxu0 %v453
        %v2733 = vpop.f32.mrb[0].mxu0
        %v2734 = vadd.f32 0.0, %v2733
        %v2735 = vpop.f32.mrb[0].mxu0
        %v2736 = vadd.f32 0.0, %v2735
        %2737 = vmatprep.mubr.f32.mxu0 %v460
        %2738 = vmatmul.mubr.f32.gmra.mrb[0].mxu0 %v459
        %v2739 = vpop.f32.mrb[0].mxu0
        %v2740 = vadd.f32 0.0, %v2739
        %v2741 = vpop.f32.mrb[0].mxu0
        %v2742 = vadd.f32 0.0, %v2741
        %2743 = vmatprep.mubr.f32.mxu0 %v466
        %2744 = vmatmul.mubr.f32.gmra.mrb[0].mxu0 %v465
        %v2745 = vpop.f32.mrb[0].mxu0
        %v2746 = vadd.f32 0.0, %v2745
        %v2747 = vpop.f32.mrb[0].mxu0
        %v2748 = vadd.f32 0.0, %v2747
        %2749 = vmatprep.mubr.f32.mxu0 %v472
        %2750 = vmatmul.mubr.f32.gmra.mrb[0].mxu0 %v471
        %v2751 = vpop.f32.mrb[0].mxu0
        %v2752 = vadd.f32 0.0, %v2751
        %v2753 = vpop.f32.mrb[0].mxu0
        %v2754 = vadd.f32 0.0, %v2753
        %2755 = vmatprep.mubr.f32.mxu0 %v478
        %2756 = vmatmul.mubr.f32.gmra.mrb[0].mxu0 %v477
        %v2757 = vpop.f32.mrb[0].mxu0
        %v2758 = vadd.f32 0.0, %v2757
        %v2759 = vpop.f32.mrb[0].mxu0
        %v2760 = vadd.f32 0.0, %v2759
        %2761 = vmatprep.mubr.f32.mxu0 %v484
        %2762 = vmatmul.mubr.f32.gmra.mrb[0].mxu0 %v483
        %v2763 = vpop.f32.mrb[0].mxu0
        %v2764 = vadd.f32 0.0, %v2763
        %v2765 = vpop.f32.mrb[0].mxu0
        %v2766 = vadd.f32 0.0, %v2765
        %2767 = vmatprep.mubr.f32.mxu0 %v490
        %2768 = vmatmul.mubr.f32.gmra.mrb[0].mxu0 %v489
        %v2769 = vpop.f32.mrb[0].mxu0
        %v2770 = vadd.f32 0.0, %v2769
        %v2771 = vpop.f32.mrb[0].mxu0
        %v2772 = vadd.f32 0.0, %v2771
        %2773 = vmatprep.mubr.f32.mxu0 %v496
        %2774 = vmatmul.mubr.f32.gmra.mrb[0].mxu0 %v495
        %v2775 = vpop.f32.mrb[0].mxu0
        %v2776 = vadd.f32 0.0, %v2775
        %v2777 = vpop.f32.mrb[0].mxu0
        %v2778 = vadd.f32 0.0, %v2777
        %2779 = vmatprep.mubr.f32.mxu0 %v502
        %2780 = vmatmul.mubr.f32.gmra.mrb[0].mxu0 %v501
        %v2781 = vpop.f32.mrb[0].mxu0
        %v2782 = vadd.f32 0.0, %v2781
        %v2783 = vpop.f32.mrb[0].mxu0
        %v2784 = vadd.f32 0.0, %v2783
        %2785 = vmatprep.mubr.f32.mxu0 %v508
        %2786 = vmatmul.mubr.f32.gmra.mrb[0].mxu0 %v507
        %v2787 = vpop.f32.mrb[0].mxu0
        %v2788 = vadd.f32 0.0, %v2787
        %v2789 = vpop.f32.mrb[0].mxu0
        %v2790 = vadd.f32 0.0, %v2789
        %2791 = vmatprep.mubr.f32.mxu0 %v514
        %2792 = vmatmul.mubr.f32.gmra.mrb[0].mxu0 %v513
        %v2793 = vpop.f32.mrb[0].mxu0
        %v2794 = vadd.f32 0.0, %v2793
        %v2795 = vpop.f32.mrb[0].mxu0
        %v2796 = vadd.f32 0.0, %v2795
        %2797 = vmatprep.mubr.f32.mxu0 %v520
        %2798 = vmatmul.mubr.f32.gmra.mrb[0].mxu0 %v519
        %v2799 = vpop.f32.mrb[0].mxu0
        %v2800 = vadd.f32 0.0, %v2799
        %v2801 = vpop.f32.mrb[0].mxu0
        %v2802 = vadd.f32 0.0, %v2801
        %2803 = vmatprep.mubr.f32.mxu0 %v526
        %2804 = vmatmul.mubr.f32.gmra.mrb[0].mxu0 %v525
        %v2805 = vpop.f32.mrb[0].mxu0
        %v2806 = vadd.f32 0.0, %v2805
        %v2807 = vpop.f32.mrb[0].mxu0
        %v2808 = vadd.f32 0.0, %v2807
        %2809 = vmatprep.mubr.f32.mxu0 %v532
        %2810 = vmatmul.mubr.f32.gmra.mrb[0].mxu0 %v531
        %v2811 = vpop.f32.mrb[0].mxu0
        %v2812 = vadd.f32 0.0, %v2811
        %v2813 = vpop.f32.mrb[0].mxu0
        %v2814 = vadd.f32 0.0, %v2813
        %2815 = vdwg.mxu0
        %2816 = vmatprep.subr.mxu0 %v2528
        %2817 = vmatpush1.msra.mxu0 %v2527
        %2818 = vmatprep.subr.mxu0 %v2530
        %2819 = vmatpush1.msra.mxu0 %v2529
        %2820 = vmatprep.subr.mxu0 %v2532
        %2821 = vmatpush1.msra.mxu0 %v2531
        %2822 = vmatprep.subr.mxu0 %v2534
        %2823 = vmatpush1.msra.mxu0 %v2533
        %2824 = vmatprep.subr.mxu0 %v2536
        %2825 = vmatpush1.msra.mxu0 %v2535
        %2826 = vmatprep.subr.mxu0 %v2538
        %2827 = vmatpush1.msra.mxu0 %v2537
        %2828 = vmatprep.subr.mxu0 %v2540
        %2829 = vmatpush1.msra.mxu0 %v2539
        %2830 = vmatprep.subr.mxu0 %v2542
        %2831 = vmatpush1.msra.mxu0 %v2541
        %2832 = vmatprep.subr.mxu0 %v2544
        %2833 = vmatpush1.msra.mxu0 %v2543
        %2834 = vmatprep.subr.mxu0 %v2546
        %2835 = vmatpush1.msra.mxu0 %v2545
        %2836 = vmatprep.subr.mxu0 %v2548
        %2837 = vmatpush1.msra.mxu0 %v2547
        %2838 = vmatprep.subr.mxu0 %v2550
        %2839 = vmatpush1.msra.mxu0 %v2549
        %2840 = vmatprep.subr.mxu0 %v2552
        %2841 = vmatpush1.msra.mxu0 %v2551
        %2842 = vmatprep.subr.mxu0 %v2554
        %2843 = vmatpush1.msra.mxu0 %v2553
        %2844 = vmatprep.subr.mxu0 %v2556
        %2845 = vmatpush1.msra.mxu0 %v2555
        %2846 = vmatprep.subr.mxu0 %v2558
        %2847 = vmatpush1.msra.mxu0 %v2557
        %2848 = vmatprep.subr.mxu0 %v2560
        %2849 = vmatpush1.msra.mxu0 %v2559
        %2850 = vmatprep.subr.mxu0 %v2562
        %2851 = vmatpush1.msra.mxu0 %v2561
        %2852 = vmatprep.subr.mxu0 %v2564
        %2853 = vmatpush1.msra.mxu0 %v2563
        %2854 = vmatprep.subr.mxu0 %v2566
        %2855 = vmatpush1.msra.mxu0 %v2565
        %2856 = vmatprep.subr.mxu0 %v2568
        %2857 = vmatpush1.msra.mxu0 %v2567
        %2858 = vmatprep.subr.mxu0 %v2570
        %2859 = vmatpush1.msra.mxu0 %v2569
        %2860 = vmatprep.subr.mxu0 %v2572
        %2861 = vmatpush1.msra.mxu0 %v2571
        %2862 = vmatprep.subr.mxu0 %v2574
        %2863 = vmatpush1.msra.mxu0 %v2573
        %2864 = vmatprep.subr.mxu0 %v2576
        %2865 = vmatpush1.msra.mxu0 %v2575
        %2866 = vmatprep.subr.mxu0 %v2578
        %2867 = vmatpush1.msra.mxu0 %v2577
        %2868 = vmatprep.subr.mxu0 %v2580
        %2869 = vmatpush1.msra.mxu0 %v2579
        %2870 = vmatprep.subr.mxu0 %v2582
        %2871 = vmatpush1.msra.mxu0 %v2581
        %2872 = vmatprep.subr.mxu0 %v2584
        %2873 = vmatpush1.msra.mxu0 %v2583
        %2874 = vmatprep.subr.mxu0 %v2586
        %2875 = vmatpush1.msra.mxu0 %v2585
        %2876 = vmatprep.subr.mxu0 %v2588
        %2877 = vmatpush1.msra.mxu0 %v2587
        %2878 = vmatprep.subr.mxu0 %v2590
        %2879 = vmatpush1.msra.mxu0 %v2589
        %2880 = vmatprep.mubr.f32.mxu0 %v444
        %2881 = vmatmul.mubr.f32.gmra.mrb[0].mxu0 %v443
        %v2882 = vpop.f32.mrb[0].mxu0
        %v2883 = vadd.f32 %v2722, %v2882
        %v2884 = vpop.f32.mrb[0].mxu0
        %v2885 = vadd.f32 %v2724, %v2884
        %2886 = vmatprep.mubr.f32.mxu0 %v450
        %2887 = vmatmul.mubr.f32.gmra.mrb[0].mxu0 %v449
        %v2888 = vpop.f32.mrb[0].mxu0
        %v2889 = vadd.f32 %v2728, %v2888
        %v2890 = vpop.f32.mrb[0].mxu0
        %v2891 = vadd.f32 %v2730, %v2890
        %2892 = vmatprep.mubr.f32.mxu0 %v456
        %2893 = vmatmul.mubr.f32.gmra.mrb[0].mxu0 %v455
        %v2894 = vpop.f32.mrb[0].mxu0
        %v2895 = vadd.f32 %v2734, %v2894
        %v2896 = vpop.f32.mrb[0].mxu0
        %v2897 = vadd.f32 %v2736, %v2896
        %2898 = vmatprep.mubr.f32.mxu0 %v462
        %2899 = vmatmul.mubr.f32.gmra.mrb[0].mxu0 %v461
        %v2900 = vpop.f32.mrb[0].mxu0
        %v2901 = vadd.f32 %v2740, %v2900
        %v2902 = vpop.f32.mrb[0].mxu0
        %v2903 = vadd.f32 %v2742, %v2902
        %2904 = vmatprep.mubr.f32.mxu0 %v468
        %2905 = vmatmul.mubr.f32.gmra.mrb[0].mxu0 %v467
        %v2906 = vpop.f32.mrb[0].mxu0
        %v2907 = vadd.f32 %v2746, %v2906
        %v2908 = vpop.f32.mrb[0].mxu0
        %v2909 = vadd.f32 %v2748, %v2908
        %2910 = vmatprep.mubr.f32.mxu0 %v474
        %2911 = vmatmul.mubr.f32.gmra.mrb[0].mxu0 %v473
        %v2912 = vpop.f32.mrb[0].mxu0
        %v2913 = vadd.f32 %v2752, %v2912
        %v2914 = vpop.f32.mrb[0].mxu0
        %v2915 = vadd.f32 %v2754, %v2914
        %2916 = vmatprep.mubr.f32.mxu0 %v480
        %2917 = vmatmul.mubr.f32.gmra.mrb[0].mxu0 %v479
        %v2918 = vpop.f32.mrb[0].mxu0
        %v2919 = vadd.f32 %v2758, %v2918
        %v2920 = vpop.f32.mrb[0].mxu0
        %v2921 = vadd.f32 %v2760, %v2920
        %2922 = vmatprep.mubr.f32.mxu0 %v486
        %2923 = vmatmul.mubr.f32.gmra.mrb[0].mxu0 %v485
        %v2924 = vpop.f32.mrb[0].mxu0
        %v2925 = vadd.f32 %v2764, %v2924
        %v2926 = vpop.f32.mrb[0].mxu0
        %v2927 = vadd.f32 %v2766, %v2926
        %2928 = vmatprep.mubr.f32.mxu0 %v492
        %2929 = vmatmul.mubr.f32.gmra.mrb[0].mxu0 %v491
        %v2930 = vpop.f32.mrb[0].mxu0
        %v2931 = vadd.f32 %v2770, %v2930
        %v2932 = vpop.f32.mrb[0].mxu0
        %v2933 = vadd.f32 %v2772, %v2932
        %2934 = vmatprep.mubr.f32.mxu0 %v498
        %2935 = vmatmul.mubr.f32.gmra.mrb[0].mxu0 %v497
        %v2936 = vpop.f32.mrb[0].mxu0
        %v2937 = vadd.f32 %v2776, %v2936
        %v2938 = vpop.f32.mrb[0].mxu0
        %v2939 = vadd.f32 %v2778, %v2938
        %2940 = vmatprep.mubr.f32.mxu0 %v504
        %2941 = vmatmul.mubr.f32.gmra.mrb[0].mxu0 %v503
        %v2942 = vpop.f32.mrb[0].mxu0
        %v2943 = vadd.f32 %v2782, %v2942
        %v2944 = vpop.f32.mrb[0].mxu0
        %v2945 = vadd.f32 %v2784, %v2944
        %2946 = vmatprep.mubr.f32.mxu0 %v510
        %2947 = vmatmul.mubr.f32.gmra.mrb[0].mxu0 %v509
        %v2948 = vpop.f32.mrb[0].mxu0
        %v2949 = vadd.f32 %v2788, %v2948
        %v2950 = vpop.f32.mrb[0].mxu0
        %v2951 = vadd.f32 %v2790, %v2950
        %2952 = vmatprep.mubr.f32.mxu0 %v516
        %2953 = vmatmul.mubr.f32.gmra.mrb[0].mxu0 %v515
        %v2954 = vpop.f32.mrb[0].mxu0
        %v2955 = vadd.f32 %v2794, %v2954
        %v2956 = vpop.f32.mrb[0].mxu0
        %v2957 = vadd.f32 %v2796, %v2956
        %2958 = vmatprep.mubr.f32.mxu0 %v522
        %2959 = vmatmul.mubr.f32.gmra.mrb[0].mxu0 %v521
        %v2960 = vpop.f32.mrb[0].mxu0
        %v2961 = vadd.f32 %v2800, %v2960
        %v2962 = vpop.f32.mrb[0].mxu0
        %v2963 = vadd.f32 %v2802, %v2962
        %2964 = vmatprep.mubr.f32.mxu0 %v528
        %2965 = vmatmul.mubr.f32.gmra.mrb[0].mxu0 %v527
        %v2966 = vpop.f32.mrb[0].mxu0
        %v2967 = vadd.f32 %v2806, %v2966
        %v2968 = vpop.f32.mrb[0].mxu0
        %v2969 = vadd.f32 %v2808, %v2968
        %2970 = vmatprep.mubr.f32.mxu0 %v534
        %2971 = vmatmul.mubr.f32.gmra.mrb[0].mxu0 %v533
        %v2972 = vpop.f32.mrb[0].mxu0
        %v2973 = vadd.f32 %v2812, %v2972
        %v2974 = vpop.f32.mrb[0].mxu0
        %v2975 = vadd.f32 %v2814, %v2974
        %2976 = vdwg.mxu0
        %2977 = vmatprep.subr.mxu0 %v2592
        %2978 = vmatpush1.msra.mxu0 %v2591
        %2979 = vmatprep.subr.mxu0 %v2594
        %2980 = vmatpush1.msra.mxu0 %v2593
        %2981 = vmatprep.subr.mxu0 %v2596
        %2982 = vmatpush1.msra.mxu0 %v2595
        %2983 = vmatprep.subr.mxu0 %v2598
        %2984 = vmatpush1.msra.mxu0 %v2597
        %2985 = vmatprep.subr.mxu0 %v2600
        %2986 = vmatpush1.msra.mxu0 %v2599
        %2987 = vmatprep.subr.mxu0 %v2602
        %2988 = vmatpush1.msra.mxu0 %v2601
        %2989 = vmatprep.subr.mxu0 %v2604
        %2990 = vmatpush1.msra.mxu0 %v2603
        %2991 = vmatprep.subr.mxu0 %v2606
        %2992 = vmatpush1.msra.mxu0 %v2605
        %2993 = vmatprep.subr.mxu0 %v2608
        %2994 = vmatpush1.msra.mxu0 %v2607
        %2995 = vmatprep.subr.mxu0 %v2610
        %2996 = vmatpush1.msra.mxu0 %v2609
        %2997 = vmatprep.subr.mxu0 %v2612
        %2998 = vmatpush1.msra.mxu0 %v2611
        %2999 = vmatprep.subr.mxu0 %v2614
        %3000 = vmatpush1.msra.mxu0 %v2613
        %3001 = vmatprep.subr.mxu0 %v2616
        %3002 = vmatpush1.msra.mxu0 %v2615
        %3003 = vmatprep.subr.mxu0 %v2618
        %3004 = vmatpush1.msra.mxu0 %v2617
        %3005 = vmatprep.subr.mxu0 %v2620
        %3006 = vmatpush1.msra.mxu0 %v2619
        %3007 = vmatprep.subr.mxu0 %v2622
        %3008 = vmatpush1.msra.mxu0 %v2621
        %3009 = vmatprep.subr.mxu0 %v2624
        %3010 = vmatpush1.msra.mxu0 %v2623
        %3011 = vmatprep.subr.mxu0 %v2626
        %3012 = vmatpush1.msra.mxu0 %v2625
        %3013 = vmatprep.subr.mxu0 %v2628
        %3014 = vmatpush1.msra.mxu0 %v2627
        %3015 = vmatprep.subr.mxu0 %v2630
        %3016 = vmatpush1.msra.mxu0 %v2629
        %3017 = vmatprep.subr.mxu0 %v2632
        %3018 = vmatpush1.msra.mxu0 %v2631
        %3019 = vmatprep.subr.mxu0 %v2634
        %3020 = vmatpush1.msra.mxu0 %v2633
        %3021 = vmatprep.subr.mxu0 %v2636
        %3022 = vmatpush1.msra.mxu0 %v2635
        %3023 = vmatprep.subr.mxu0 %v2638
        %3024 = vmatpush1.msra.mxu0 %v2637
        %3025 = vmatprep.subr.mxu0 %v2640
        %3026 = vmatpush1.msra.mxu0 %v2639
        %3027 = vmatprep.subr.mxu0 %v2642
        %3028 = vmatpush1.msra.mxu0 %v2641
        %3029 = vmatprep.subr.mxu0 %v2644
        %3030 = vmatpush1.msra.mxu0 %v2643
        %3031 = vmatprep.subr.mxu0 %v2646
        %3032 = vmatpush1.msra.mxu0 %v2645
        %3033 = vmatprep.subr.mxu0 %v2648
        %3034 = vmatpush1.msra.mxu0 %v2647
        %3035 = vmatprep.subr.mxu0 %v2650
        %3036 = vmatpush1.msra.mxu0 %v2649
        %3037 = vmatprep.subr.mxu0 %v2652
        %3038 = vmatpush1.msra.mxu0 %v2651
        %3039 = vmatprep.subr.mxu0 %v2654
        %3040 = vmatpush1.msra.mxu0 %v2653
        %3041 = vmatprep.mubr.f32.mxu0 %v446
        %3042 = vmatmul.mubr.f32.gmra.mrb[0].mxu0 %v445
        %v3043 = vpop.f32.mrb[0].mxu0
        %v3044 = vadd.f32 %v2883, %v3043
        %v3045 = vpop.f32.mrb[0].mxu0
        %v3046 = vadd.f32 %v2885, %v3045
        %3047 = vmatprep.mubr.f32.mxu0 %v452
        %3048 = vmatmul.mubr.f32.gmra.mrb[0].mxu0 %v451
        %v3049 = vpop.f32.mrb[0].mxu0
        %v3050 = vadd.f32 %v2889, %v3049
        %v3051 = vpop.f32.mrb[0].mxu0
        %v3052 = vadd.f32 %v2891, %v3051
        %3053 = vmatprep.mubr.f32.mxu0 %v458
        %3054 = vmatmul.mubr.f32.gmra.mrb[0].mxu0 %v457
        %v3055 = vpop.f32.mrb[0].mxu0
        %v3056 = vadd.f32 %v2895, %v3055
        %v3057 = vpop.f32.mrb[0].mxu0
        %v3058 = vadd.f32 %v2897, %v3057
        %3059 = vmatprep.mubr.f32.mxu0 %v464
        %3060 = vmatmul.mubr.f32.gmra.mrb[0].mxu0 %v463
        %v3061 = vpop.f32.mrb[0].mxu0
        %v3062 = vadd.f32 %v2901, %v3061
        %v3063 = vpop.f32.mrb[0].mxu0
        %v3064 = vadd.f32 %v2903, %v3063
        %3065 = vmatprep.mubr.f32.mxu0 %v470
        %3066 = vmatmul.mubr.f32.gmra.mrb[0].mxu0 %v469
        %v3067 = vpop.f32.mrb[0].mxu0
        %v3068 = vadd.f32 %v2907, %v3067
        %v3069 = vpop.f32.mrb[0].mxu0
        %v3070 = vadd.f32 %v2909, %v3069
        %3071 = vmatprep.mubr.f32.mxu0 %v476
        %3072 = vmatmul.mubr.f32.gmra.mrb[0].mxu0 %v475
        %v3073 = vpop.f32.mrb[0].mxu0
        %v3074 = vadd.f32 %v2913, %v3073
        %v3075 = vpop.f32.mrb[0].mxu0
        %v3076 = vadd.f32 %v2915, %v3075
        %3077 = vmatprep.mubr.f32.mxu0 %v482
        %3078 = vmatmul.mubr.f32.gmra.mrb[0].mxu0 %v481
        %v3079 = vpop.f32.mrb[0].mxu0
        %v3080 = vadd.f32 %v2919, %v3079
        %v3081 = vpop.f32.mrb[0].mxu0
        %v3082 = vadd.f32 %v2921, %v3081
        %3083 = vmatprep.mubr.f32.mxu0 %v488
        %3084 = vmatmul.mubr.f32.gmra.mrb[0].mxu0 %v487
        %v3085 = vpop.f32.mrb[0].mxu0
        %v3086 = vadd.f32 %v2925, %v3085
        %v3087 = vpop.f32.mrb[0].mxu0
        %v3088 = vadd.f32 %v2927, %v3087
        %3089 = vmatprep.mubr.f32.mxu0 %v494
        %3090 = vmatmul.mubr.f32.gmra.mrb[0].mxu0 %v493
        %v3091 = vpop.f32.mrb[0].mxu0
        %v3092 = vadd.f32 %v2931, %v3091
        %v3093 = vpop.f32.mrb[0].mxu0
        %v3094 = vadd.f32 %v2933, %v3093
        %3095 = vmatprep.mubr.f32.mxu0 %v500
        %3096 = vmatmul.mubr.f32.gmra.mrb[0].mxu0 %v499
        %v3097 = vpop.f32.mrb[0].mxu0
        %v3098 = vadd.f32 %v2937, %v3097
        %v3099 = vpop.f32.mrb[0].mxu0
        %v3100 = vadd.f32 %v2939, %v3099
        %3101 = vmatprep.mubr.f32.mxu0 %v506
        %3102 = vmatmul.mubr.f32.gmra.mrb[0].mxu0 %v505
        %v3103 = vpop.f32.mrb[0].mxu0
        %v3104 = vadd.f32 %v2943, %v3103
        %v3105 = vpop.f32.mrb[0].mxu0
        %v3106 = vadd.f32 %v2945, %v3105
        %3107 = vmatprep.mubr.f32.mxu0 %v512
        %3108 = vmatmul.mubr.f32.gmra.mrb[0].mxu0 %v511
        %v3109 = vpop.f32.mrb[0].mxu0
        %v3110 = vadd.f32 %v2949, %v3109
        %v3111 = vpop.f32.mrb[0].mxu0
        %v3112 = vadd.f32 %v2951, %v3111
        %3113 = vmatprep.mubr.f32.mxu0 %v518
        %3114 = vmatmul.mubr.f32.gmra.mrb[0].mxu0 %v517
        %v3115 = vpop.f32.mrb[0].mxu0
        %v3116 = vadd.f32 %v2955, %v3115
        %v3117 = vpop.f32.mrb[0].mxu0
        %v3118 = vadd.f32 %v2957, %v3117
        %3119 = vmatprep.mubr.f32.mxu0 %v524
        %3120 = vmatmul.mubr.f32.gmra.mrb[0].mxu0 %v523
        %v3121 = vpop.f32.mrb[0].mxu0
        %v3122 = vadd.f32 %v2961, %v3121
        %v3123 = vpop.f32.mrb[0].mxu0
        %v3124 = vadd.f32 %v2963, %v3123
        %3125 = vmatprep.mubr.f32.mxu0 %v530
        %3126 = vmatmul.mubr.f32.gmra.mrb[0].mxu0 %v529
        %v3127 = vpop.f32.mrb[0].mxu0
        %v3128 = vadd.f32 %v2967, %v3127
        %v3129 = vpop.f32.mrb[0].mxu0
        %v3130 = vadd.f32 %v2969, %v3129
        %3131 = vmatprep.mubr.f32.mxu0 %v536
        %3132 = vmatmul.mubr.f32.gmra.mrb[0].mxu0 %v535
        %v3133 = vpop.f32.mrb[0].mxu0
        %v3134 = vadd.f32 %v2973, %v3133
        %v3135 = vpop.f32.mrb[0].mxu0
        %v3136 = vadd.f32 %v2975, %v3135
        %3137 = vdwg.mxu0
        %3138 = vmatprep.subr.mxu0 %v2400
        %3139 = vmatpush1.msra.mxu0 %v2399
        %3140 = vmatprep.subr.mxu0 %v2402
        %3141 = vmatpush1.msra.mxu0 %v2401
        %3142 = vmatprep.subr.mxu0 %v2404
        %3143 = vmatpush1.msra.mxu0 %v2403
        %3144 = vmatprep.subr.mxu0 %v2406
        %3145 = vmatpush1.msra.mxu0 %v2405
        %3146 = vmatprep.subr.mxu0 %v2408
        %3147 = vmatpush1.msra.mxu0 %v2407
        %3148 = vmatprep.subr.mxu0 %v2410
        %3149 = vmatpush1.msra.mxu0 %v2409
        %3150 = vmatprep.subr.mxu0 %v2412
        %3151 = vmatpush1.msra.mxu0 %v2411
        %3152 = vmatprep.subr.mxu0 %v2414
        %3153 = vmatpush1.msra.mxu0 %v2413
        %3154 = vmatprep.subr.mxu0 %v2416
        %3155 = vmatpush1.msra.mxu0 %v2415
        %3156 = vmatprep.subr.mxu0 %v2418
        %3157 = vmatpush1.msra.mxu0 %v2417
        %3158 = vmatprep.subr.mxu0 %v2420
        %3159 = vmatpush1.msra.mxu0 %v2419
        %3160 = vmatprep.subr.mxu0 %v2422
        %3161 = vmatpush1.msra.mxu0 %v2421
        %3162 = vmatprep.subr.mxu0 %v2424
        %3163 = vmatpush1.msra.mxu0 %v2423
        %3164 = vmatprep.subr.mxu0 %v2426
        %3165 = vmatpush1.msra.mxu0 %v2425
        %3166 = vmatprep.subr.mxu0 %v2428
        %3167 = vmatpush1.msra.mxu0 %v2427
        %3168 = vmatprep.subr.mxu0 %v2430
        %3169 = vmatpush1.msra.mxu0 %v2429
        %3170 = vmatprep.subr.mxu0 %v2432
        %3171 = vmatpush1.msra.mxu0 %v2431
        %3172 = vmatprep.subr.mxu0 %v2434
        %3173 = vmatpush1.msra.mxu0 %v2433
        %3174 = vmatprep.subr.mxu0 %v2436
        %3175 = vmatpush1.msra.mxu0 %v2435
        %3176 = vmatprep.subr.mxu0 %v2438
        %3177 = vmatpush1.msra.mxu0 %v2437
        %3178 = vmatprep.subr.mxu0 %v2440
        %3179 = vmatpush1.msra.mxu0 %v2439
        %3180 = vmatprep.subr.mxu0 %v2442
        %3181 = vmatpush1.msra.mxu0 %v2441
        %3182 = vmatprep.subr.mxu0 %v2444
        %3183 = vmatpush1.msra.mxu0 %v2443
        %3184 = vmatprep.subr.mxu0 %v2446
        %3185 = vmatpush1.msra.mxu0 %v2445
        %3186 = vmatprep.subr.mxu0 %v2448
        %3187 = vmatpush1.msra.mxu0 %v2447
        %3188 = vmatprep.subr.mxu0 %v2450
        %3189 = vmatpush1.msra.mxu0 %v2449
        %3190 = vmatprep.subr.mxu0 %v2452
        %3191 = vmatpush1.msra.mxu0 %v2451
        %3192 = vmatprep.subr.mxu0 %v2454
        %3193 = vmatpush1.msra.mxu0 %v2453
        %3194 = vmatprep.subr.mxu0 %v2456
        %3195 = vmatpush1.msra.mxu0 %v2455
        %3196 = vmatprep.subr.mxu0 %v2458
        %3197 = vmatpush1.msra.mxu0 %v2457
        %3198 = vmatprep.subr.mxu0 %v2460
        %3199 = vmatpush1.msra.mxu0 %v2459
        %3200 = vmatprep.subr.mxu0 %v2462
        %3201 = vmatpush1.msra.mxu0 %v2461
        %3202 = vmatprep.mubr.f32.mxu0 %v2368
        %3203 = vmatmul.mubr.f32.gmra.mrb[0].mxu0 %v2367
        %v3204 = vpop.f32.mrb[0].mxu0
        %v3205 = vadd.f32 %v3044, %v3204
        %v3206 = vpop.f32.mrb[0].mxu0
        %v3207 = vadd.f32 %v3046, %v3206
        %3208 = vmatprep.mubr.f32.mxu0 %v2370
        %3209 = vmatmul.mubr.f32.gmra.mrb[0].mxu0 %v2369
        %v3210 = vpop.f32.mrb[0].mxu0
        %v3211 = vadd.f32 %v3050, %v3210
        %v3212 = vpop.f32.mrb[0].mxu0
        %v3213 = vadd.f32 %v3052, %v3212
        %3214 = vmatprep.mubr.f32.mxu0 %v2372
        %3215 = vmatmul.mubr.f32.gmra.mrb[0].mxu0 %v2371
        %v3216 = vpop.f32.mrb[0].mxu0
        %v3217 = vadd.f32 %v3056, %v3216
        %v3218 = vpop.f32.mrb[0].mxu0
        %v3219 = vadd.f32 %v3058, %v3218
        %3220 = vmatprep.mubr.f32.mxu0 %v2374
        %3221 = vmatmul.mubr.f32.gmra.mrb[0].mxu0 %v2373
        %v3222 = vpop.f32.mrb[0].mxu0
        %v3223 = vadd.f32 %v3062, %v3222
        %v3224 = vpop.f32.mrb[0].mxu0
        %v3225 = vadd.f32 %v3064, %v3224
        %3226 = vmatprep.mubr.f32.mxu0 %v2376
        %3227 = vmatmul.mubr.f32.gmra.mrb[0].mxu0 %v2375
        %v3228 = vpop.f32.mrb[0].mxu0
        %v3229 = vadd.f32 %v3068, %v3228
        %v3230 = vpop.f32.mrb[0].mxu0
        %v3231 = vadd.f32 %v3070, %v3230
        %3232 = vmatprep.mubr.f32.mxu0 %v2378
        %3233 = vmatmul.mubr.f32.gmra.mrb[0].mxu0 %v2377
        %v3234 = vpop.f32.mrb[0].mxu0
        %v3235 = vadd.f32 %v3074, %v3234
        %v3236 = vpop.f32.mrb[0].mxu0
        %v3237 = vadd.f32 %v3076, %v3236
        %3238 = vmatprep.mubr.f32.mxu0 %v2380
        %3239 = vmatmul.mubr.f32.gmra.mrb[0].mxu0 %v2379
        %v3240 = vpop.f32.mrb[0].mxu0
        %v3241 = vadd.f32 %v3080, %v3240
        %v3242 = vpop.f32.mrb[0].mxu0
        %v3243 = vadd.f32 %v3082, %v3242
        %3244 = vmatprep.mubr.f32.mxu0 %v2382
        %3245 = vmatmul.mubr.f32.gmra.mrb[0].mxu0 %v2381
        %v3246 = vpop.f32.mrb[0].mxu0
        %v3247 = vadd.f32 %v3086, %v3246
        %v3248 = vpop.f32.mrb[0].mxu0
        %v3249 = vadd.f32 %v3088, %v3248
        %3250 = vmatprep.mubr.f32.mxu0 %v2384
        %3251 = vmatmul.mubr.f32.gmra.mrb[0].mxu0 %v2383
        %v3252 = vpop.f32.mrb[0].mxu0
        %v3253 = vadd.f32 %v3092, %v3252
        %v3254 = vpop.f32.mrb[0].mxu0
        %v3255 = vadd.f32 %v3094, %v3254
        %3256 = vmatprep.mubr.f32.mxu0 %v2386
        %3257 = vmatmul.mubr.f32.gmra.mrb[0].mxu0 %v2385
        %v3258 = vpop.f32.mrb[0].mxu0
        %v3259 = vadd.f32 %v3098, %v3258
        %v3260 = vpop.f32.mrb[0].mxu0
        %v3261 = vadd.f32 %v3100, %v3260
        %3262 = vmatprep.mubr.f32.mxu0 %v2388
        %3263 = vmatmul.mubr.f32.gmra.mrb[0].mxu0 %v2387
        %v3264 = vpop.f32.mrb[0].mxu0
        %v3265 = vadd.f32 %v3104, %v3264
        %v3266 = vpop.f32.mrb[0].mxu0
        %v3267 = vadd.f32 %v3106, %v3266
        %3268 = vmatprep.mubr.f32.mxu0 %v2390
        %3269 = vmatmul.mubr.f32.gmra.mrb[0].mxu0 %v2389
        %v3270 = vpop.f32.mrb[0].mxu0
        %v3271 = vadd.f32 %v3110, %v3270
        %v3272 = vpop.f32.mrb[0].mxu0
        %v3273 = vadd.f32 %v3112, %v3272
        %3274 = vmatprep.mubr.f32.mxu0 %v2392
        %3275 = vmatmul.mubr.f32.gmra.mrb[0].mxu0 %v2391
        %v3276 = vpop.f32.mrb[0].mxu0
        %v3277 = vadd.f32 %v3116, %v3276
        %v3278 = vpop.f32.mrb[0].mxu0
        %v3279 = vadd.f32 %v3118, %v3278
        %3280 = vmatprep.mubr.f32.mxu0 %v2394
        %3281 = vmatmul.mubr.f32.gmra.mrb[0].mxu0 %v2393
        %v3282 = vpop.f32.mrb[0].mxu0
        %v3283 = vadd.f32 %v3122, %v3282
        %v3284 = vpop.f32.mrb[0].mxu0
        %v3285 = vadd.f32 %v3124, %v3284
        %3286 = vmatprep.mubr.f32.mxu0 %v2396
        %3287 = vmatmul.mubr.f32.gmra.mrb[0].mxu0 %v2395
        %v3288 = vpop.f32.mrb[0].mxu0
        %v3289 = vadd.f32 %v3128, %v3288
        %v3290 = vpop.f32.mrb[0].mxu0
        %v3291 = vadd.f32 %v3130, %v3290
        %3292 = vmatprep.mubr.f32.mxu0 %v2398
        %3293 = vmatmul.mubr.f32.gmra.mrb[0].mxu0 %v2397
        %v3294 = vpop.f32.mrb[0].mxu0
        %v3295 = vadd.f32 %v3134, %v3294
        %v3296 = vpop.f32.mrb[0].mxu0
        %v3297 = vadd.f32 %v3136, %v3296
        %3298 = vdwg.mxu0
        %v3299 = vld [vmem:[#allocation13] sm:$0xff]
        %v3300 = vld [vmem:[#allocation13 + $0x8] sm:$0xff]
        %v3301 = vld [vmem:[#allocation13 + $0x10] sm:$0xff]
        %v3302 = vld [vmem:[#allocation13 + $0x18] sm:$0xff]
        %v3303 = vld [vmem:[#allocation13 + $0x20] sm:$0xff]
        %v3304 = vld [vmem:[#allocation13 + $0x28] sm:$0xff]
        %v3305 = vld [vmem:[#allocation13 + $0x30] sm:$0xff]
        %v3306 = vld [vmem:[#allocation13 + $0x38] sm:$0xff]
        %v3307 = vld [vmem:[#allocation13 + $0x40] sm:$0xff]
        %v3308 = vld [vmem:[#allocation13 + $0x48] sm:$0xff]
        %v3309 = vld [vmem:[#allocation13 + $0x50] sm:$0xff]
        %v3310 = vld [vmem:[#allocation13 + $0x58] sm:$0xff]
        %v3311 = vld [vmem:[#allocation13 + $0x60] sm:$0xff]
        %v3312 = vld [vmem:[#allocation13 + $0x68] sm:$0xff]
        %v3313 = vld [vmem:[#allocation13 + $0x70] sm:$0xff]
        %v3314 = vld [vmem:[#allocation13 + $0x78] sm:$0xff]
        %v3315 = vld [vmem:[#allocation13 + $0x80] sm:$0xff]
        %v3316 = vld [vmem:[#allocation13 + $0x88] sm:$0xff]
        %v3317 = vld [vmem:[#allocation13 + $0x90] sm:$0xff]
        %v3318 = vld [vmem:[#allocation13 + $0x98] sm:$0xff]
        %v3319 = vld [vmem:[#allocation13 + $0xa0] sm:$0xff]
        %v3320 = vld [vmem:[#allocation13 + $0xa8] sm:$0xff]
        %v3321 = vld [vmem:[#allocation13 + $0xb0] sm:$0xff]
        %v3322 = vld [vmem:[#allocation13 + $0xb8] sm:$0xff]
        %v3323 = vld [vmem:[#allocation13 + $0xc0] sm:$0xff]
        %v3324 = vld [vmem:[#allocation13 + $0xc8] sm:$0xff]
        %v3325 = vld [vmem:[#allocation13 + $0xd0] sm:$0xff]
        %v3326 = vld [vmem:[#allocation13 + $0xd8] sm:$0xff]
        %v3327 = vld [vmem:[#allocation13 + $0xe0] sm:$0xff]
        %v3328 = vld [vmem:[#allocation13 + $0xe8] sm:$0xff]
        %v3329 = vld [vmem:[#allocation13 + $0xf0] sm:$0xff]
        %v3330 = vld [vmem:[#allocation13 + $0xf8] sm:$0xff]
        %v3331 = vld [vmem:[#allocation13 + $0x100] sm:$0xff]
        %v3332 = vld [vmem:[#allocation13 + $0x108] sm:$0xff]
        %v3333 = vld [vmem:[#allocation13 + $0x110] sm:$0xff]
        %v3334 = vld [vmem:[#allocation13 + $0x118] sm:$0xff]
        %v3335 = vld [vmem:[#allocation13 + $0x120] sm:$0xff]
        %v3336 = vld [vmem:[#allocation13 + $0x128] sm:$0xff]
        %v3337 = vld [vmem:[#allocation13 + $0x130] sm:$0xff]
        %v3338 = vld [vmem:[#allocation13 + $0x138] sm:$0xff]
        %v3339 = vld [vmem:[#allocation13 + $0x140] sm:$0xff]
        %v3340 = vld [vmem:[#allocation13 + $0x148] sm:$0xff]
        %v3341 = vld [vmem:[#allocation13 + $0x150] sm:$0xff]
        %v3342 = vld [vmem:[#allocation13 + $0x158] sm:$0xff]
        %v3343 = vld [vmem:[#allocation13 + $0x160] sm:$0xff]
        %v3344 = vld [vmem:[#allocation13 + $0x168] sm:$0xff]
        %v3345 = vld [vmem:[#allocation13 + $0x170] sm:$0xff]
        %v3346 = vld [vmem:[#allocation13 + $0x178] sm:$0xff]
        %v3347 = vld [vmem:[#allocation13 + $0x180] sm:$0xff]
        %v3348 = vld [vmem:[#allocation13 + $0x188] sm:$0xff]
        %v3349 = vld [vmem:[#allocation13 + $0x190] sm:$0xff]
        %v3350 = vld [vmem:[#allocation13 + $0x198] sm:$0xff]
        %v3351 = vld [vmem:[#allocation13 + $0x1a0] sm:$0xff]
        %v3352 = vld [vmem:[#allocation13 + $0x1a8] sm:$0xff]
        %v3353 = vld [vmem:[#allocation13 + $0x1b0] sm:$0xff]
        %v3354 = vld [vmem:[#allocation13 + $0x1b8] sm:$0xff]
        %v3355 = vld [vmem:[#allocation13 + $0x1c0] sm:$0xff]
        %v3356 = vld [vmem:[#allocation13 + $0x1c8] sm:$0xff]
        %v3357 = vld [vmem:[#allocation13 + $0x1d0] sm:$0xff]
        %v3358 = vld [vmem:[#allocation13 + $0x1d8] sm:$0xff]
        %v3359 = vld [vmem:[#allocation13 + $0x1e0] sm:$0xff]
        %v3360 = vld [vmem:[#allocation13 + $0x1e8] sm:$0xff]
        %v3361 = vld [vmem:[#allocation13 + $0x1f0] sm:$0xff]
        %v3362 = vld [vmem:[#allocation13 + $0x1f8] sm:$0xff]
        %v3363 = vld [vmem:[#allocation13 + $0x200] sm:$0xff]
        %v3364 = vld [vmem:[#allocation13 + $0x208] sm:$0xff]
        %v3365 = vld [vmem:[#allocation13 + $0x210] sm:$0xff]
        %v3366 = vld [vmem:[#allocation13 + $0x218] sm:$0xff]
        %v3367 = vld [vmem:[#allocation13 + $0x220] sm:$0xff]
        %v3368 = vld [vmem:[#allocation13 + $0x228] sm:$0xff]
        %v3369 = vld [vmem:[#allocation13 + $0x230] sm:$0xff]
        %v3370 = vld [vmem:[#allocation13 + $0x238] sm:$0xff]
        %v3371 = vld [vmem:[#allocation13 + $0x240] sm:$0xff]
        %v3372 = vld [vmem:[#allocation13 + $0x248] sm:$0xff]
        %v3373 = vld [vmem:[#allocation13 + $0x250] sm:$0xff]
        %v3374 = vld [vmem:[#allocation13 + $0x258] sm:$0xff]
        %v3375 = vld [vmem:[#allocation13 + $0x260] sm:$0xff]
        %v3376 = vld [vmem:[#allocation13 + $0x268] sm:$0xff]
        %v3377 = vld [vmem:[#allocation13 + $0x270] sm:$0xff]
        %v3378 = vld [vmem:[#allocation13 + $0x278] sm:$0xff]
        %v3379 = vld [vmem:[#allocation13 + $0x280] sm:$0xff]
        %v3380 = vld [vmem:[#allocation13 + $0x288] sm:$0xff]
        %v3381 = vld [vmem:[#allocation13 + $0x290] sm:$0xff]
        %v3382 = vld [vmem:[#allocation13 + $0x298] sm:$0xff]
        %v3383 = vld [vmem:[#allocation13 + $0x2a0] sm:$0xff]
        %v3384 = vld [vmem:[#allocation13 + $0x2a8] sm:$0xff]
        %v3385 = vld [vmem:[#allocation13 + $0x2b0] sm:$0xff]
        %v3386 = vld [vmem:[#allocation13 + $0x2b8] sm:$0xff]
        %v3387 = vld [vmem:[#allocation13 + $0x2c0] sm:$0xff]
        %v3388 = vld [vmem:[#allocation13 + $0x2c8] sm:$0xff]
        %v3389 = vld [vmem:[#allocation13 + $0x2d0] sm:$0xff]
        %v3390 = vld [vmem:[#allocation13 + $0x2d8] sm:$0xff]
        %v3391 = vld [vmem:[#allocation13 + $0x2e0] sm:$0xff]
        %v3392 = vld [vmem:[#allocation13 + $0x2e8] sm:$0xff]
        %v3393 = vld [vmem:[#allocation13 + $0x2f0] sm:$0xff]
        %v3394 = vld [vmem:[#allocation13 + $0x2f8] sm:$0xff]
        %v3395 = vld [vmem:[#allocation13 + $0x300] sm:$0xff]
        %v3396 = vld [vmem:[#allocation13 + $0x308] sm:$0xff]
        %v3397 = vld [vmem:[#allocation13 + $0x310] sm:$0xff]
        %v3398 = vld [vmem:[#allocation13 + $0x318] sm:$0xff]
        %v3399 = vld [vmem:[#allocation13 + $0x320] sm:$0xff]
        %v3400 = vld [vmem:[#allocation13 + $0x328] sm:$0xff]
        %v3401 = vld [vmem:[#allocation13 + $0x330] sm:$0xff]
        %v3402 = vld [vmem:[#allocation13 + $0x338] sm:$0xff]
        %v3403 = vld [vmem:[#allocation13 + $0x340] sm:$0xff]
        %v3404 = vld [vmem:[#allocation13 + $0x348] sm:$0xff]
        %v3405 = vld [vmem:[#allocation13 + $0x350] sm:$0xff]
        %v3406 = vld [vmem:[#allocation13 + $0x358] sm:$0xff]
        %v3407 = vld [vmem:[#allocation13 + $0x360] sm:$0xff]
        %v3408 = vld [vmem:[#allocation13 + $0x368] sm:$0xff]
        %v3409 = vld [vmem:[#allocation13 + $0x370] sm:$0xff]
        %v3410 = vld [vmem:[#allocation13 + $0x378] sm:$0xff]
        %v3411 = vld [vmem:[#allocation13 + $0x380] sm:$0xff]
        %v3412 = vld [vmem:[#allocation13 + $0x388] sm:$0xff]
        %v3413 = vld [vmem:[#allocation13 + $0x390] sm:$0xff]
        %v3414 = vld [vmem:[#allocation13 + $0x398] sm:$0xff]
        %v3415 = vld [vmem:[#allocation13 + $0x3a0] sm:$0xff]
        %v3416 = vld [vmem:[#allocation13 + $0x3a8] sm:$0xff]
        %v3417 = vld [vmem:[#allocation13 + $0x3b0] sm:$0xff]
        %v3418 = vld [vmem:[#allocation13 + $0x3b8] sm:$0xff]
        %v3419 = vld [vmem:[#allocation13 + $0x3c0] sm:$0xff]
        %v3420 = vld [vmem:[#allocation13 + $0x3c8] sm:$0xff]
        %v3421 = vld [vmem:[#allocation13 + $0x3d0] sm:$0xff]
        %v3422 = vld [vmem:[#allocation13 + $0x3d8] sm:$0xff]
        %v3423 = vld [vmem:[#allocation13 + $0x3e0] sm:$0xff]
        %v3424 = vld [vmem:[#allocation13 + $0x3e8] sm:$0xff]
        %v3425 = vld [vmem:[#allocation13 + $0x3f0] sm:$0xff]
        %v3426 = vld [vmem:[#allocation13 + $0x3f8] sm:$0xff]
        %v3427 = vld [vmem:[#allocation13 + $0x400] sm:$0xff]
        %v3428 = vld [vmem:[#allocation13 + $0x408] sm:$0xff]
        %v3429 = vld [vmem:[#allocation13 + $0x410] sm:$0xff]
        %v3430 = vld [vmem:[#allocation13 + $0x418] sm:$0xff]
        %v3431 = vld [vmem:[#allocation13 + $0x420] sm:$0xff]
        %v3432 = vld [vmem:[#allocation13 + $0x428] sm:$0xff]
        %v3433 = vld [vmem:[#allocation13 + $0x430] sm:$0xff]
        %v3434 = vld [vmem:[#allocation13 + $0x438] sm:$0xff]
        %v3435 = vld [vmem:[#allocation13 + $0x440] sm:$0xff]
        %v3436 = vld [vmem:[#allocation13 + $0x448] sm:$0xff]
        %v3437 = vld [vmem:[#allocation13 + $0x450] sm:$0xff]
        %v3438 = vld [vmem:[#allocation13 + $0x458] sm:$0xff]
        %v3439 = vld [vmem:[#allocation13 + $0x460] sm:$0xff]
        %v3440 = vld [vmem:[#allocation13 + $0x468] sm:$0xff]
        %v3441 = vld [vmem:[#allocation13 + $0x470] sm:$0xff]
        %v3442 = vld [vmem:[#allocation13 + $0x478] sm:$0xff]
        %v3443 = vld [vmem:[#allocation13 + $0x480] sm:$0xff]
        %v3444 = vld [vmem:[#allocation13 + $0x488] sm:$0xff]
        %v3445 = vld [vmem:[#allocation13 + $0x490] sm:$0xff]
        %v3446 = vld [vmem:[#allocation13 + $0x498] sm:$0xff]
        %v3447 = vld [vmem:[#allocation13 + $0x4a0] sm:$0xff]
        %v3448 = vld [vmem:[#allocation13 + $0x4a8] sm:$0xff]
        %v3449 = vld [vmem:[#allocation13 + $0x4b0] sm:$0xff]
        %v3450 = vld [vmem:[#allocation13 + $0x4b8] sm:$0xff]
        %v3451 = vld [vmem:[#allocation13 + $0x4c0] sm:$0xff]
        %v3452 = vld [vmem:[#allocation13 + $0x4c8] sm:$0xff]
        %v3453 = vld [vmem:[#allocation13 + $0x4d0] sm:$0xff]
        %v3454 = vld [vmem:[#allocation13 + $0x4d8] sm:$0xff]
        %v3455 = vld [vmem:[#allocation13 + $0x4e0] sm:$0xff]
        %v3456 = vld [vmem:[#allocation13 + $0x4e8] sm:$0xff]
        %v3457 = vld [vmem:[#allocation13 + $0x4f0] sm:$0xff]
        %v3458 = vld [vmem:[#allocation13 + $0x4f8] sm:$0xff]
        %v3459 = vld [vmem:[#allocation13 + $0x500] sm:$0xff]
        %v3460 = vld [vmem:[#allocation13 + $0x508] sm:$0xff]
        %v3461 = vld [vmem:[#allocation13 + $0x510] sm:$0xff]
        %v3462 = vld [vmem:[#allocation13 + $0x518] sm:$0xff]
        %v3463 = vld [vmem:[#allocation13 + $0x520] sm:$0xff]
        %v3464 = vld [vmem:[#allocation13 + $0x528] sm:$0xff]
        %v3465 = vld [vmem:[#allocation13 + $0x530] sm:$0xff]
        %v3466 = vld [vmem:[#allocation13 + $0x538] sm:$0xff]
        %v3467 = vld [vmem:[#allocation13 + $0x540] sm:$0xff]
        %v3468 = vld [vmem:[#allocation13 + $0x548] sm:$0xff]
        %v3469 = vld [vmem:[#allocation13 + $0x550] sm:$0xff]
        %v3470 = vld [vmem:[#allocation13 + $0x558] sm:$0xff]
        %v3471 = vld [vmem:[#allocation13 + $0x560] sm:$0xff]
        %v3472 = vld [vmem:[#allocation13 + $0x568] sm:$0xff]
        %v3473 = vld [vmem:[#allocation13 + $0x570] sm:$0xff]
        %v3474 = vld [vmem:[#allocation13 + $0x578] sm:$0xff]
        %v3475 = vld [vmem:[#allocation13 + $0x580] sm:$0xff]
        %v3476 = vld [vmem:[#allocation13 + $0x588] sm:$0xff]
        %v3477 = vld [vmem:[#allocation13 + $0x590] sm:$0xff]
        %v3478 = vld [vmem:[#allocation13 + $0x598] sm:$0xff]
        %v3479 = vld [vmem:[#allocation13 + $0x5a0] sm:$0xff]
        %v3480 = vld [vmem:[#allocation13 + $0x5a8] sm:$0xff]
        %v3481 = vld [vmem:[#allocation13 + $0x5b0] sm:$0xff]
        %v3482 = vld [vmem:[#allocation13 + $0x5b8] sm:$0xff]
        %v3483 = vld [vmem:[#allocation13 + $0x5c0] sm:$0xff]
        %v3484 = vld [vmem:[#allocation13 + $0x5c8] sm:$0xff]
        %v3485 = vld [vmem:[#allocation13 + $0x5d0] sm:$0xff]
        %v3486 = vld [vmem:[#allocation13 + $0x5d8] sm:$0xff]
        %v3487 = vld [vmem:[#allocation13 + $0x5e0] sm:$0xff]
        %v3488 = vld [vmem:[#allocation13 + $0x5e8] sm:$0xff]
        %v3489 = vld [vmem:[#allocation13 + $0x5f0] sm:$0xff]
        %v3490 = vld [vmem:[#allocation13 + $0x5f8] sm:$0xff]
        %3491 = vmatprep.subr.mxu0 %v3300
        %3492 = vmatpush1.msra.mxu0 %v3299
        %3493 = vmatprep.subr.mxu0 %v3302
        %3494 = vmatpush1.msra.mxu0 %v3301
        %3495 = vmatprep.subr.mxu0 %v3304
        %3496 = vmatpush1.msra.mxu0 %v3303
        %3497 = vmatprep.subr.mxu0 %v3306
        %3498 = vmatpush1.msra.mxu0 %v3305
        %3499 = vmatprep.subr.mxu0 %v3308
        %3500 = vmatpush1.msra.mxu0 %v3307
        %3501 = vmatprep.subr.mxu0 %v3310
        %3502 = vmatpush1.msra.mxu0 %v3309
        %3503 = vmatprep.subr.mxu0 %v3312
        %3504 = vmatpush1.msra.mxu0 %v3311
        %3505 = vmatprep.subr.mxu0 %v3314
        %3506 = vmatpush1.msra.mxu0 %v3313
        %3507 = vmatprep.subr.mxu0 %v3316
        %3508 = vmatpush1.msra.mxu0 %v3315
        %3509 = vmatprep.subr.mxu0 %v3318
        %3510 = vmatpush1.msra.mxu0 %v3317
        %3511 = vmatprep.subr.mxu0 %v3320
        %3512 = vmatpush1.msra.mxu0 %v3319
        %3513 = vmatprep.subr.mxu0 %v3322
        %3514 = vmatpush1.msra.mxu0 %v3321
        %3515 = vmatprep.subr.mxu0 %v3324
        %3516 = vmatpush1.msra.mxu0 %v3323
        %3517 = vmatprep.subr.mxu0 %v3326
        %3518 = vmatpush1.msra.mxu0 %v3325
        %3519 = vmatprep.subr.mxu0 %v3328
        %3520 = vmatpush1.msra.mxu0 %v3327
        %3521 = vmatprep.subr.mxu0 %v3330
        %3522 = vmatpush1.msra.mxu0 %v3329
        %3523 = vmatprep.subr.mxu0 %v3332
        %3524 = vmatpush1.msra.mxu0 %v3331
        %3525 = vmatprep.subr.mxu0 %v3334
        %3526 = vmatpush1.msra.mxu0 %v3333
        %3527 = vmatprep.subr.mxu0 %v3336
        %3528 = vmatpush1.msra.mxu0 %v3335
        %3529 = vmatprep.subr.mxu0 %v3338
        %3530 = vmatpush1.msra.mxu0 %v3337
        %3531 = vmatprep.subr.mxu0 %v3340
        %3532 = vmatpush1.msra.mxu0 %v3339
        %3533 = vmatprep.subr.mxu0 %v3342
        %3534 = vmatpush1.msra.mxu0 %v3341
        %3535 = vmatprep.subr.mxu0 %v3344
        %3536 = vmatpush1.msra.mxu0 %v3343
        %3537 = vmatprep.subr.mxu0 %v3346
        %3538 = vmatpush1.msra.mxu0 %v3345
        %3539 = vmatprep.subr.mxu0 %v3348
        %3540 = vmatpush1.msra.mxu0 %v3347
        %3541 = vmatprep.subr.mxu0 %v3350
        %3542 = vmatpush1.msra.mxu0 %v3349
        %3543 = vmatprep.subr.mxu0 %v3352
        %3544 = vmatpush1.msra.mxu0 %v3351
        %3545 = vmatprep.subr.mxu0 %v3354
        %3546 = vmatpush1.msra.mxu0 %v3353
        %3547 = vmatprep.subr.mxu0 %v3356
        %3548 = vmatpush1.msra.mxu0 %v3355
        %3549 = vmatprep.subr.mxu0 %v3358
        %3550 = vmatpush1.msra.mxu0 %v3357
        %3551 = vmatprep.subr.mxu0 %v3360
        %3552 = vmatpush1.msra.mxu0 %v3359
        %3553 = vmatprep.subr.mxu0 %v3362
        %3554 = vmatpush1.msra.mxu0 %v3361
        %3555 = vmatprep.mubr.f32.mxu0 %v538
        %3556 = vmatmul.mubr.f32.gmra.mrb[0].mxu0 %v537
        %v3557 = vpop.f32.mrb[0].mxu0
        %v3558 = vadd.f32 0.0, %v3557
        %v3559 = vpop.f32.mrb[0].mxu0
        %v3560 = vadd.f32 0.0, %v3559
        %3561 = vmatprep.mubr.f32.mxu0 %v544
        %3562 = vmatmul.mubr.f32.gmra.mrb[0].mxu0 %v543
        %v3563 = vpop.f32.mrb[0].mxu0
        %v3564 = vadd.f32 0.0, %v3563
        %v3565 = vpop.f32.mrb[0].mxu0
        %v3566 = vadd.f32 0.0, %v3565
        %3567 = vmatprep.mubr.f32.mxu0 %v550
        %3568 = vmatmul.mubr.f32.gmra.mrb[0].mxu0 %v549
        %v3569 = vpop.f32.mrb[0].mxu0
        %v3570 = vadd.f32 0.0, %v3569
        %v3571 = vpop.f32.mrb[0].mxu0
        %v3572 = vadd.f32 0.0, %v3571
        %3573 = vmatprep.mubr.f32.mxu0 %v556
        %3574 = vmatmul.mubr.f32.gmra.mrb[0].mxu0 %v555
        %v3575 = vpop.f32.mrb[0].mxu0
        %v3576 = vadd.f32 0.0, %v3575
        %v3577 = vpop.f32.mrb[0].mxu0
        %v3578 = vadd.f32 0.0, %v3577
        %3579 = vmatprep.mubr.f32.mxu0 %v562
        %3580 = vmatmul.mubr.f32.gmra.mrb[0].mxu0 %v561
        %v3581 = vpop.f32.mrb[0].mxu0
        %v3582 = vadd.f32 0.0, %v3581
        %v3583 = vpop.f32.mrb[0].mxu0
        %v3584 = vadd.f32 0.0, %v3583
        %3585 = vmatprep.mubr.f32.mxu0 %v568
        %3586 = vmatmul.mubr.f32.gmra.mrb[0].mxu0 %v567
        %v3587 = vpop.f32.mrb[0].mxu0
        %v3588 = vadd.f32 0.0, %v3587
        %v3589 = vpop.f32.mrb[0].mxu0
        %v3590 = vadd.f32 0.0, %v3589
        %3591 = vmatprep.mubr.f32.mxu0 %v574
        %3592 = vmatmul.mubr.f32.gmra.mrb[0].mxu0 %v573
        %v3593 = vpop.f32.mrb[0].mxu0
        %v3594 = vadd.f32 0.0, %v3593
        %v3595 = vpop.f32.mrb[0].mxu0
        %v3596 = vadd.f32 0.0, %v3595
        %3597 = vmatprep.mubr.f32.mxu0 %v580
        %3598 = vmatmul.mubr.f32.gmra.mrb[0].mxu0 %v579
        %v3599 = vpop.f32.mrb[0].mxu0
        %v3600 = vadd.f32 0.0, %v3599
        %v3601 = vpop.f32.mrb[0].mxu0
        %v3602 = vadd.f32 0.0, %v3601
        %3603 = vmatprep.mubr.f32.mxu0 %v586
        %3604 = vmatmul.mubr.f32.gmra.mrb[0].mxu0 %v585
        %v3605 = vpop.f32.mrb[0].mxu0
        %v3606 = vadd.f32 0.0, %v3605
        %v3607 = vpop.f32.mrb[0].mxu0
        %v3608 = vadd.f32 0.0, %v3607
        %3609 = vmatprep.mubr.f32.mxu0 %v592
        %3610 = vmatmul.mubr.f32.gmra.mrb[0].mxu0 %v591
        %v3611 = vpop.f32.mrb[0].mxu0
        %v3612 = vadd.f32 0.0, %v3611
        %v3613 = vpop.f32.mrb[0].mxu0
        %v3614 = vadd.f32 0.0, %v3613
        %3615 = vmatprep.mubr.f32.mxu0 %v598
        %3616 = vmatmul.mubr.f32.gmra.mrb[0].mxu0 %v597
        %v3617 = vpop.f32.mrb[0].mxu0
        %v3618 = vadd.f32 0.0, %v3617
        %v3619 = vpop.f32.mrb[0].mxu0
        %v3620 = vadd.f32 0.0, %v3619
        %3621 = vmatprep.mubr.f32.mxu0 %v604
        %3622 = vmatmul.mubr.f32.gmra.mrb[0].mxu0 %v603
        %v3623 = vpop.f32.mrb[0].mxu0
        %v3624 = vadd.f32 0.0, %v3623
        %v3625 = vpop.f32.mrb[0].mxu0
        %v3626 = vadd.f32 0.0, %v3625
        %3627 = vmatprep.mubr.f32.mxu0 %v610
        %3628 = vmatmul.mubr.f32.gmra.mrb[0].mxu0 %v609
        %v3629 = vpop.f32.mrb[0].mxu0
        %v3630 = vadd.f32 0.0, %v3629
        %v3631 = vpop.f32.mrb[0].mxu0
        %v3632 = vadd.f32 0.0, %v3631
        %3633 = vmatprep.mubr.f32.mxu0 %v616
        %3634 = vmatmul.mubr.f32.gmra.mrb[0].mxu0 %v615
        %v3635 = vpop.f32.mrb[0].mxu0
        %v3636 = vadd.f32 0.0, %v3635
        %v3637 = vpop.f32.mrb[0].mxu0
        %v3638 = vadd.f32 0.0, %v3637
        %3639 = vmatprep.mubr.f32.mxu0 %v622
        %3640 = vmatmul.mubr.f32.gmra.mrb[0].mxu0 %v621
        %v3641 = vpop.f32.mrb[0].mxu0
        %v3642 = vadd.f32 0.0, %v3641
        %v3643 = vpop.f32.mrb[0].mxu0
        %v3644 = vadd.f32 0.0, %v3643
        %3645 = vmatprep.mubr.f32.mxu0 %v628
        %3646 = vmatmul.mubr.f32.gmra.mrb[0].mxu0 %v627
        %v3647 = vpop.f32.mrb[0].mxu0
        %v3648 = vadd.f32 0.0, %v3647
        %v3649 = vpop.f32.mrb[0].mxu0
        %v3650 = vadd.f32 0.0, %v3649
        %3651 = vdwg.mxu0
        %3652 = vmatprep.subr.mxu0 %v3364
        %3653 = vmatpush1.msra.mxu0 %v3363
        %3654 = vmatprep.subr.mxu0 %v3366
        %3655 = vmatpush1.msra.mxu0 %v3365
        %3656 = vmatprep.subr.mxu0 %v3368
        %3657 = vmatpush1.msra.mxu0 %v3367
        %3658 = vmatprep.subr.mxu0 %v3370
        %3659 = vmatpush1.msra.mxu0 %v3369
        %3660 = vmatprep.subr.mxu0 %v3372
        %3661 = vmatpush1.msra.mxu0 %v3371
        %3662 = vmatprep.subr.mxu0 %v3374
        %3663 = vmatpush1.msra.mxu0 %v3373
        %3664 = vmatprep.subr.mxu0 %v3376
        %3665 = vmatpush1.msra.mxu0 %v3375
        %3666 = vmatprep.subr.mxu0 %v3378
        %3667 = vmatpush1.msra.mxu0 %v3377
        %3668 = vmatprep.subr.mxu0 %v3380
        %3669 = vmatpush1.msra.mxu0 %v3379
        %3670 = vmatprep.subr.mxu0 %v3382
        %3671 = vmatpush1.msra.mxu0 %v3381
        %3672 = vmatprep.subr.mxu0 %v3384
        %3673 = vmatpush1.msra.mxu0 %v3383
        %3674 = vmatprep.subr.mxu0 %v3386
        %3675 = vmatpush1.msra.mxu0 %v3385
        %3676 = vmatprep.subr.mxu0 %v3388
        %3677 = vmatpush1.msra.mxu0 %v3387
        %3678 = vmatprep.subr.mxu0 %v3390
        %3679 = vmatpush1.msra.mxu0 %v3389
        %3680 = vmatprep.subr.mxu0 %v3392
        %3681 = vmatpush1.msra.mxu0 %v3391
        %3682 = vmatprep.subr.mxu0 %v3394
        %3683 = vmatpush1.msra.mxu0 %v3393
        %3684 = vmatprep.subr.mxu0 %v3396
        %3685 = vmatpush1.msra.mxu0 %v3395
        %3686 = vmatprep.subr.mxu0 %v3398
        %3687 = vmatpush1.msra.mxu0 %v3397
        %3688 = vmatprep.subr.mxu0 %v3400
        %3689 = vmatpush1.msra.mxu0 %v3399
        %3690 = vmatprep.subr.mxu0 %v3402
        %3691 = vmatpush1.msra.mxu0 %v3401
        %3692 = vmatprep.subr.mxu0 %v3404
        %3693 = vmatpush1.msra.mxu0 %v3403
        %3694 = vmatprep.subr.mxu0 %v3406
        %3695 = vmatpush1.msra.mxu0 %v3405
        %3696 = vmatprep.subr.mxu0 %v3408
        %3697 = vmatpush1.msra.mxu0 %v3407
        %3698 = vmatprep.subr.mxu0 %v3410
        %3699 = vmatpush1.msra.mxu0 %v3409
        %3700 = vmatprep.subr.mxu0 %v3412
        %3701 = vmatpush1.msra.mxu0 %v3411
        %3702 = vmatprep.subr.mxu0 %v3414
        %3703 = vmatpush1.msra.mxu0 %v3413
        %3704 = vmatprep.subr.mxu0 %v3416
        %3705 = vmatpush1.msra.mxu0 %v3415
        %3706 = vmatprep.subr.mxu0 %v3418
        %3707 = vmatpush1.msra.mxu0 %v3417
        %3708 = vmatprep.subr.mxu0 %v3420
        %3709 = vmatpush1.msra.mxu0 %v3419
        %3710 = vmatprep.subr.mxu0 %v3422
        %3711 = vmatpush1.msra.mxu0 %v3421
        %3712 = vmatprep.subr.mxu0 %v3424
        %3713 = vmatpush1.msra.mxu0 %v3423
        %3714 = vmatprep.subr.mxu0 %v3426
        %3715 = vmatpush1.msra.mxu0 %v3425
        %3716 = vmatprep.mubr.f32.mxu0 %v540
        %3717 = vmatmul.mubr.f32.gmra.mrb[0].mxu0 %v539
        %v3718 = vpop.f32.mrb[0].mxu0
        %v3719 = vadd.f32 %v3558, %v3718
        %v3720 = vpop.f32.mrb[0].mxu0
        %v3721 = vadd.f32 %v3560, %v3720
        %3722 = vmatprep.mubr.f32.mxu0 %v546
        %3723 = vmatmul.mubr.f32.gmra.mrb[0].mxu0 %v545
        %v3724 = vpop.f32.mrb[0].mxu0
        %v3725 = vadd.f32 %v3564, %v3724
        %v3726 = vpop.f32.mrb[0].mxu0
        %v3727 = vadd.f32 %v3566, %v3726
        %3728 = vmatprep.mubr.f32.mxu0 %v552
        %3729 = vmatmul.mubr.f32.gmra.mrb[0].mxu0 %v551
        %v3730 = vpop.f32.mrb[0].mxu0
        %v3731 = vadd.f32 %v3570, %v3730
        %v3732 = vpop.f32.mrb[0].mxu0
        %v3733 = vadd.f32 %v3572, %v3732
        %3734 = vmatprep.mubr.f32.mxu0 %v558
        %3735 = vmatmul.mubr.f32.gmra.mrb[0].mxu0 %v557
        %v3736 = vpop.f32.mrb[0].mxu0
        %v3737 = vadd.f32 %v3576, %v3736
        %v3738 = vpop.f32.mrb[0].mxu0
        %v3739 = vadd.f32 %v3578, %v3738
        %3740 = vmatprep.mubr.f32.mxu0 %v564
        %3741 = vmatmul.mubr.f32.gmra.mrb[0].mxu0 %v563
        %v3742 = vpop.f32.mrb[0].mxu0
        %v3743 = vadd.f32 %v3582, %v3742
        %v3744 = vpop.f32.mrb[0].mxu0
        %v3745 = vadd.f32 %v3584, %v3744
        %3746 = vmatprep.mubr.f32.mxu0 %v570
        %3747 = vmatmul.mubr.f32.gmra.mrb[0].mxu0 %v569
        %v3748 = vpop.f32.mrb[0].mxu0
        %v3749 = vadd.f32 %v3588, %v3748
        %v3750 = vpop.f32.mrb[0].mxu0
        %v3751 = vadd.f32 %v3590, %v3750
        %3752 = vmatprep.mubr.f32.mxu0 %v576
        %3753 = vmatmul.mubr.f32.gmra.mrb[0].mxu0 %v575
        %v3754 = vpop.f32.mrb[0].mxu0
        %v3755 = vadd.f32 %v3594, %v3754
        %v3756 = vpop.f32.mrb[0].mxu0
        %v3757 = vadd.f32 %v3596, %v3756
        %3758 = vmatprep.mubr.f32.mxu0 %v582
        %3759 = vmatmul.mubr.f32.gmra.mrb[0].mxu0 %v581
        %v3760 = vpop.f32.mrb[0].mxu0
        %v3761 = vadd.f32 %v3600, %v3760
        %v3762 = vpop.f32.mrb[0].mxu0
        %v3763 = vadd.f32 %v3602, %v3762
        %3764 = vmatprep.mubr.f32.mxu0 %v588
        %3765 = vmatmul.mubr.f32.gmra.mrb[0].mxu0 %v587
        %v3766 = vpop.f32.mrb[0].mxu0
        %v3767 = vadd.f32 %v3606, %v3766
        %v3768 = vpop.f32.mrb[0].mxu0
        %v3769 = vadd.f32 %v3608, %v3768
        %3770 = vmatprep.mubr.f32.mxu0 %v594
        %3771 = vmatmul.mubr.f32.gmra.mrb[0].mxu0 %v593
        %v3772 = vpop.f32.mrb[0].mxu0
        %v3773 = vadd.f32 %v3612, %v3772
        %v3774 = vpop.f32.mrb[0].mxu0
        %v3775 = vadd.f32 %v3614, %v3774
        %3776 = vmatprep.mubr.f32.mxu0 %v600
        %3777 = vmatmul.mubr.f32.gmra.mrb[0].mxu0 %v599
        %v3778 = vpop.f32.mrb[0].mxu0
        %v3779 = vadd.f32 %v3618, %v3778
        %v3780 = vpop.f32.mrb[0].mxu0
        %v3781 = vadd.f32 %v3620, %v3780
        %3782 = vmatprep.mubr.f32.mxu0 %v606
        %3783 = vmatmul.mubr.f32.gmra.mrb[0].mxu0 %v605
        %v3784 = vpop.f32.mrb[0].mxu0
        %v3785 = vadd.f32 %v3624, %v3784
        %v3786 = vpop.f32.mrb[0].mxu0
        %v3787 = vadd.f32 %v3626, %v3786
        %3788 = vmatprep.mubr.f32.mxu0 %v612
        %3789 = vmatmul.mubr.f32.gmra.mrb[0].mxu0 %v611
        %v3790 = vpop.f32.mrb[0].mxu0
        %v3791 = vadd.f32 %v3630, %v3790
        %v3792 = vpop.f32.mrb[0].mxu0
        %v3793 = vadd.f32 %v3632, %v3792
        %3794 = vmatprep.mubr.f32.mxu0 %v618
        %3795 = vmatmul.mubr.f32.gmra.mrb[0].mxu0 %v617
        %v3796 = vpop.f32.mrb[0].mxu0
        %v3797 = vadd.f32 %v3636, %v3796
        %v3798 = vpop.f32.mrb[0].mxu0
        %v3799 = vadd.f32 %v3638, %v3798
        %3800 = vmatprep.mubr.f32.mxu0 %v624
        %3801 = vmatmul.mubr.f32.gmra.mrb[0].mxu0 %v623
        %v3802 = vpop.f32.mrb[0].mxu0
        %v3803 = vadd.f32 %v3642, %v3802
        %v3804 = vpop.f32.mrb[0].mxu0
        %v3805 = vadd.f32 %v3644, %v3804
        %3806 = vmatprep.mubr.f32.mxu0 %v630
        %3807 = vmatmul.mubr.f32.gmra.mrb[0].mxu0 %v629
        %v3808 = vpop.f32.mrb[0].mxu0
        %v3809 = vadd.f32 %v3648, %v3808
        %v3810 = vpop.f32.mrb[0].mxu0
        %v3811 = vadd.f32 %v3650, %v3810
        %3812 = vdwg.mxu0
        %3813 = vmatprep.subr.mxu0 %v3428
        %3814 = vmatpush1.msra.mxu0 %v3427
        %3815 = vmatprep.subr.mxu0 %v3430
        %3816 = vmatpush1.msra.mxu0 %v3429
        %3817 = vmatprep.subr.mxu0 %v3432
        %3818 = vmatpush1.msra.mxu0 %v3431
        %3819 = vmatprep.subr.mxu0 %v3434
        %3820 = vmatpush1.msra.mxu0 %v3433
        %3821 = vmatprep.subr.mxu0 %v3436
        %3822 = vmatpush1.msra.mxu0 %v3435
        %3823 = vmatprep.subr.mxu0 %v3438
        %3824 = vmatpush1.msra.mxu0 %v3437
        %3825 = vmatprep.subr.mxu0 %v3440
        %3826 = vmatpush1.msra.mxu0 %v3439
        %3827 = vmatprep.subr.mxu0 %v3442
        %3828 = vmatpush1.msra.mxu0 %v3441
        %3829 = vmatprep.subr.mxu0 %v3444
        %3830 = vmatpush1.msra.mxu0 %v3443
        %3831 = vmatprep.subr.mxu0 %v3446
        %3832 = vmatpush1.msra.mxu0 %v3445
        %3833 = vmatprep.subr.mxu0 %v3448
        %3834 = vmatpush1.msra.mxu0 %v3447
        %3835 = vmatprep.subr.mxu0 %v3450
        %3836 = vmatpush1.msra.mxu0 %v3449
        %3837 = vmatprep.subr.mxu0 %v3452
        %3838 = vmatpush1.msra.mxu0 %v3451
        %3839 = vmatprep.subr.mxu0 %v3454
        %3840 = vmatpush1.msra.mxu0 %v3453
        %3841 = vmatprep.subr.mxu0 %v3456
        %3842 = vmatpush1.msra.mxu0 %v3455
        %3843 = vmatprep.subr.mxu0 %v3458
        %3844 = vmatpush1.msra.mxu0 %v3457
        %3845 = vmatprep.subr.mxu0 %v3460
        %3846 = vmatpush1.msra.mxu0 %v3459
        %3847 = vmatprep.subr.mxu0 %v3462
        %3848 = vmatpush1.msra.mxu0 %v3461
        %3849 = vmatprep.subr.mxu0 %v3464
        %3850 = vmatpush1.msra.mxu0 %v3463
        %3851 = vmatprep.subr.mxu0 %v3466
        %3852 = vmatpush1.msra.mxu0 %v3465
        %3853 = vmatprep.subr.mxu0 %v3468
        %3854 = vmatpush1.msra.mxu0 %v3467
        %3855 = vmatprep.subr.mxu0 %v3470
        %3856 = vmatpush1.msra.mxu0 %v3469
        %3857 = vmatprep.subr.mxu0 %v3472
        %3858 = vmatpush1.msra.mxu0 %v3471
        %3859 = vmatprep.subr.mxu0 %v3474
        %3860 = vmatpush1.msra.mxu0 %v3473
        %3861 = vmatprep.subr.mxu0 %v3476
        %3862 = vmatpush1.msra.mxu0 %v3475
        %3863 = vmatprep.subr.mxu0 %v3478
        %3864 = vmatpush1.msra.mxu0 %v3477
        %3865 = vmatprep.subr.mxu0 %v3480
        %3866 = vmatpush1.msra.mxu0 %v3479
        %3867 = vmatprep.subr.mxu0 %v3482
        %3868 = vmatpush1.msra.mxu0 %v3481
        %3869 = vmatprep.subr.mxu0 %v3484
        %3870 = vmatpush1.msra.mxu0 %v3483
        %3871 = vmatprep.subr.mxu0 %v3486
        %3872 = vmatpush1.msra.mxu0 %v3485
        %3873 = vmatprep.subr.mxu0 %v3488
        %3874 = vmatpush1.msra.mxu0 %v3487
        %3875 = vmatprep.subr.mxu0 %v3490
        %3876 = vmatpush1.msra.mxu0 %v3489
        %3877 = vmatprep.mubr.f32.mxu0 %v542
        %3878 = vmatmul.mubr.f32.gmra.mrb[0].mxu0 %v541
        %v3879 = vpop.f32.mrb[0].mxu0
        %v3880 = vadd.f32 %v3719, %v3879
        %v3881 = vpop.f32.mrb[0].mxu0
        %v3882 = vadd.f32 %v3721, %v3881
        %3883 = vmatprep.mubr.f32.mxu0 %v548
        %3884 = vmatmul.mubr.f32.gmra.mrb[0].mxu0 %v547
        %v3885 = vpop.f32.mrb[0].mxu0
        %v3886 = vadd.f32 %v3725, %v3885
        %v3887 = vpop.f32.mrb[0].mxu0
        %v3888 = vadd.f32 %v3727, %v3887
        %3889 = vmatprep.mubr.f32.mxu0 %v554
        %3890 = vmatmul.mubr.f32.gmra.mrb[0].mxu0 %v553
        %v3891 = vpop.f32.mrb[0].mxu0
        %v3892 = vadd.f32 %v3731, %v3891
        %v3893 = vpop.f32.mrb[0].mxu0
        %v3894 = vadd.f32 %v3733, %v3893
        %3895 = vmatprep.mubr.f32.mxu0 %v560
        %3896 = vmatmul.mubr.f32.gmra.mrb[0].mxu0 %v559
        %v3897 = vpop.f32.mrb[0].mxu0
        %v3898 = vadd.f32 %v3737, %v3897
        %v3899 = vpop.f32.mrb[0].mxu0
        %v3900 = vadd.f32 %v3739, %v3899
        %3901 = vmatprep.mubr.f32.mxu0 %v566
        %3902 = vmatmul.mubr.f32.gmra.mrb[0].mxu0 %v565
        %v3903 = vpop.f32.mrb[0].mxu0
        %v3904 = vadd.f32 %v3743, %v3903
        %v3905 = vpop.f32.mrb[0].mxu0
        %v3906 = vadd.f32 %v3745, %v3905
        %3907 = vmatprep.mubr.f32.mxu0 %v572
        %3908 = vmatmul.mubr.f32.gmra.mrb[0].mxu0 %v571
        %v3909 = vpop.f32.mrb[0].mxu0
        %v3910 = vadd.f32 %v3749, %v3909
        %v3911 = vpop.f32.mrb[0].mxu0
        %v3912 = vadd.f32 %v3751, %v3911
        %3913 = vmatprep.mubr.f32.mxu0 %v578
        %3914 = vmatmul.mubr.f32.gmra.mrb[0].mxu0 %v577
        %v3915 = vpop.f32.mrb[0].mxu0
        %v3916 = vadd.f32 %v3755, %v3915
        %v3917 = vpop.f32.mrb[0].mxu0
        %v3918 = vadd.f32 %v3757, %v3917
        %3919 = vmatprep.mubr.f32.mxu0 %v584
        %3920 = vmatmul.mubr.f32.gmra.mrb[0].mxu0 %v583
        %v3921 = vpop.f32.mrb[0].mxu0
        %v3922 = vadd.f32 %v3761, %v3921
        %v3923 = vpop.f32.mrb[0].mxu0
        %v3924 = vadd.f32 %v3763, %v3923
        %3925 = vmatprep.mubr.f32.mxu0 %v590
        %3926 = vmatmul.mubr.f32.gmra.mrb[0].mxu0 %v589
        %v3927 = vpop.f32.mrb[0].mxu0
        %v3928 = vadd.f32 %v3767, %v3927
        %v3929 = vpop.f32.mrb[0].mxu0
        %v3930 = vadd.f32 %v3769, %v3929
        %3931 = vmatprep.mubr.f32.mxu0 %v596
        %3932 = vmatmul.mubr.f32.gmra.mrb[0].mxu0 %v595
        %v3933 = vpop.f32.mrb[0].mxu0
        %v3934 = vadd.f32 %v3773, %v3933
        %v3935 = vpop.f32.mrb[0].mxu0
        %v3936 = vadd.f32 %v3775, %v3935
        %3937 = vmatprep.mubr.f32.mxu0 %v602
        %3938 = vmatmul.mubr.f32.gmra.mrb[0].mxu0 %v601
        %v3939 = vpop.f32.mrb[0].mxu0
        %v3940 = vadd.f32 %v3779, %v3939
        %v3941 = vpop.f32.mrb[0].mxu0
        %v3942 = vadd.f32 %v3781, %v3941
        %3943 = vmatprep.mubr.f32.mxu0 %v608
        %3944 = vmatmul.mubr.f32.gmra.mrb[0].mxu0 %v607
        %v3945 = vpop.f32.mrb[0].mxu0
        %v3946 = vadd.f32 %v3785, %v3945
        %v3947 = vpop.f32.mrb[0].mxu0
        %v3948 = vadd.f32 %v3787, %v3947
        %3949 = vmatprep.mubr.f32.mxu0 %v614
        %3950 = vmatmul.mubr.f32.gmra.mrb[0].mxu0 %v613
        %v3951 = vpop.f32.mrb[0].mxu0
        %v3952 = vadd.f32 %v3791, %v3951
        %v3953 = vpop.f32.mrb[0].mxu0
        %v3954 = vadd.f32 %v3793, %v3953
        %3955 = vmatprep.mubr.f32.mxu0 %v620
        %3956 = vmatmul.mubr.f32.gmra.mrb[0].mxu0 %v619
        %v3957 = vpop.f32.mrb[0].mxu0
        %v3958 = vadd.f32 %v3797, %v3957
        %v3959 = vpop.f32.mrb[0].mxu0
        %v3960 = vadd.f32 %v3799, %v3959
        %3961 = vmatprep.mubr.f32.mxu0 %v626
        %3962 = vmatmul.mubr.f32.gmra.mrb[0].mxu0 %v625
        %v3963 = vpop.f32.mrb[0].mxu0
        %v3964 = vadd.f32 %v3803, %v3963
        %v3965 = vpop.f32.mrb[0].mxu0
        %v3966 = vadd.f32 %v3805, %v3965
        %3967 = vmatprep.mubr.f32.mxu0 %v632
        %3968 = vmatmul.mubr.f32.gmra.mrb[0].mxu0 %v631
        %v3969 = vpop.f32.mrb[0].mxu0
        %v3970 = vadd.f32 %v3809, %v3969
        %v3971 = vpop.f32.mrb[0].mxu0
        %v3972 = vadd.f32 %v3811, %v3971
        %3973 = vdwg.mxu0
        %v3974 = vadd.f32 %v3205, %v3880
        %v3975 = vadd.f32 %v3207, %v3882
        %v3976 = vadd.f32 %v3211, %v3886
        %v3977 = vadd.f32 %v3213, %v3888
        %v3978 = vadd.f32 %v3217, %v3892
        %v3979 = vadd.f32 %v3219, %v3894
        %v3980 = vadd.f32 %v3223, %v3898
        %v3981 = vadd.f32 %v3225, %v3900
        %v3982 = vadd.f32 %v3229, %v3904
        %v3983 = vadd.f32 %v3231, %v3906
        %v3984 = vadd.f32 %v3235, %v3910
        %v3985 = vadd.f32 %v3237, %v3912
        %v3986 = vadd.f32 %v3241, %v3916
        %v3987 = vadd.f32 %v3243, %v3918
        %v3988 = vadd.f32 %v3247, %v3922
        %v3989 = vadd.f32 %v3249, %v3924
        %v3990 = vadd.f32 %v3253, %v3928
        %v3991 = vadd.f32 %v3255, %v3930
        %v3992 = vadd.f32 %v3259, %v3934
        %v3993 = vadd.f32 %v3261, %v3936
        %v3994 = vadd.f32 %v3265, %v3940
        %v3995 = vadd.f32 %v3267, %v3942
        %v3996 = vadd.f32 %v3271, %v3946
        %v3997 = vadd.f32 %v3273, %v3948
        %v3998 = vadd.f32 %v3277, %v3952
        %v3999 = vadd.f32 %v3279, %v3954
        %v4000 = vadd.f32 %v3283, %v3958
        %v4001 = vadd.f32 %v3285, %v3960
        %v4002 = vadd.f32 %v3289, %v3964
        %v4003 = vadd.f32 %v3291, %v3966
        %v4004 = vadd.f32 %v3295, %v3970
        %v4005 = vadd.f32 %v3297, %v3972
        %v4006 = vld [vmem:[%s7] sm:$0x3]
        %v4008 = vlaneseq
        %v4009 = vshrl.u32 %v4008, 7
        %v4010 = vsub.s32 0, %v4009
        %v4011 = vrot.slane %v4006, %v4010
        %v4012 = vlaneseq
        %v4013 = vshrl.u32 %v4012, 7
        %v4014 = vsub.s32 1, %v4013
        %v4015 = vrot.slane %v4006, %v4014
        %v4018 = vadd.f32 %v3974, %v4011
        %v4019 = vadd.f32 %v3975, %v4015
        %v4020 = vadd.f32 %v3976, %v4011
        %v4021 = vadd.f32 %v3977, %v4015
        %v4022 = vadd.f32 %v3978, %v4011
        %v4023 = vadd.f32 %v3979, %v4015
        %v4024 = vadd.f32 %v3980, %v4011
        %v4025 = vadd.f32 %v3981, %v4015
        %v4026 = vadd.f32 %v3982, %v4011
        %v4027 = vadd.f32 %v3983, %v4015
        %v4028 = vadd.f32 %v3984, %v4011
        %v4029 = vadd.f32 %v3985, %v4015
        %v4030 = vadd.f32 %v3986, %v4011
        %v4031 = vadd.f32 %v3987, %v4015
        %v4032 = vadd.f32 %v3988, %v4011
        %v4033 = vadd.f32 %v3989, %v4015
        %v4034 = vadd.f32 %v3990, %v4011
        %v4035 = vadd.f32 %v3991, %v4015
        %v4036 = vadd.f32 %v3992, %v4011
        %v4037 = vadd.f32 %v3993, %v4015
        %v4038 = vadd.f32 %v3994, %v4011
        %v4039 = vadd.f32 %v3995, %v4015
        %v4040 = vadd.f32 %v3996, %v4011
        %v4041 = vadd.f32 %v3997, %v4015
        %v4042 = vadd.f32 %v3998, %v4011
        %v4043 = vadd.f32 %v3999, %v4015
        %v4044 = vadd.f32 %v4000, %v4011
        %v4045 = vadd.f32 %v4001, %v4015
        %v4046 = vadd.f32 %v4002, %v4011
        %v4047 = vadd.f32 %v4003, %v4015
        %v4048 = vadd.f32 %v4004, %v4011
        %v4049 = vadd.f32 %v4005, %v4015
        %4050 = vst [vmem:[%s437] sm:$0xff] %v4018
        %4051 = vst [vmem:[%s437 + $0x8] sm:$0xff] %v4019
        %4052 = vst [vmem:[%s437 + $0x10] sm:$0xff] %v4020
        %4053 = vst [vmem:[%s437 + $0x18] sm:$0xff] %v4021
        %4054 = vst [vmem:[%s437 + $0x20] sm:$0xff] %v4022
        %4055 = vst [vmem:[%s437 + $0x28] sm:$0xff] %v4023
        %4056 = vst [vmem:[%s437 + $0x30] sm:$0xff] %v4024
        %4057 = vst [vmem:[%s437 + $0x38] sm:$0xff] %v4025
        %4058 = vst [vmem:[%s437 + $0x40] sm:$0xff] %v4026
        %4059 = vst [vmem:[%s437 + $0x48] sm:$0xff] %v4027
        %4060 = vst [vmem:[%s437 + $0x50] sm:$0xff] %v4028
        %4061 = vst [vmem:[%s437 + $0x58] sm:$0xff] %v4029
        %4062 = vst [vmem:[%s437 + $0x60] sm:$0xff] %v4030
        %4063 = vst [vmem:[%s437 + $0x68] sm:$0xff] %v4031
        %4064 = vst [vmem:[%s437 + $0x70] sm:$0xff] %v4032
        %4065 = vst [vmem:[%s437 + $0x78] sm:$0xff] %v4033
        %4066 = vst [vmem:[%s437 + $0x80] sm:$0xff] %v4034
        %4067 = vst [vmem:[%s437 + $0x88] sm:$0xff] %v4035
        %4068 = vst [vmem:[%s437 + $0x90] sm:$0xff] %v4036
        %4069 = vst [vmem:[%s437 + $0x98] sm:$0xff] %v4037
        %4070 = vst [vmem:[%s437 + $0xa0] sm:$0xff] %v4038
        %4071 = vst [vmem:[%s437 + $0xa8] sm:$0xff] %v4039
        %4072 = vst [vmem:[%s437 + $0xb0] sm:$0xff] %v4040
        %4073 = vst [vmem:[%s437 + $0xb8] sm:$0xff] %v4041
        %4074 = vst [vmem:[%s437 + $0xc0] sm:$0xff] %v4042
        %4075 = vst [vmem:[%s437 + $0xc8] sm:$0xff] %v4043
        %4076 = vst [vmem:[%s437 + $0xd0] sm:$0xff] %v4044
        %4077 = vst [vmem:[%s437 + $0xd8] sm:$0xff] %v4045
        %4078 = vst [vmem:[%s437 + $0xe0] sm:$0xff] %v4046
        %4079 = vst [vmem:[%s437 + $0xe8] sm:$0xff] %v4047
        %4080 = vst [vmem:[%s437 + $0xf0] sm:$0xff] %v4048
        %4081 = vst [vmem:[%s437 + $0xf8] sm:$0xff] %v4049
        %s4082 = sand.u32 %s216, 1
        %s4083 = scalar_lea.sflag [#allocation4], %s4082
        %s4084 = sand.u32 %s216, 1
        %s4085 = smul.addr %s4084, 256
        %s4086 = scalar_lea.vmem [#allocation14], %s4085
        // Predicated region
        $region81: #{_bilinear_pooling_padded.1} parent=51 // pred_check
          %p4087 = pneg %p226
        $region82: #{_bilinear_pooling_padded.1} parent=51 // pred_check_branch
          %4089 = sbr.rel (%p4087) target = $region84
        $region83: #{_bilinear_pooling_padded.1} parent=51 // pred_region
          %s4090 = smul.u32 16, %s30
          %s4092 = ssub.s32 4096, 4096
          %4093 = vsyncadd %s4083, %s4092
          %s4094 = smul.addr %s4090, 2
          %s4095 = smul.addr %s4094, 128
          %s4096 = scalar_lea.hbm %s8, %s4095
          %s4097 = sshll.u32 %s4086, 4
          %s4098 = int_to_ptr.vmem [resolvable:$true] %s4097
          %4103 = dma.vmem_to_hbm [thread:$0]  %s4098, 4096, %s4096, %s4083, 256, 256, 16
        $region84: #{_bilinear_pooling_padded.1} parent=51 // pred_fallthru
          _
      $region52: #{_bilinear_pooling_padded.1} parent=5 // pred_fallthru
        _
      %p4104 = scmp.le.s32.totalorder 2, %s25
      // Predicated region
      $region85: #{_bilinear_pooling_padded.1} parent=5 // pred_check
        %p4105 = pneg %p4104
      $region86: #{_bilinear_pooling_padded.1} parent=5 // pred_check_branch
        %4107 = sbr.rel (%p4105) target = $region88
      $region87: #{_bilinear_pooling_padded.1} parent=5 // pred_region
        %s4108 = ssub.s32 %s25, 2
        // Predicated region
        $region89: #{_bilinear_pooling_padded.1} parent=87 // pred_check
          %p4109 = pneg %p232
        $region90: #{_bilinear_pooling_padded.1} parent=87 // pred_check_branch
          %4111 = sbr.rel (%p4109) target = $region92
        $region91: #{_bilinear_pooling_padded.1} parent=87 // pred_region
          %s4112 = sand.u32 %s217, 1
          %s4113 = scalar_lea.sflag [#allocation4], %s4112
          %s4114 = sand.u32 %s217, 1
          %s4115 = smul.addr %s4114, 256
          %s4116 = scalar_lea.vmem [#allocation14], %s4115
          %4117 = dma.done %s4113, 4096
        $region92: #{_bilinear_pooling_padded.1} parent=87 // pred_fallthru
          _
      $region88: #{_bilinear_pooling_padded.1} parent=5 // pred_fallthru
        _
    $region6: #{_bilinear_pooling_padded.1} parent=1 // loop_footer
      %s29 = sadd.s32 1, %s25
    $region7: #{_bilinear_pooling_padded.1} parent=1 // loop_footer_branch
      %24 = sbr.rel target = $region3
    $region8: #{_bilinear_pooling_padded.1} parent=1 // loop_exit
      _
    %4118 = vsyncpa [#allocation3], 1
    %s4119 = scalar_lea.sflag [#allocation3], 1
    %4120 = vsyncpa %s4119, 1
    %4121 = vsyncpa [#allocation6], 1
    %s4122 = scalar_lea.sflag [#allocation6], 1
    %4123 = vsyncpa %s4122, 1
    %4124 = vsyncpa [#allocation9], 1
    %4125 = vsyncpa [#allocation12], 1
    %4126 = vsyncpa [#allocation4], 1
    %s4127 = scalar_lea.sflag [#allocation4], 1
    %4128 = vsyncpa %s4127, 1

</llo_original>
